<compile_context>
chip_gen: v7x
topology: tpu7x:2x2x1
jax: 0.10.0
libtpu: 0.0.40
codegen_flags: <defaults>
</compile_context>

<pallas_src>
import functools

import jax
import jax.numpy as jnp
from jax import lax
from jax.experimental import pallas as pl
from jax.experimental.pallas import tpu as pltpu


# -----------------------------------------------------------------------------
# Kernel 1: hoisted GRU input projection, parallel over the 3 gates (r, z, n).
#   gi[g] = emb_flat @ W_ih[g] + b_ih[g]      -> (3, tgt_len*batch, hidden)
# Runs at full MXU efficiency (M = tgt_len*batch) instead of inside the
# serial recurrence, and keeps each gate in its own lane-aligned slab.
# -----------------------------------------------------------------------------
def input_proj_kernel(x_ref, w_ref, b_ref, out_ref):
    out_ref[0] = (
        jnp.dot(x_ref[...], w_ref[0], preferred_element_type=jnp.float32)
        + b_ref[0]
    )


def run_input_proj(emb_flat, w_ih, b_ih):
    n, e = emb_flat.shape
    hidden = w_ih.shape[-1]
    return pl.pallas_call(
        input_proj_kernel,
        out_shape=jax.ShapeDtypeStruct((3, n, hidden), jnp.float32),
        grid_spec=pltpu.PrefetchScalarGridSpec(
            num_scalar_prefetch=0,
            grid=(3,),
            in_specs=[
                pl.BlockSpec((n, e), lambda g: (0, 0)),          # resident
                pl.BlockSpec((1, e, hidden), lambda g: (g, 0, 0)),
                pl.BlockSpec((1, 1, hidden), lambda g: (g, 0, 0)),
            ],
            out_specs=pl.BlockSpec((1, n, hidden), lambda g: (g, 0, 0)),
        ),
        compiler_params=pltpu.CompilerParams(
            dimension_semantics=("parallel",)),
    )(emb_flat, w_ih, b_ih)


# -----------------------------------------------------------------------------
# Kernel 2: single-layer GRU recurrence over the target sequence.
# Grid iterates sequentially over tgt_len ("arbitrary"); hidden state is
# carried in VMEM scratch.  The per-step input projection gi is precomputed
# (kernel 1) and streamed per step; only the H->3H recurrence matmuls remain
# in the serial loop.  Output is one resident (T, B, H) slab written back once.
# PyTorch GRU: r = s(gi_r + gh_r); z = s(gi_z + gh_z);
#              n = tanh(gi_n + r * gh_n); h' = (1 - z) * n + z * h
# -----------------------------------------------------------------------------
def gru_kernel(gi_ref, h0_ref, whh_ref, bhh_ref, out_ref, h_scr):
    t = pl.program_id(0)

    @pl.when(t == 0)
    def _():
        h_scr[...] = h0_ref[...]

    h = h_scr[...]                       # (B, H)

    gi_r = gi_ref[0, 0]                  # (B, H)  -- b_ih already folded in
    gi_z = gi_ref[1, 0]
    gi_n = gi_ref[2, 0]

    gh_r = jnp.dot(h, whh_ref[0], preferred_element_type=jnp.float32) + bhh_ref[0]
    gh_z = jnp.dot(h, whh_ref[1], preferred_element_type=jnp.float32) + bhh_ref[1]
    gh_n = jnp.dot(h, whh_ref[2], preferred_element_type=jnp.float32) + bhh_ref[2]

    r = jax.nn.sigmoid(gi_r + gh_r)
    z = jax.nn.sigmoid(gi_z + gh_z)
    n = jnp.tanh(gi_n + r * gh_n)
    h_new = (1.0 - z) * n + z * h

    h_scr[...] = h_new
    out_ref[t] = h_new                   # resident slab; single HBM writeback


def run_gru(gi, h0, w_hh, b_hh):
    _, tgt_len, batch, hidden = gi.shape
    return pl.pallas_call(
        gru_kernel,
        out_shape=jax.ShapeDtypeStruct((tgt_len, batch, hidden), jnp.float32),
        grid_spec=pltpu.PrefetchScalarGridSpec(
            num_scalar_prefetch=0,
            grid=(tgt_len,),
            in_specs=[
                pl.BlockSpec((3, 1, batch, hidden), lambda t: (0, t, 0, 0)),
                pl.BlockSpec((batch, hidden), lambda t: (0, 0)),
                pl.BlockSpec((3, hidden, hidden), lambda t: (0, 0, 0)),
                pl.BlockSpec((3, 1, hidden), lambda t: (0, 0, 0)),
            ],
            out_specs=pl.BlockSpec((tgt_len, batch, hidden),
                                   lambda t: (0, 0, 0)),
            scratch_shapes=[pltpu.VMEM((batch, hidden), jnp.float32)],
        ),
        compiler_params=pltpu.CompilerParams(
            dimension_semantics=("arbitrary",)),
    )(gi, h0, w_hh, b_hh)


# -----------------------------------------------------------------------------
# Kernel 3: GlobalAttention (attn_type='general'), fully time-major.
#   score   = (H @ W_a) . M          (per batch element, contract last dims)
#   align   = softmax(score masked by memory_lengths)
#   context = align @ M
#   attn_h  = tanh(context @ Wc_ctx + H @ Wc_h)     (split linear_out, no concat)
# Single grid step; the (small, static) batch is an unrolled loop so inputs
# and outputs keep the PyTorch [tgt_len, batch, *] layout -> no HBM transposes.
# memory_lengths lives in SMEM via scalar prefetch.
# -----------------------------------------------------------------------------
def attn_kernel(lens_ref, h_ref, m_ref, wa_ref, wcc_ref, wch_ref,
                out_ref, attn_ref):
    T, B, H = h_ref.shape
    S = m_ref.shape[0]

    h_all = h_ref[...]                   # (T, B, H)
    m_all = m_ref[...]                   # (S, B, H)
    wa = wa_ref[...]
    wcc = wcc_ref[...]
    wch = wch_ref[...]

    outs = []
    aligns = []
    for b in range(B):                   # static unroll (B known at trace time)
        Hb = h_all[:, b, :]              # (T, H)
        Mb = m_all[:, b, :]              # (S, H)

        ht = jnp.dot(Hb, wa, preferred_element_type=jnp.float32)     # (T, H)
        # contract last dims -> no explicit Mb.T relayout
        scores = lax.dot_general(ht, Mb, (((1,), (1,)), ((), ())),
                                 preferred_element_type=jnp.float32)  # (T, S)

        s_idx = lax.broadcasted_iota(jnp.int32, (T, S), 1)
        scores = jnp.where(s_idx < lens_ref[b], scores, -1e30)

        scores = scores - jnp.max(scores, axis=-1, keepdims=True)
        e = jnp.exp(scores)
        align = e * pl.reciprocal(jnp.sum(e, axis=-1, keepdims=True),
                                  approx=True)

        ctx = jnp.dot(align, Mb, preferred_element_type=jnp.float32)  # (T, H)
        attn_h = jnp.tanh(
            jnp.dot(ctx, wcc, preferred_element_type=jnp.float32)
            + jnp.dot(Hb, wch, preferred_element_type=jnp.float32))

        outs.append(attn_h)
        aligns.append(align)

    out_ref[...] = jnp.stack(outs, axis=1)      # (T, B, H)  time-major
    attn_ref[...] = jnp.stack(aligns, axis=1)   # (T, B, S)


def run_attention(rnn_out, memory_bank, memory_lengths, w_a, w_c_ctx, w_c_h):
    T, B, H = rnn_out.shape
    S = memory_bank.shape[0]
    return pl.pallas_call(
        attn_kernel,
        out_shape=(
            jax.ShapeDtypeStruct((T, B, H), jnp.float32),
            jax.ShapeDtypeStruct((T, B, S), jnp.float32),
        ),
        grid_spec=pltpu.PrefetchScalarGridSpec(
            num_scalar_prefetch=1,
            grid=(1,),
            in_specs=[
                pl.BlockSpec((T, B, H), lambda i, lens: (0, 0, 0)),
                pl.BlockSpec((S, B, H), lambda i, lens: (0, 0, 0)),
                pl.BlockSpec((H, H), lambda i, lens: (0, 0)),
                pl.BlockSpec((H, H), lambda i, lens: (0, 0)),
                pl.BlockSpec((H, H), lambda i, lens: (0, 0)),
            ],
            out_specs=[
                pl.BlockSpec((T, B, H), lambda i, lens: (0, 0, 0)),
                pl.BlockSpec((T, B, S), lambda i, lens: (0, 0, 0)),
            ],
        ),
        compiler_params=pltpu.CompilerParams(
            dimension_semantics=("arbitrary",)),
    )(memory_lengths, rnn_out, memory_bank, w_a, w_c_ctx, w_c_h)


# -----------------------------------------------------------------------------
# Wrapper reproducing RNNDecoderBase.forward (StdRNNDecoder flavor).
# -----------------------------------------------------------------------------
@jax.jit
def rnn_decoder_forward(params, tgt, memory_bank, hidden0, memory_lengths):
    tgt_len, batch = tgt.shape
    hidden = hidden0.shape[-1]

    # Embedding lookup (XLA glue; fused under jit with the projection input).
    emb = params["embedding"][tgt].astype(jnp.float32)      # [T, B, E]
    emb_flat = emb.reshape(tgt_len * batch, -1)              # [T*B, E]

    # Hoisted input projection (Pallas, parallel over gates).
    gi = run_input_proj(emb_flat, params["w_ih"], params["b_ih"])
    gi = gi.reshape(3, tgt_len, batch, hidden)               # per-gate slabs

    # GRU recurrence over time (Pallas, sequential).
    rnn_out = run_gru(gi, hidden0[0], params["w_hh"], params["b_hh"])
    decoder_final = rnn_out[-1][None]                        # [1, B, H]

    # GlobalAttention (Pallas), time-major in and out -> no transposes.
    decoder_outputs, attns_std = run_attention(
        rnn_out, memory_bank, memory_lengths,
        params["w_a"], params["w_c_ctx"], params["w_c_h"])

    # dropout p=0.0 -> identity.
    final_output = decoder_outputs[-1]                       # [B, H]
    new_state = {
        "hidden": (decoder_final,),
        "input_feed": final_output[None],                    # [1, B, H]
        "coverage": None,
    }
    return decoder_outputs, new_state, {"std": attns_std}


def make_params(key, vocab, emb_dim, hidden):
    ks = jax.random.split(key, 8)
    s = 0.1
    return {
        "embedding": s * jax.random.normal(ks[0], (vocab, emb_dim), jnp.float32),
        # per-gate layout (r, z, n): lane-aligned slabs, no offset slicing
        "w_ih": s * jax.random.normal(ks[1], (3, emb_dim, hidden), jnp.float32),
        "w_hh": s * jax.random.normal(ks[2], (3, hidden, hidden), jnp.float32),
        "b_ih": s * jax.random.normal(ks[3], (3, 1, hidden), jnp.float32),
        "b_hh": s * jax.random.normal(ks[4], (3, 1, hidden), jnp.float32),
        "w_a": s * jax.random.normal(ks[5], (hidden, hidden), jnp.float32),
        # linear_out split into the context / hidden halves of W_c (no concat)
        "w_c_ctx": s * jax.random.normal(ks[6], (hidden, hidden), jnp.float32),
        "w_c_h": s * jax.random.normal(ks[7], (hidden, hidden), jnp.float32),
    }


if __name__ == "__main__":
    key = jax.random.PRNGKey(0)
    # Small but lane/sublane-aligned shapes: batch multiple of 8, hidden = 128.
    tgt_len, src_len, batch = 6, 8, 8
    vocab, emb_dim, hidden = 32, 128, 128

    k1, k2, k3, kp = jax.random.split(key, 4)
    tgt = jax.random.randint(k1, (tgt_len, batch), 0, vocab, dtype=jnp.int32)
    memory_bank = jax.random.normal(k2, (src_len, batch, hidden), jnp.float32)
    # encoder final hidden (bidirectional_encoder=False, num_layers=1)
    enc_final = jax.random.normal(k3, (1, batch, hidden), jnp.float32)
    memory_lengths = jnp.array([8, 8, 7, 6, 5, 8, 4, 8], dtype=jnp.int32)

    params = make_params(kp, vocab, emb_dim, hidden)

    dec_out, state, attns = rnn_decoder_forward(
        params, tgt, memory_bank, enc_final, memory_lengths)

    jax.block_until_ready(dec_out)
    jax.block_until_ready(attns["std"])
    jax.block_until_ready(state["input_feed"])

    assert dec_out.shape == (tgt_len, batch, hidden)
    assert attns["std"].shape == (tgt_len, batch, src_len)
    assert state["hidden"][0].shape == (1, batch, hidden)
    assert state["input_feed"].shape == (1, batch, hidden)
    assert bool(jnp.all(jnp.isfinite(dec_out)))
    print("KERNEL_OK")
</pallas_src>

<mosaic_0001>
module attributes {stable_mosaic.version = 11 : i64} {
  func.func @gru_kernel(%arg0: i32, %arg1: memref<3x1x8x128xf32, #tpu.memory_space<vmem>>, %arg2: memref<8x128xf32, #tpu.memory_space<vmem>>, %arg3: memref<3x128x128xf32, #tpu.memory_space<vmem>>, %arg4: memref<3x1x128xf32, #tpu.memory_space<vmem>>, %arg5: memref<6x8x128xf32, #tpu.memory_space<vmem>>, %arg6: memref<8x128xf32, #tpu.memory_space<vmem>>) attributes {dimension_semantics = [#tpu.dimension_semantics<arbitrary>], iteration_bounds = array<i64: 6>, scalar_prefetch = 0 : i64, scratch_operands = 1 : i64, tpu.core_type = #tpu.core_type<tc>, window_params = [{transform_indices = @transform_0, window_bounds = array<i64: 3, 1, 8, 128>}, {pipeline_mode = #tpu.pipeline_mode<synchronous>, transform_indices = @transform_1, window_bounds = array<i64: 8, 128>}, {pipeline_mode = #tpu.pipeline_mode<synchronous>, transform_indices = @transform_2, window_bounds = array<i64: 3, 128, 128>}, {pipeline_mode = #tpu.pipeline_mode<synchronous>, transform_indices = @transform_3, window_bounds = array<i64: 3, 1, 128>}, {pipeline_mode = #tpu.pipeline_mode<synchronous>, transform_indices = @transform_4, window_bounds = array<i64: 6, 8, 128>}]} {
    %c0_i32 = arith.constant 0 : i32
    %0 = arith.cmpi eq, %arg0, %c0_i32 : i32
    %1 = arith.extui %0 : i1 to i32
    %c0_i32_0 = arith.constant 0 : i32
    %2 = arith.cmpi ne, %1, %c0_i32_0 : i32
    scf.if %2 {
      %c0_39 = arith.constant 0 : index
      %c0_40 = arith.constant 0 : index
      %56 = vector.load %arg2[%c0_39, %c0_40] : memref<8x128xf32, #tpu.memory_space<vmem>>, vector<8x128xf32>
      %c0_41 = arith.constant 0 : index
      %c0_42 = arith.constant 0 : index
      %57 = vector.load %arg6[%c0_41, %c0_42] : memref<8x128xf32, #tpu.memory_space<vmem>>, vector<8x128xf32>
      tpu.vector_store %arg6[%c0_41, %c0_42], %56 {strides = array<i32>} : memref<8x128xf32, #tpu.memory_space<vmem>>, vector<8x128xf32>,
    } else {
    }
    %c0 = arith.constant 0 : index
    %c0_1 = arith.constant 0 : index
    %3 = vector.load %arg6[%c0, %c0_1] : memref<8x128xf32, #tpu.memory_space<vmem>>, vector<8x128xf32>
    %c0_2 = arith.constant 0 : index
    %c0_3 = arith.constant 0 : index
    %c0_4 = arith.constant 0 : index
    %c0_5 = arith.constant 0 : index
    %4 = vector.load %arg1[%c0_2, %c0_3, %c0_4, %c0_5] : memref<3x1x8x128xf32, #tpu.memory_space<vmem>>, vector<1x1x8x128xf32>
    %5 = vector.shape_cast %4 : vector<1x1x8x128xf32> to vector<8x128xf32>
    %c1 = arith.constant 1 : index
    %c0_6 = arith.constant 0 : index
    %c0_7 = arith.constant 0 : index
    %c0_8 = arith.constant 0 : index
    %6 = vector.load %arg1[%c1, %c0_6, %c0_7, %c0_8] : memref<3x1x8x128xf32, #tpu.memory_space<vmem>>, vector<1x1x8x128xf32>
    %7 = vector.shape_cast %6 : vector<1x1x8x128xf32> to vector<8x128xf32>
    %c2 = arith.constant 2 : index
    %c0_9 = arith.constant 0 : index
    %c0_10 = arith.constant 0 : index
    %c0_11 = arith.constant 0 : index
    %8 = vector.load %arg1[%c2, %c0_9, %c0_10, %c0_11] : memref<3x1x8x128xf32, #tpu.memory_space<vmem>>, vector<1x1x8x128xf32>
    %9 = vector.shape_cast %8 : vector<1x1x8x128xf32> to vector<8x128xf32>
    %c0_12 = arith.constant 0 : index
    %c0_13 = arith.constant 0 : index
    %c0_14 = arith.constant 0 : index
    %10 = vector.load %arg3[%c0_12, %c0_13, %c0_14] : memref<3x128x128xf32, #tpu.memory_space<vmem>>, vector<1x128x128xf32>
    %11 = vector.shape_cast %10 : vector<1x128x128xf32> to vector<128x128xf32>
    %cst = arith.constant dense<0.000000e+00> : vector<8x128xf32>
    %12 = tpu.matmul %3, %11, %cst {dimension_numbers = #tpu.dot_dimension_numbers<[1], [0], [0], [1], [0, 0, 1, 1], [], []>} : vector<8x128xf32>, vector<128x128xf32>, vector<8x128xf32> -> vector<8x128xf32>
    %c0_15 = arith.constant 0 : index
    %c0_16 = arith.constant 0 : index
    %c0_17 = arith.constant 0 : index
    %13 = vector.load %arg4[%c0_15, %c0_16, %c0_17] : memref<3x1x128xf32, #tpu.memory_space<vmem>>, vector<1x1x128xf32>
    %14 = vector.shape_cast %13 : vector<1x1x128xf32> to vector<1x128xf32>
    %15 = vector.broadcast %14 : vector<1x128xf32> to vector<8x128xf32>
    %16 = arith.addf %12, %15 : vector<8x128xf32>
    %c1_18 = arith.constant 1 : index
    %c0_19 = arith.constant 0 : index
    %c0_20 = arith.constant 0 : index
    %17 = vector.load %arg3[%c1_18, %c0_19, %c0_20] : memref<3x128x128xf32, #tpu.memory_space<vmem>>, vector<1x128x128xf32>
    %18 = vector.shape_cast %17 : vector<1x128x128xf32> to vector<128x128xf32>
    %cst_21 = arith.constant dense<0.000000e+00> : vector<8x128xf32>
    %19 = tpu.matmul %3, %18, %cst_21 {dimension_numbers = #tpu.dot_dimension_numbers<[1], [0], [0], [1], [0, 0, 1, 1], [], []>} : vector<8x128xf32>, vector<128x128xf32>, vector<8x128xf32> -> vector<8x128xf32>
    %c1_22 = arith.constant 1 : index
    %c0_23 = arith.constant 0 : index
    %c0_24 = arith.constant 0 : index
    %20 = vector.load %arg4[%c1_22, %c0_23, %c0_24] : memref<3x1x128xf32, #tpu.memory_space<vmem>>, vector<1x1x128xf32>
    %21 = vector.shape_cast %20 : vector<1x1x128xf32> to vector<1x128xf32>
    %22 = vector.broadcast %21 : vector<1x128xf32> to vector<8x128xf32>
    %23 = arith.addf %19, %22 : vector<8x128xf32>
    %c2_25 = arith.constant 2 : index
    %c0_26 = arith.constant 0 : index
    %c0_27 = arith.constant 0 : index
    %24 = vector.load %arg3[%c2_25, %c0_26, %c0_27] : memref<3x128x128xf32, #tpu.memory_space<vmem>>, vector<1x128x128xf32>
    %25 = vector.shape_cast %24 : vector<1x128x128xf32> to vector<128x128xf32>
    %cst_28 = arith.constant dense<0.000000e+00> : vector<8x128xf32>
    %26 = tpu.matmul %3, %25, %cst_28 {dimension_numbers = #tpu.dot_dimension_numbers<[1], [0], [0], [1], [0, 0, 1, 1], [], []>} : vector<8x128xf32>, vector<128x128xf32>, vector<8x128xf32> -> vector<8x128xf32>
    %c2_29 = arith.constant 2 : index
    %c0_30 = arith.constant 0 : index
    %c0_31 = arith.constant 0 : index
    %27 = vector.load %arg4[%c2_29, %c0_30, %c0_31] : memref<3x1x128xf32, #tpu.memory_space<vmem>>, vector<1x1x128xf32>
    %28 = vector.shape_cast %27 : vector<1x1x128xf32> to vector<1x128xf32>
    %29 = vector.broadcast %28 : vector<1x128xf32> to vector<8x128xf32>
    %30 = arith.addf %26, %29 : vector<8x128xf32>
    %31 = arith.addf %5, %16 : vector<8x128xf32>
    %32 = arith.negf %31 : vector<8x128xf32>
    %33 = math.exp %32 : vector<8x128xf32>
    %cst_32 = arith.constant 1.000000e+00 : f32
    %34 = vector.broadcast %cst_32 : f32 to vector<8x128xf32>
    %35 = arith.addf %34, %33 : vector<8x128xf32>
    %36 = arith.divf %34, %35 : vector<8x128xf32>
    %37 = arith.addf %7, %23 : vector<8x128xf32>
    %38 = arith.negf %37 : vector<8x128xf32>
    %39 = math.exp %38 : vector<8x128xf32>
    %cst_33 = arith.constant 1.000000e+00 : f32
    %40 = vector.broadcast %cst_33 : f32 to vector<8x128xf32>
    %41 = arith.addf %40, %39 : vector<8x128xf32>
    %42 = arith.divf %40, %41 : vector<8x128xf32>
    %43 = arith.mulf %36, %30 : vector<8x128xf32>
    %44 = arith.addf %9, %43 : vector<8x128xf32>
    %45 = math.tanh %44 : vector<8x128xf32>
    %cst_34 = arith.constant 1.000000e+00 : f32
    %46 = vector.broadcast %cst_34 : f32 to vector<8x128xf32>
    %47 = arith.subf %46, %42 : vector<8x128xf32>
    %48 = arith.mulf %47, %45 : vector<8x128xf32>
    %49 = arith.mulf %42, %3 : vector<8x128xf32>
    %50 = arith.addf %48, %49 : vector<8x128xf32>
    %c0_35 = arith.constant 0 : index
    %c0_36 = arith.constant 0 : index
    %51 = vector.load %arg6[%c0_35, %c0_36] : memref<8x128xf32, #tpu.memory_space<vmem>>, vector<8x128xf32>
    tpu.vector_store %arg6[%c0_35, %c0_36], %50 {strides = array<i32>} : memref<8x128xf32, #tpu.memory_space<vmem>>, vector<8x128xf32>,
    %52 = arith.index_cast %arg0 : i32 to index
    %c0_37 = arith.constant 0 : index
    %c0_38 = arith.constant 0 : index
    %53 = vector.load %arg5[%52, %c0_37, %c0_38] : memref<6x8x128xf32, #tpu.memory_space<vmem>>, vector<1x8x128xf32>
    %54 = vector.shape_cast %53 : vector<1x8x128xf32> to vector<8x128xf32>
    %55 = vector.shape_cast %50 : vector<8x128xf32> to vector<1x8x128xf32>
    tpu.vector_store %arg5[%52, %c0_37, %c0_38], %55 {strides = array<i32>} : memref<6x8x128xf32, #tpu.memory_space<vmem>>, vector<1x8x128xf32>,
    return
  }
  func.func @transform_0(%arg0: i32) -> (i32, i32, i32, i32) {
    %c0_i32 = arith.constant 0 : i32
    %c0_i32_0 = arith.constant 0 : i32
    %c0_i32_1 = arith.constant 0 : i32
    %c0_i32_2 = arith.constant 0 : i32
    return %c0_i32, %arg0, %c0_i32_0, %c0_i32_1 : i32, i32, i32, i32
  }
  func.func @transform_1(%arg0: i32) -> (i32, i32) {
    %c0_i32 = arith.constant 0 : i32
    %c0_i32_0 = arith.constant 0 : i32
    %c0_i32_1 = arith.constant 0 : i32
    return %c0_i32, %c0_i32_0 : i32, i32
  }
  func.func @transform_2(%arg0: i32) -> (i32, i32, i32) {
    %c0_i32 = arith.constant 0 : i32
    %c0_i32_0 = arith.constant 0 : i32
    %c0_i32_1 = arith.constant 0 : i32
    %c0_i32_2 = arith.constant 0 : i32
    return %c0_i32, %c0_i32_0, %c0_i32_1 : i32, i32, i32
  }
  func.func @transform_3(%arg0: i32) -> (i32, i32, i32) {
    %c0_i32 = arith.constant 0 : i32
    %c0_i32_0 = arith.constant 0 : i32
    %c0_i32_1 = arith.constant 0 : i32
    %c0_i32_2 = arith.constant 0 : i32
    return %c0_i32, %c0_i32_0, %c0_i32_1 : i32, i32, i32
  }
  func.func @transform_4(%arg0: i32) -> (i32, i32, i32) {
    %c0_i32 = arith.constant 0 : i32
    %c0_i32_0 = arith.constant 0 : i32
    %c0_i32_1 = arith.constant 0 : i32
    %c0_i32_2 = arith.constant 0 : i32
    return %c0_i32, %c0_i32_0, %c0_i32_1 : i32, i32, i32
  }
}

module attributes {stable_mosaic.version = 11 : i64} {
  func.func @input_proj_kernel(%arg0: i32, %arg1: memref<48x128xf32, #tpu.memory_space<vmem>>, %arg2: memref<1x128x128xf32, #tpu.memory_space<vmem>>, %arg3: memref<1x1x128xf32, #tpu.memory_space<vmem>>, %arg4: memref<1x48x128xf32, #tpu.memory_space<vmem>>) attributes {dimension_semantics = [#tpu.dimension_semantics<parallel>], iteration_bounds = array<i64: 3>, scalar_prefetch = 0 : i64, scratch_operands = 0 : i64, tpu.core_type = #tpu.core_type<tc>, window_params = [{pipeline_mode = #tpu.pipeline_mode<synchronous>, transform_indices = @transform_0, window_bounds = array<i64: 48, 128>}, {transform_indices = @transform_1, window_bounds = array<i64: 1, 128, 128>}, {transform_indices = @transform_2, window_bounds = array<i64: 1, 1, 128>}, {transform_indices = @transform_3, window_bounds = array<i64: 1, 48, 128>}]} {
    %c0 = arith.constant 0 : index
    %c0_0 = arith.constant 0 : index
    %0 = vector.load %arg1[%c0, %c0_0] : memref<48x128xf32, #tpu.memory_space<vmem>>, vector<48x128xf32>
    %c0_1 = arith.constant 0 : index
    %c0_2 = arith.constant 0 : index
    %c0_3 = arith.constant 0 : index
    %1 = vector.load %arg2[%c0_1, %c0_2, %c0_3] : memref<1x128x128xf32, #tpu.memory_space<vmem>>, vector<1x128x128xf32>
    %2 = vector.shape_cast %1 : vector<1x128x128xf32> to vector<128x128xf32>
    %cst = arith.constant dense<0.000000e+00> : vector<48x128xf32>
    %3 = tpu.matmul %0, %2, %cst {dimension_numbers = #tpu.dot_dimension_numbers<[1], [0], [0], [1], [0, 0, 1, 1], [], []>} : vector<48x128xf32>, vector<128x128xf32>, vector<48x128xf32> -> vector<48x128xf32>
    %c0_4 = arith.constant 0 : index
    %c0_5 = arith.constant 0 : index
    %c0_6 = arith.constant 0 : index
    %4 = vector.load %arg3[%c0_4, %c0_5, %c0_6] : memref<1x1x128xf32, #tpu.memory_space<vmem>>, vector<1x1x128xf32>
    %5 = vector.shape_cast %4 : vector<1x1x128xf32> to vector<1x128xf32>
    %6 = vector.broadcast %5 : vector<1x128xf32> to vector<48x128xf32>
    %7 = arith.addf %3, %6 : vector<48x128xf32>
    %c0_7 = arith.constant 0 : index
    %c0_8 = arith.constant 0 : index
    %c0_9 = arith.constant 0 : index
    %8 = vector.load %arg4[%c0_7, %c0_8, %c0_9] : memref<1x48x128xf32, #tpu.memory_space<vmem>>, vector<1x48x128xf32>
    %9 = vector.shape_cast %8 : vector<1x48x128xf32> to vector<48x128xf32>
    %10 = vector.shape_cast %7 : vector<48x128xf32> to vector<1x48x128xf32>
    tpu.vector_store %arg4[%c0_7, %c0_8, %c0_9], %10 {strides = array<i32>} : memref<1x48x128xf32, #tpu.memory_space<vmem>>, vector<1x48x128xf32>,
    return
  }
  func.func @transform_0(%arg0: i32) -> (i32, i32) {
    %c0_i32 = arith.constant 0 : i32
    %c0_i32_0 = arith.constant 0 : i32
    %c0_i32_1 = arith.constant 0 : i32
    return %c0_i32, %c0_i32_0 : i32, i32
  }
  func.func @transform_1(%arg0: i32) -> (i32, i32, i32) {
    %c0_i32 = arith.constant 0 : i32
    %c0_i32_0 = arith.constant 0 : i32
    %c0_i32_1 = arith.constant 0 : i32
    return %arg0, %c0_i32, %c0_i32_0 : i32, i32, i32
  }
  func.func @transform_2(%arg0: i32) -> (i32, i32, i32) {
    %c0_i32 = arith.constant 0 : i32
    %c0_i32_0 = arith.constant 0 : i32
    %c0_i32_1 = arith.constant 0 : i32
    return %arg0, %c0_i32, %c0_i32_0 : i32, i32, i32
  }
  func.func @transform_3(%arg0: i32) -> (i32, i32, i32) {
    %c0_i32 = arith.constant 0 : i32
    %c0_i32_0 = arith.constant 0 : i32
    %c0_i32_1 = arith.constant 0 : i32
    return %arg0, %c0_i32, %c0_i32_0 : i32, i32, i32
  }
}

module attributes {stable_mosaic.version = 11 : i64} {
  func.func @attn_kernel(%arg0: i32, %arg1: memref<8xi32, #tpu.memory_space<smem>>, %arg2: memref<6x8x128xf32, #tpu.memory_space<vmem>>, %arg3: memref<8x8x128xf32, #tpu.memory_space<vmem>>, %arg4: memref<128x128xf32, #tpu.memory_space<vmem>>, %arg5: memref<128x128xf32, #tpu.memory_space<vmem>>, %arg6: memref<128x128xf32, #tpu.memory_space<vmem>>, %arg7: memref<6x8x128xf32, #tpu.memory_space<vmem>>, %arg8: memref<6x8x8xf32, #tpu.memory_space<vmem>>) attributes {dimension_semantics = [#tpu.dimension_semantics<arbitrary>], iteration_bounds = array<i64: 1>, scalar_prefetch = 1 : i64, scratch_operands = 0 : i64, tpu.core_type = #tpu.core_type<tc>, window_params = [{pipeline_mode = #tpu.pipeline_mode<synchronous>, transform_indices = @transform_0, window_bounds = array<i64: 6, 8, 128>}, {pipeline_mode = #tpu.pipeline_mode<synchronous>, transform_indices = @transform_1, window_bounds = array<i64: 8, 8, 128>}, {pipeline_mode = #tpu.pipeline_mode<synchronous>, transform_indices = @transform_2, window_bounds = array<i64: 128, 128>}, {pipeline_mode = #tpu.pipeline_mode<synchronous>, transform_indices = @transform_3, window_bounds = array<i64: 128, 128>}, {pipeline_mode = #tpu.pipeline_mode<synchronous>, transform_indices = @transform_4, window_bounds = array<i64: 128, 128>}, {pipeline_mode = #tpu.pipeline_mode<synchronous>, transform_indices = @transform_5, window_bounds = array<i64: 6, 8, 128>}, {pipeline_mode = #tpu.pipeline_mode<synchronous>, transform_indices = @transform_6, window_bounds = array<i64: 6, 8, 8>}]} {
    %c0 = arith.constant 0 : index
    %c0_0 = arith.constant 0 : index
    %c0_1 = arith.constant 0 : index
    %0 = vector.load %arg2[%c0, %c0_0, %c0_1] : memref<6x8x128xf32, #tpu.memory_space<vmem>>, vector<6x8x128xf32>
    %c0_2 = arith.constant 0 : index
    %c0_3 = arith.constant 0 : index
    %c0_4 = arith.constant 0 : index
    %1 = vector.load %arg3[%c0_2, %c0_3, %c0_4] : memref<8x8x128xf32, #tpu.memory_space<vmem>>, vector<8x8x128xf32>
    %c0_5 = arith.constant 0 : index
    %c0_6 = arith.constant 0 : index
    %2 = vector.load %arg4[%c0_5, %c0_6] : memref<128x128xf32, #tpu.memory_space<vmem>>, vector<128x128xf32>
    %c0_7 = arith.constant 0 : index
    %c0_8 = arith.constant 0 : index
    %3 = vector.load %arg5[%c0_7, %c0_8] : memref<128x128xf32, #tpu.memory_space<vmem>>, vector<128x128xf32>
    %c0_9 = arith.constant 0 : index
    %c0_10 = arith.constant 0 : index
    %4 = vector.load %arg6[%c0_9, %c0_10] : memref<128x128xf32, #tpu.memory_space<vmem>>, vector<128x128xf32>
    %5 = vector.extract_strided_slice %0 {offsets = [0, 0, 0], sizes = [6, 1, 128], strides = [1, 1, 1]} : vector<6x8x128xf32> to vector<6x1x128xf32>
    %6 = vector.shape_cast %5 : vector<6x1x128xf32> to vector<6x128xf32>
    %7 = vector.extract_strided_slice %1 {offsets = [0, 0, 0], sizes = [8, 1, 128], strides = [1, 1, 1]} : vector<8x8x128xf32> to vector<8x1x128xf32>
    %8 = vector.shape_cast %7 : vector<8x1x128xf32> to vector<8x128xf32>
    %cst = arith.constant dense<0.000000e+00> : vector<6x128xf32>
    %9 = tpu.matmul %6, %2, %cst {dimension_numbers = #tpu.dot_dimension_numbers<[1], [0], [0], [1], [0, 0, 1, 1], [], []>} : vector<6x128xf32>, vector<128x128xf32>, vector<6x128xf32> -> vector<6x128xf32>
    %cst_11 = arith.constant dense<0.000000e+00> : vector<6x8xf32>
    %10 = tpu.matmul %9, %8, %cst_11 {dimension_numbers = #tpu.dot_dimension_numbers<[1], [1], [0], [0], [0, 0, 1, 0], [], []>} : vector<6x128xf32>, vector<8x128xf32>, vector<6x8xf32> -> vector<6x8xf32>
    %11 = tpu.iota {dimensions = array<i32: 1>} : vector<6x8xi32>
    %c0_12 = arith.constant 0 : index
    %12 = memref.load %arg1[%c0_12] : memref<8xi32, #tpu.memory_space<smem>>
    %13 = vector.broadcast %12 : i32 to vector<6x8xi32>
    %14 = arith.cmpi slt, %11, %13 : vector<6x8xi32>
    %cst_13 = arith.constant -1.000000e+30 : f32
    %15 = vector.broadcast %cst_13 : f32 to vector<6x8xf32>
    %16 = arith.select %14, %10, %15 : vector<6x8xi1>, vector<6x8xf32>
    %cst_14 = arith.constant dense<0xFF800000> : vector<6xf32>
    %17 = vector.multi_reduction <maximumf>, %16, %cst_14 [1] : vector<6x8xf32> to vector<6xf32>
    %18 = vector.shape_cast %17 : vector<6xf32> to vector<6x1xf32>
    %19 = vector.broadcast %18 : vector<6x1xf32> to vector<6x8xf32>
    %20 = arith.subf %16, %19 : vector<6x8xf32>
    %21 = math.exp %20 : vector<6x8xf32>
    %cst_15 = arith.constant dense<0.000000e+00> : vector<6xf32>
    %22 = vector.multi_reduction <add>, %21, %cst_15 [1] : vector<6x8xf32> to vector<6xf32>
    %23 = vector.shape_cast %22 : vector<6xf32> to vector<6x1xf32>
    %24 = tpu.reciprocal %23 {approx = true} : vector<6x1xf32> -> vector<6x1xf32>
    %25 = vector.broadcast %24 : vector<6x1xf32> to vector<6x8xf32>
    %26 = arith.mulf %21, %25 : vector<6x8xf32>
    %cst_16 = arith.constant dense<0.000000e+00> : vector<6x128xf32>
    %27 = tpu.matmul %26, %8, %cst_16 {dimension_numbers = #tpu.dot_dimension_numbers<[1], [0], [0], [1], [0, 0, 1, 1], [], []>} : vector<6x8xf32>, vector<8x128xf32>, vector<6x128xf32> -> vector<6x128xf32>
    %cst_17 = arith.constant dense<0.000000e+00> : vector<6x128xf32>
    %28 = tpu.matmul %27, %3, %cst_17 {dimension_numbers = #tpu.dot_dimension_numbers<[1], [0], [0], [1], [0, 0, 1, 1], [], []>} : vector<6x128xf32>, vector<128x128xf32>, vector<6x128xf32> -> vector<6x128xf32>
    %cst_18 = arith.constant dense<0.000000e+00> : vector<6x128xf32>
    %29 = tpu.matmul %6, %4, %cst_18 {dimension_numbers = #tpu.dot_dimension_numbers<[1], [0], [0], [1], [0, 0, 1, 1], [], []>} : vector<6x128xf32>, vector<128x128xf32>, vector<6x128xf32> -> vector<6x128xf32>
    %30 = arith.addf %28, %29 : vector<6x128xf32>
    %31 = math.tanh %30 : vector<6x128xf32>
    %32 = vector.extract_strided_slice %0 {offsets = [0, 1, 0], sizes = [6, 1, 128], strides = [1, 1, 1]} : vector<6x8x128xf32> to vector<6x1x128xf32>
    %33 = vector.shape_cast %32 : vector<6x1x128xf32> to vector<6x128xf32>
    %34 = vector.extract_strided_slice %1 {offsets = [0, 1, 0], sizes = [8, 1, 128], strides = [1, 1, 1]} : vector<8x8x128xf32> to vector<8x1x128xf32>
    %35 = vector.shape_cast %34 : vector<8x1x128xf32> to vector<8x128xf32>
    %cst_19 = arith.constant dense<0.000000e+00> : vector<6x128xf32>
    %36 = tpu.matmul %33, %2, %cst_19 {dimension_numbers = #tpu.dot_dimension_numbers<[1], [0], [0], [1], [0, 0, 1, 1], [], []>} : vector<6x128xf32>, vector<128x128xf32>, vector<6x128xf32> -> vector<6x128xf32>
    %cst_20 = arith.constant dense<0.000000e+00> : vector<6x8xf32>
    %37 = tpu.matmul %36, %35, %cst_20 {dimension_numbers = #tpu.dot_dimension_numbers<[1], [1], [0], [0], [0, 0, 1, 0], [], []>} : vector<6x128xf32>, vector<8x128xf32>, vector<6x8xf32> -> vector<6x8xf32>
    %38 = tpu.iota {dimensions = array<i32: 1>} : vector<6x8xi32>
    %c1 = arith.constant 1 : index
    %39 = memref.load %arg1[%c1] : memref<8xi32, #tpu.memory_space<smem>>
    %40 = vector.broadcast %39 : i32 to vector<6x8xi32>
    %41 = arith.cmpi slt, %38, %40 : vector<6x8xi32>
    %cst_21 = arith.constant -1.000000e+30 : f32
    %42 = vector.broadcast %cst_21 : f32 to vector<6x8xf32>
    %43 = arith.select %41, %37, %42 : vector<6x8xi1>, vector<6x8xf32>
    %cst_22 = arith.constant dense<0xFF800000> : vector<6xf32>
    %44 = vector.multi_reduction <maximumf>, %43, %cst_22 [1] : vector<6x8xf32> to vector<6xf32>
    %45 = vector.shape_cast %44 : vector<6xf32> to vector<6x1xf32>
    %46 = vector.broadcast %45 : vector<6x1xf32> to vector<6x8xf32>
    %47 = arith.subf %43, %46 : vector<6x8xf32>
    %48 = math.exp %47 : vector<6x8xf32>
    %cst_23 = arith.constant dense<0.000000e+00> : vector<6xf32>
    %49 = vector.multi_reduction <add>, %48, %cst_23 [1] : vector<6x8xf32> to vector<6xf32>
    %50 = vector.shape_cast %49 : vector<6xf32> to vector<6x1xf32>
    %51 = tpu.reciprocal %50 {approx = true} : vector<6x1xf32> -> vector<6x1xf32>
    %52 = vector.broadcast %51 : vector<6x1xf32> to vector<6x8xf32>
    %53 = arith.mulf %48, %52 : vector<6x8xf32>
    %cst_24 = arith.constant dense<0.000000e+00> : vector<6x128xf32>
    %54 = tpu.matmul %53, %35, %cst_24 {dimension_numbers = #tpu.dot_dimension_numbers<[1], [0], [0], [1], [0, 0, 1, 1], [], []>} : vector<6x8xf32>, vector<8x128xf32>, vector<6x128xf32> -> vector<6x128xf32>
    %cst_25 = arith.constant dense<0.000000e+00> : vector<6x128xf32>
    %55 = tpu.matmul %54, %3, %cst_25 {dimension_numbers = #tpu.dot_dimension_numbers<[1], [0], [0], [1], [0, 0, 1, 1], [], []>} : vector<6x128xf32>, vector<128x128xf32>, vector<6x128xf32> -> vector<6x128xf32>
    %cst_26 = arith.constant dense<0.000000e+00> : vector<6x128xf32>
    %56 = tpu.matmul %33, %4, %cst_26 {dimension_numbers = #tpu.dot_dimension_numbers<[1], [0], [0], [1], [0, 0, 1, 1], [], []>} : vector<6x128xf32>, vector<128x128xf32>, vector<6x128xf32> -> vector<6x128xf32>
    %57 = arith.addf %55, %56 : vector<6x128xf32>
    %58 = math.tanh %57 : vector<6x128xf32>
    %59 = vector.extract_strided_slice %0 {offsets = [0, 2, 0], sizes = [6, 1, 128], strides = [1, 1, 1]} : vector<6x8x128xf32> to vector<6x1x128xf32>
    %60 = vector.shape_cast %59 : vector<6x1x128xf32> to vector<6x128xf32>
    %61 = vector.extract_strided_slice %1 {offsets = [0, 2, 0], sizes = [8, 1, 128], strides = [1, 1, 1]} : vector<8x8x128xf32> to vector<8x1x128xf32>
    %62 = vector.shape_cast %61 : vector<8x1x128xf32> to vector<8x128xf32>
    %cst_27 = arith.constant dense<0.000000e+00> : vector<6x128xf32>
    %63 = tpu.matmul %60, %2, %cst_27 {dimension_numbers = #tpu.dot_dimension_numbers<[1], [0], [0], [1], [0, 0, 1, 1], [], []>} : vector<6x128xf32>, vector<128x128xf32>, vector<6x128xf32> -> vector<6x128xf32>
    %cst_28 = arith.constant dense<0.000000e+00> : vector<6x8xf32>
    %64 = tpu.matmul %63, %62, %cst_28 {dimension_numbers = #tpu.dot_dimension_numbers<[1], [1], [0], [0], [0, 0, 1, 0], [], []>} : vector<6x128xf32>, vector<8x128xf32>, vector<6x8xf32> -> vector<6x8xf32>
    %65 = tpu.iota {dimensions = array<i32: 1>} : vector<6x8xi32>
    %c2 = arith.constant 2 : index
    %66 = memref.load %arg1[%c2] : memref<8xi32, #tpu.memory_space<smem>>
    %67 = vector.broadcast %66 : i32 to vector<6x8xi32>
    %68 = arith.cmpi slt, %65, %67 : vector<6x8xi32>
    %cst_29 = arith.constant -1.000000e+30 : f32
    %69 = vector.broadcast %cst_29 : f32 to vector<6x8xf32>
    %70 = arith.select %68, %64, %69 : vector<6x8xi1>, vector<6x8xf32>
    %cst_30 = arith.constant dense<0xFF800000> : vector<6xf32>
    %71 = vector.multi_reduction <maximumf>, %70, %cst_30 [1] : vector<6x8xf32> to vector<6xf32>
    %72 = vector.shape_cast %71 : vector<6xf32> to vector<6x1xf32>
    %73 = vector.broadcast %72 : vector<6x1xf32> to vector<6x8xf32>
    %74 = arith.subf %70, %73 : vector<6x8xf32>
    %75 = math.exp %74 : vector<6x8xf32>
    %cst_31 = arith.constant dense<0.000000e+00> : vector<6xf32>
    %76 = vector.multi_reduction <add>, %75, %cst_31 [1] : vector<6x8xf32> to vector<6xf32>
    %77 = vector.shape_cast %76 : vector<6xf32> to vector<6x1xf32>
    %78 = tpu.reciprocal %77 {approx = true} : vector<6x1xf32> -> vector<6x1xf32>
    %79 = vector.broadcast %78 : vector<6x1xf32> to vector<6x8xf32>
    %80 = arith.mulf %75, %79 : vector<6x8xf32>
    %cst_32 = arith.constant dense<0.000000e+00> : vector<6x128xf32>
    %81 = tpu.matmul %80, %62, %cst_32 {dimension_numbers = #tpu.dot_dimension_numbers<[1], [0], [0], [1], [0, 0, 1, 1], [], []>} : vector<6x8xf32>, vector<8x128xf32>, vector<6x128xf32> -> vector<6x128xf32>
    %cst_33 = arith.constant dense<0.000000e+00> : vector<6x128xf32>
    %82 = tpu.matmul %81, %3, %cst_33 {dimension_numbers = #tpu.dot_dimension_numbers<[1], [0], [0], [1], [0, 0, 1, 1], [], []>} : vector<6x128xf32>, vector<128x128xf32>, vector<6x128xf32> -> vector<6x128xf32>
    %cst_34 = arith.constant dense<0.000000e+00> : vector<6x128xf32>
    %83 = tpu.matmul %60, %4, %cst_34 {dimension_numbers = #tpu.dot_dimension_numbers<[1], [0], [0], [1], [0, 0, 1, 1], [], []>} : vector<6x128xf32>, vector<128x128xf32>, vector<6x128xf32> -> vector<6x128xf32>
    %84 = arith.addf %82, %83 : vector<6x128xf32>
    %85 = math.tanh %84 : vector<6x128xf32>
    %86 = vector.extract_strided_slice %0 {offsets = [0, 3, 0], sizes = [6, 1, 128], strides = [1, 1, 1]} : vector<6x8x128xf32> to vector<6x1x128xf32>
    %87 = vector.shape_cast %86 : vector<6x1x128xf32> to vector<6x128xf32>
    %88 = vector.extract_strided_slice %1 {offsets = [0, 3, 0], sizes = [8, 1, 128], strides = [1, 1, 1]} : vector<8x8x128xf32> to vector<8x1x128xf32>
    %89 = vector.shape_cast %88 : vector<8x1x128xf32> to vector<8x128xf32>
    %cst_35 = arith.constant dense<0.000000e+00> : vector<6x128xf32>
    %90 = tpu.matmul %87, %2, %cst_35 {dimension_numbers = #tpu.dot_dimension_numbers<[1], [0], [0], [1], [0, 0, 1, 1], [], []>} : vector<6x128xf32>, vector<128x128xf32>, vector<6x128xf32> -> vector<6x128xf32>
    %cst_36 = arith.constant dense<0.000000e+00> : vector<6x8xf32>
    %91 = tpu.matmul %90, %89, %cst_36 {dimension_numbers = #tpu.dot_dimension_numbers<[1], [1], [0], [0], [0, 0, 1, 0], [], []>} : vector<6x128xf32>, vector<8x128xf32>, vector<6x8xf32> -> vector<6x8xf32>
    %92 = tpu.iota {dimensions = array<i32: 1>} : vector<6x8xi32>
    %c3 = arith.constant 3 : index
    %93 = memref.load %arg1[%c3] : memref<8xi32, #tpu.memory_space<smem>>
    %94 = vector.broadcast %93 : i32 to vector<6x8xi32>
    %95 = arith.cmpi slt, %92, %94 : vector<6x8xi32>
    %cst_37 = arith.constant -1.000000e+30 : f32
    %96 = vector.broadcast %cst_37 : f32 to vector<6x8xf32>
    %97 = arith.select %95, %91, %96 : vector<6x8xi1>, vector<6x8xf32>
    %cst_38 = arith.constant dense<0xFF800000> : vector<6xf32>
    %98 = vector.multi_reduction <maximumf>, %97, %cst_38 [1] : vector<6x8xf32> to vector<6xf32>
    %99 = vector.shape_cast %98 : vector<6xf32> to vector<6x1xf32>
    %100 = vector.broadcast %99 : vector<6x1xf32> to vector<6x8xf32>
    %101 = arith.subf %97, %100 : vector<6x8xf32>
    %102 = math.exp %101 : vector<6x8xf32>
    %cst_39 = arith.constant dense<0.000000e+00> : vector<6xf32>
    %103 = vector.multi_reduction <add>, %102, %cst_39 [1] : vector<6x8xf32> to vector<6xf32>
    %104 = vector.shape_cast %103 : vector<6xf32> to vector<6x1xf32>
    %105 = tpu.reciprocal %104 {approx = true} : vector<6x1xf32> -> vector<6x1xf32>
    %106 = vector.broadcast %105 : vector<6x1xf32> to vector<6x8xf32>
    %107 = arith.mulf %102, %106 : vector<6x8xf32>
    %cst_40 = arith.constant dense<0.000000e+00> : vector<6x128xf32>
    %108 = tpu.matmul %107, %89, %cst_40 {dimension_numbers = #tpu.dot_dimension_numbers<[1], [0], [0], [1], [0, 0, 1, 1], [], []>} : vector<6x8xf32>, vector<8x128xf32>, vector<6x128xf32> -> vector<6x128xf32>
    %cst_41 = arith.constant dense<0.000000e+00> : vector<6x128xf32>
    %109 = tpu.matmul %108, %3, %cst_41 {dimension_numbers = #tpu.dot_dimension_numbers<[1], [0], [0], [1], [0, 0, 1, 1], [], []>} : vector<6x128xf32>, vector<128x128xf32>, vector<6x128xf32> -> vector<6x128xf32>
    %cst_42 = arith.constant dense<0.000000e+00> : vector<6x128xf32>
    %110 = tpu.matmul %87, %4, %cst_42 {dimension_numbers = #tpu.dot_dimension_numbers<[1], [0], [0], [1], [0, 0, 1, 1], [], []>} : vector<6x128xf32>, vector<128x128xf32>, vector<6x128xf32> -> vector<6x128xf32>
    %111 = arith.addf %109, %110 : vector<6x128xf32>
    %112 = math.tanh %111 : vector<6x128xf32>
    %113 = vector.extract_strided_slice %0 {offsets = [0, 4, 0], sizes = [6, 1, 128], strides = [1, 1, 1]} : vector<6x8x128xf32> to vector<6x1x128xf32>
    %114 = vector.shape_cast %113 : vector<6x1x128xf32> to vector<6x128xf32>
    %115 = vector.extract_strided_slice %1 {offsets = [0, 4, 0], sizes = [8, 1, 128], strides = [1, 1, 1]} : vector<8x8x128xf32> to vector<8x1x128xf32>
    %116 = vector.shape_cast %115 : vector<8x1x128xf32> to vector<8x128xf32>
    %cst_43 = arith.constant dense<0.000000e+00> : vector<6x128xf32>
    %117 = tpu.matmul %114, %2, %cst_43 {dimension_numbers = #tpu.dot_dimension_numbers<[1], [0], [0], [1], [0, 0, 1, 1], [], []>} : vector<6x128xf32>, vector<128x128xf32>, vector<6x128xf32> -> vector<6x128xf32>
    %cst_44 = arith.constant dense<0.000000e+00> : vector<6x8xf32>
    %118 = tpu.matmul %117, %116, %cst_44 {dimension_numbers = #tpu.dot_dimension_numbers<[1], [1], [0], [0], [0, 0, 1, 0], [], []>} : vector<6x128xf32>, vector<8x128xf32>, vector<6x8xf32> -> vector<6x8xf32>
    %119 = tpu.iota {dimensions = array<i32: 1>} : vector<6x8xi32>
    %c4 = arith.constant 4 : index
    %120 = memref.load %arg1[%c4] : memref<8xi32, #tpu.memory_space<smem>>
    %121 = vector.broadcast %120 : i32 to vector<6x8xi32>
    %122 = arith.cmpi slt, %119, %121 : vector<6x8xi32>
    %cst_45 = arith.constant -1.000000e+30 : f32
    %123 = vector.broadcast %cst_45 : f32 to vector<6x8xf32>
    %124 = arith.select %122, %118, %123 : vector<6x8xi1>, vector<6x8xf32>
    %cst_46 = arith.constant dense<0xFF800000> : vector<6xf32>
    %125 = vector.multi_reduction <maximumf>, %124, %cst_46 [1] : vector<6x8xf32> to vector<6xf32>
    %126 = vector.shape_cast %125 : vector<6xf32> to vector<6x1xf32>
    %127 = vector.broadcast %126 : vector<6x1xf32> to vector<6x8xf32>
    %128 = arith.subf %124, %127 : vector<6x8xf32>
    %129 = math.exp %128 : vector<6x8xf32>
    %cst_47 = arith.constant dense<0.000000e+00> : vector<6xf32>
    %130 = vector.multi_reduction <add>, %129, %cst_47 [1] : vector<6x8xf32> to vector<6xf32>
    %131 = vector.shape_cast %130 : vector<6xf32> to vector<6x1xf32>
    %132 = tpu.reciprocal %131 {approx = true} : vector<6x1xf32> -> vector<6x1xf32>
    %133 = vector.broadcast %132 : vector<6x1xf32> to vector<6x8xf32>
    %134 = arith.mulf %129, %133 : vector<6x8xf32>
    %cst_48 = arith.constant dense<0.000000e+00> : vector<6x128xf32>
    %135 = tpu.matmul %134, %116, %cst_48 {dimension_numbers = #tpu.dot_dimension_numbers<[1], [0], [0], [1], [0, 0, 1, 1], [], []>} : vector<6x8xf32>, vector<8x128xf32>, vector<6x128xf32> -> vector<6x128xf32>
    %cst_49 = arith.constant dense<0.000000e+00> : vector<6x128xf32>
    %136 = tpu.matmul %135, %3, %cst_49 {dimension_numbers = #tpu.dot_dimension_numbers<[1], [0], [0], [1], [0, 0, 1, 1], [], []>} : vector<6x128xf32>, vector<128x128xf32>, vector<6x128xf32> -> vector<6x128xf32>
    %cst_50 = arith.constant dense<0.000000e+00> : vector<6x128xf32>
    %137 = tpu.matmul %114, %4, %cst_50 {dimension_numbers = #tpu.dot_dimension_numbers<[1], [0], [0], [1], [0, 0, 1, 1], [], []>} : vector<6x128xf32>, vector<128x128xf32>, vector<6x128xf32> -> vector<6x128xf32>
    %138 = arith.addf %136, %137 : vector<6x128xf32>
    %139 = math.tanh %138 : vector<6x128xf32>
    %140 = vector.extract_strided_slice %0 {offsets = [0, 5, 0], sizes = [6, 1, 128], strides = [1, 1, 1]} : vector<6x8x128xf32> to vector<6x1x128xf32>
    %141 = vector.shape_cast %140 : vector<6x1x128xf32> to vector<6x128xf32>
    %142 = vector.extract_strided_slice %1 {offsets = [0, 5, 0], sizes = [8, 1, 128], strides = [1, 1, 1]} : vector<8x8x128xf32> to vector<8x1x128xf32>
    %143 = vector.shape_cast %142 : vector<8x1x128xf32> to vector<8x128xf32>
    %cst_51 = arith.constant dense<0.000000e+00> : vector<6x128xf32>
    %144 = tpu.matmul %141, %2, %cst_51 {dimension_numbers = #tpu.dot_dimension_numbers<[1], [0], [0], [1], [0, 0, 1, 1], [], []>} : vector<6x128xf32>, vector<128x128xf32>, vector<6x128xf32> -> vector<6x128xf32>
    %cst_52 = arith.constant dense<0.000000e+00> : vector<6x8xf32>
    %145 = tpu.matmul %144, %143, %cst_52 {dimension_numbers = #tpu.dot_dimension_numbers<[1], [1], [0], [0], [0, 0, 1, 0], [], []>} : vector<6x128xf32>, vector<8x128xf32>, vector<6x8xf32> -> vector<6x8xf32>
    %146 = tpu.iota {dimensions = array<i32: 1>} : vector<6x8xi32>
    %c5 = arith.constant 5 : index
    %147 = memref.load %arg1[%c5] : memref<8xi32, #tpu.memory_space<smem>>
    %148 = vector.broadcast %147 : i32 to vector<6x8xi32>
    %149 = arith.cmpi slt, %146, %148 : vector<6x8xi32>
    %cst_53 = arith.constant -1.000000e+30 : f32
    %150 = vector.broadcast %cst_53 : f32 to vector<6x8xf32>
    %151 = arith.select %149, %145, %150 : vector<6x8xi1>, vector<6x8xf32>
    %cst_54 = arith.constant dense<0xFF800000> : vector<6xf32>
    %152 = vector.multi_reduction <maximumf>, %151, %cst_54 [1] : vector<6x8xf32> to vector<6xf32>
    %153 = vector.shape_cast %152 : vector<6xf32> to vector<6x1xf32>
    %154 = vector.broadcast %153 : vector<6x1xf32> to vector<6x8xf32>
    %155 = arith.subf %151, %154 : vector<6x8xf32>
    %156 = math.exp %155 : vector<6x8xf32>
    %cst_55 = arith.constant dense<0.000000e+00> : vector<6xf32>
    %157 = vector.multi_reduction <add>, %156, %cst_55 [1] : vector<6x8xf32> to vector<6xf32>
    %158 = vector.shape_cast %157 : vector<6xf32> to vector<6x1xf32>
    %159 = tpu.reciprocal %158 {approx = true} : vector<6x1xf32> -> vector<6x1xf32>
    %160 = vector.broadcast %159 : vector<6x1xf32> to vector<6x8xf32>
    %161 = arith.mulf %156, %160 : vector<6x8xf32>
    %cst_56 = arith.constant dense<0.000000e+00> : vector<6x128xf32>
    %162 = tpu.matmul %161, %143, %cst_56 {dimension_numbers = #tpu.dot_dimension_numbers<[1], [0], [0], [1], [0, 0, 1, 1], [], []>} : vector<6x8xf32>, vector<8x128xf32>, vector<6x128xf32> -> vector<6x128xf32>
    %cst_57 = arith.constant dense<0.000000e+00> : vector<6x128xf32>
    %163 = tpu.matmul %162, %3, %cst_57 {dimension_numbers = #tpu.dot_dimension_numbers<[1], [0], [0], [1], [0, 0, 1, 1], [], []>} : vector<6x128xf32>, vector<128x128xf32>, vector<6x128xf32> -> vector<6x128xf32>
    %cst_58 = arith.constant dense<0.000000e+00> : vector<6x128xf32>
    %164 = tpu.matmul %141, %4, %cst_58 {dimension_numbers = #tpu.dot_dimension_numbers<[1], [0], [0], [1], [0, 0, 1, 1], [], []>} : vector<6x128xf32>, vector<128x128xf32>, vector<6x128xf32> -> vector<6x128xf32>
    %165 = arith.addf %163, %164 : vector<6x128xf32>
    %166 = math.tanh %165 : vector<6x128xf32>
    %167 = vector.extract_strided_slice %0 {offsets = [0, 6, 0], sizes = [6, 1, 128], strides = [1, 1, 1]} : vector<6x8x128xf32> to vector<6x1x128xf32>
    %168 = vector.shape_cast %167 : vector<6x1x128xf32> to vector<6x128xf32>
    %169 = vector.extract_strided_slice %1 {offsets = [0, 6, 0], sizes = [8, 1, 128], strides = [1, 1, 1]} : vector<8x8x128xf32> to vector<8x1x128xf32>
    %170 = vector.shape_cast %169 : vector<8x1x128xf32> to vector<8x128xf32>
    %cst_59 = arith.constant dense<0.000000e+00> : vector<6x128xf32>
    %171 = tpu.matmul %168, %2, %cst_59 {dimension_numbers = #tpu.dot_dimension_numbers<[1], [0], [0], [1], [0, 0, 1, 1], [], []>} : vector<6x128xf32>, vector<128x128xf32>, vector<6x128xf32> -> vector<6x128xf32>
    %cst_60 = arith.constant dense<0.000000e+00> : vector<6x8xf32>
    %172 = tpu.matmul %171, %170, %cst_60 {dimension_numbers = #tpu.dot_dimension_numbers<[1], [1], [0], [0], [0, 0, 1, 0], [], []>} : vector<6x128xf32>, vector<8x128xf32>, vector<6x8xf32> -> vector<6x8xf32>
    %173 = tpu.iota {dimensions = array<i32: 1>} : vector<6x8xi32>
    %c6 = arith.constant 6 : index
    %174 = memref.load %arg1[%c6] : memref<8xi32, #tpu.memory_space<smem>>
    %175 = vector.broadcast %174 : i32 to vector<6x8xi32>
    %176 = arith.cmpi slt, %173, %175 : vector<6x8xi32>
    %cst_61 = arith.constant -1.000000e+30 : f32
    %177 = vector.broadcast %cst_61 : f32 to vector<6x8xf32>
    %178 = arith.select %176, %172, %177 : vector<6x8xi1>, vector<6x8xf32>
    %cst_62 = arith.constant dense<0xFF800000> : vector<6xf32>
    %179 = vector.multi_reduction <maximumf>, %178, %cst_62 [1] : vector<6x8xf32> to vector<6xf32>
    %180 = vector.shape_cast %179 : vector<6xf32> to vector<6x1xf32>
    %181 = vector.broadcast %180 : vector<6x1xf32> to vector<6x8xf32>
    %182 = arith.subf %178, %181 : vector<6x8xf32>
    %183 = math.exp %182 : vector<6x8xf32>
    %cst_63 = arith.constant dense<0.000000e+00> : vector<6xf32>
    %184 = vector.multi_reduction <add>, %183, %cst_63 [1] : vector<6x8xf32> to vector<6xf32>
    %185 = vector.shape_cast %184 : vector<6xf32> to vector<6x1xf32>
    %186 = tpu.reciprocal %185 {approx = true} : vector<6x1xf32> -> vector<6x1xf32>
    %187 = vector.broadcast %186 : vector<6x1xf32> to vector<6x8xf32>
    %188 = arith.mulf %183, %187 : vector<6x8xf32>
    %cst_64 = arith.constant dense<0.000000e+00> : vector<6x128xf32>
    %189 = tpu.matmul %188, %170, %cst_64 {dimension_numbers = #tpu.dot_dimension_numbers<[1], [0], [0], [1], [0, 0, 1, 1], [], []>} : vector<6x8xf32>, vector<8x128xf32>, vector<6x128xf32> -> vector<6x128xf32>
    %cst_65 = arith.constant dense<0.000000e+00> : vector<6x128xf32>
    %190 = tpu.matmul %189, %3, %cst_65 {dimension_numbers = #tpu.dot_dimension_numbers<[1], [0], [0], [1], [0, 0, 1, 1], [], []>} : vector<6x128xf32>, vector<128x128xf32>, vector<6x128xf32> -> vector<6x128xf32>
    %cst_66 = arith.constant dense<0.000000e+00> : vector<6x128xf32>
    %191 = tpu.matmul %168, %4, %cst_66 {dimension_numbers = #tpu.dot_dimension_numbers<[1], [0], [0], [1], [0, 0, 1, 1], [], []>} : vector<6x128xf32>, vector<128x128xf32>, vector<6x128xf32> -> vector<6x128xf32>
    %192 = arith.addf %190, %191 : vector<6x128xf32>
    %193 = math.tanh %192 : vector<6x128xf32>
    %194 = vector.extract_strided_slice %0 {offsets = [0, 7, 0], sizes = [6, 1, 128], strides = [1, 1, 1]} : vector<6x8x128xf32> to vector<6x1x128xf32>
    %195 = vector.shape_cast %194 : vector<6x1x128xf32> to vector<6x128xf32>
    %196 = vector.extract_strided_slice %1 {offsets = [0, 7, 0], sizes = [8, 1, 128], strides = [1, 1, 1]} : vector<8x8x128xf32> to vector<8x1x128xf32>
    %197 = vector.shape_cast %196 : vector<8x1x128xf32> to vector<8x128xf32>
    %cst_67 = arith.constant dense<0.000000e+00> : vector<6x128xf32>
    %198 = tpu.matmul %195, %2, %cst_67 {dimension_numbers = #tpu.dot_dimension_numbers<[1], [0], [0], [1], [0, 0, 1, 1], [], []>} : vector<6x128xf32>, vector<128x128xf32>, vector<6x128xf32> -> vector<6x128xf32>
    %cst_68 = arith.constant dense<0.000000e+00> : vector<6x8xf32>
    %199 = tpu.matmul %198, %197, %cst_68 {dimension_numbers = #tpu.dot_dimension_numbers<[1], [1], [0], [0], [0, 0, 1, 0], [], []>} : vector<6x128xf32>, vector<8x128xf32>, vector<6x8xf32> -> vector<6x8xf32>
    %200 = tpu.iota {dimensions = array<i32: 1>} : vector<6x8xi32>
    %c7 = arith.constant 7 : index
    %201 = memref.load %arg1[%c7] : memref<8xi32, #tpu.memory_space<smem>>
    %202 = vector.broadcast %201 : i32 to vector<6x8xi32>
    %203 = arith.cmpi slt, %200, %202 : vector<6x8xi32>
    %cst_69 = arith.constant -1.000000e+30 : f32
    %204 = vector.broadcast %cst_69 : f32 to vector<6x8xf32>
    %205 = arith.select %203, %199, %204 : vector<6x8xi1>, vector<6x8xf32>
    %cst_70 = arith.constant dense<0xFF800000> : vector<6xf32>
    %206 = vector.multi_reduction <maximumf>, %205, %cst_70 [1] : vector<6x8xf32> to vector<6xf32>
    %207 = vector.shape_cast %206 : vector<6xf32> to vector<6x1xf32>
    %208 = vector.broadcast %207 : vector<6x1xf32> to vector<6x8xf32>
    %209 = arith.subf %205, %208 : vector<6x8xf32>
    %210 = math.exp %209 : vector<6x8xf32>
    %cst_71 = arith.constant dense<0.000000e+00> : vector<6xf32>
    %211 = vector.multi_reduction <add>, %210, %cst_71 [1] : vector<6x8xf32> to vector<6xf32>
    %212 = vector.shape_cast %211 : vector<6xf32> to vector<6x1xf32>
    %213 = tpu.reciprocal %212 {approx = true} : vector<6x1xf32> -> vector<6x1xf32>
    %214 = vector.broadcast %213 : vector<6x1xf32> to vector<6x8xf32>
    %215 = arith.mulf %210, %214 : vector<6x8xf32>
    %cst_72 = arith.constant dense<0.000000e+00> : vector<6x128xf32>
    %216 = tpu.matmul %215, %197, %cst_72 {dimension_numbers = #tpu.dot_dimension_numbers<[1], [0], [0], [1], [0, 0, 1, 1], [], []>} : vector<6x8xf32>, vector<8x128xf32>, vector<6x128xf32> -> vector<6x128xf32>
    %cst_73 = arith.constant dense<0.000000e+00> : vector<6x128xf32>
    %217 = tpu.matmul %216, %3, %cst_73 {dimension_numbers = #tpu.dot_dimension_numbers<[1], [0], [0], [1], [0, 0, 1, 1], [], []>} : vector<6x128xf32>, vector<128x128xf32>, vector<6x128xf32> -> vector<6x128xf32>
    %cst_74 = arith.constant dense<0.000000e+00> : vector<6x128xf32>
    %218 = tpu.matmul %195, %4, %cst_74 {dimension_numbers = #tpu.dot_dimension_numbers<[1], [0], [0], [1], [0, 0, 1, 1], [], []>} : vector<6x128xf32>, vector<128x128xf32>, vector<6x128xf32> -> vector<6x128xf32>
    %219 = arith.addf %217, %218 : vector<6x128xf32>
    %220 = math.tanh %219 : vector<6x128xf32>
    %221 = vector.shape_cast %31 : vector<6x128xf32> to vector<6x1x128xf32>
    %222 = vector.shape_cast %58 : vector<6x128xf32> to vector<6x1x128xf32>
    %223 = vector.shape_cast %85 : vector<6x128xf32> to vector<6x1x128xf32>
    %224 = vector.shape_cast %112 : vector<6x128xf32> to vector<6x1x128xf32>
    %225 = vector.shape_cast %139 : vector<6x128xf32> to vector<6x1x128xf32>
    %226 = vector.shape_cast %166 : vector<6x128xf32> to vector<6x1x128xf32>
    %227 = vector.shape_cast %193 : vector<6x128xf32> to vector<6x1x128xf32>
    %228 = vector.shape_cast %220 : vector<6x128xf32> to vector<6x1x128xf32>
    %229 = tpu.concatenate %221, %222, %223, %224, %225, %226, %227, %228 in 1 : vector<6x1x128xf32>, vector<6x1x128xf32>, vector<6x1x128xf32>, vector<6x1x128xf32>, vector<6x1x128xf32>, vector<6x1x128xf32>, vector<6x1x128xf32>, vector<6x1x128xf32> -> vector<6x8x128xf32>
    %c0_75 = arith.constant 0 : index
    %c0_76 = arith.constant 0 : index
    %c0_77 = arith.constant 0 : index
    %230 = vector.load %arg7[%c0_75, %c0_76, %c0_77] : memref<6x8x128xf32, #tpu.memory_space<vmem>>, vector<6x8x128xf32>
    tpu.vector_store %arg7[%c0_75, %c0_76, %c0_77], %229 {strides = array<i32>} : memref<6x8x128xf32, #tpu.memory_space<vmem>>, vector<6x8x128xf32>,
    %231 = vector.shape_cast %26 : vector<6x8xf32> to vector<6x1x8xf32>
    %232 = vector.shape_cast %53 : vector<6x8xf32> to vector<6x1x8xf32>
    %233 = vector.shape_cast %80 : vector<6x8xf32> to vector<6x1x8xf32>
    %234 = vector.shape_cast %107 : vector<6x8xf32> to vector<6x1x8xf32>
    %235 = vector.shape_cast %134 : vector<6x8xf32> to vector<6x1x8xf32>
    %236 = vector.shape_cast %161 : vector<6x8xf32> to vector<6x1x8xf32>
    %237 = vector.shape_cast %188 : vector<6x8xf32> to vector<6x1x8xf32>
    %238 = vector.shape_cast %215 : vector<6x8xf32> to vector<6x1x8xf32>
    %239 = tpu.concatenate %231, %232, %233, %234, %235, %236, %237, %238 in 1 : vector<6x1x8xf32>, vector<6x1x8xf32>, vector<6x1x8xf32>, vector<6x1x8xf32>, vector<6x1x8xf32>, vector<6x1x8xf32>, vector<6x1x8xf32>, vector<6x1x8xf32> -> vector<6x8x8xf32>
    %c0_78 = arith.constant 0 : index
    %c0_79 = arith.constant 0 : index
    %c0_80 = arith.constant 0 : index
    %240 = vector.load %arg8[%c0_78, %c0_79, %c0_80] : memref<6x8x8xf32, #tpu.memory_space<vmem>>, vector<6x8x8xf32>
    tpu.vector_store %arg8[%c0_78, %c0_79, %c0_80], %239 {strides = array<i32>} : memref<6x8x8xf32, #tpu.memory_space<vmem>>, vector<6x8x8xf32>,
    return
  }
  func.func @transform_0(%arg0: i32, %arg1: memref<8xi32, #tpu.memory_space<smem>>) -> (i32, i32, i32) {
    %c0_i32 = arith.constant 0 : i32
    %c0_i32_0 = arith.constant 0 : i32
    %c0_i32_1 = arith.constant 0 : i32
    %c0_i32_2 = arith.constant 0 : i32
    return %c0_i32, %c0_i32_0, %c0_i32_1 : i32, i32, i32
  }
  func.func @transform_1(%arg0: i32, %arg1: memref<8xi32, #tpu.memory_space<smem>>) -> (i32, i32, i32) {
    %c0_i32 = arith.constant 0 : i32
    %c0_i32_0 = arith.constant 0 : i32
    %c0_i32_1 = arith.constant 0 : i32
    %c0_i32_2 = arith.constant 0 : i32
    return %c0_i32, %c0_i32_0, %c0_i32_1 : i32, i32, i32
  }
  func.func @transform_2(%arg0: i32, %arg1: memref<8xi32, #tpu.memory_space<smem>>) -> (i32, i32) {
    %c0_i32 = arith.constant 0 : i32
    %c0_i32_0 = arith.constant 0 : i32
    %c0_i32_1 = arith.constant 0 : i32
    return %c0_i32, %c0_i32_0 : i32, i32
  }
  func.func @transform_3(%arg0: i32, %arg1: memref<8xi32, #tpu.memory_space<smem>>) -> (i32, i32) {
    %c0_i32 = arith.constant 0 : i32
    %c0_i32_0 = arith.constant 0 : i32
    %c0_i32_1 = arith.constant 0 : i32
    return %c0_i32, %c0_i32_0 : i32, i32
  }
  func.func @transform_4(%arg0: i32, %arg1: memref<8xi32, #tpu.memory_space<smem>>) -> (i32, i32) {
    %c0_i32 = arith.constant 0 : i32
    %c0_i32_0 = arith.constant 0 : i32
    %c0_i32_1 = arith.constant 0 : i32
    return %c0_i32, %c0_i32_0 : i32, i32
  }
  func.func @transform_5(%arg0: i32, %arg1: memref<8xi32, #tpu.memory_space<smem>>) -> (i32, i32, i32) {
    %c0_i32 = arith.constant 0 : i32
    %c0_i32_0 = arith.constant 0 : i32
    %c0_i32_1 = arith.constant 0 : i32
    %c0_i32_2 = arith.constant 0 : i32
    return %c0_i32, %c0_i32_0, %c0_i32_1 : i32, i32, i32
  }
  func.func @transform_6(%arg0: i32, %arg1: memref<8xi32, #tpu.memory_space<smem>>) -> (i32, i32, i32) {
    %c0_i32 = arith.constant 0 : i32
    %c0_i32_0 = arith.constant 0 : i32
    %c0_i32_1 = arith.constant 0 : i32
    %c0_i32_2 = arith.constant 0 : i32
    return %c0_i32, %c0_i32_0, %c0_i32_1 : i32, i32, i32
  }
}

</mosaic_0001>

<llo_original>
// kernel: rnn_decoder_forward.3
$region0: #{rnn_decoder_forward.3}
  #allocation0 [shape = 'u32[]', space=smem, size = 0x4, offset = 0x4, fixed_abs, tag = 'smem constant byte address 0x4 - core index']
  #allocation1 [shape = 'u32[144,128]{1,0:T(1,128)}', space=vmem, size = 0x12000, scoped, tag = 'internal scratch']
  %s0 = inlined_call_operand.vmem [shape: f32[48,128], index: 0, kind: input, shape index: {}]
  %s1 = inlined_call_operand.vmem [shape: f32[3,128,128], index: 1, kind: input, shape index: {}]
  %s2 = inlined_call_operand.vmem [shape: f32[3,1,128], index: 2, kind: input, shape index: {}]
  %s3 = inlined_call_operand.vmem [shape: f32[3,48,128], index: 3, kind: output, shape index: {}]
  %s4 = sld [smem:[#allocation0]]
  $region45: #{rnn_decoder_forward.3} parent=0
    _
  %s6 = ssub.s32 1, %s4
  %s7 = scalar_select 0, %s6, %s4
  loop: start=0, step=1, limit=5
  $region2: #{rnn_decoder_forward.3} parent=0 // loop_pre_header
    _
  $region3: #{rnn_decoder_forward.3} parent=0 // loop_header
    %s9 = sphi 0, %s13
    %p10 = scmp.ge.s32.totalorder %s9, 5
    %s17 = sphi 0, %s17
    %s19 = sphi 0, %s17
    %s20 = sphi 0, %s19
    %s34 = sphi 0, %s20
    %s40 = sphi 0, %s42
    %s43 = sphi 0, %s40
    %s44 = sphi 0, %s43
    %s60 = sphi 0, %s44
    %s66 = sphi 0, %s68
    %s69 = sphi 0, %s66
    %s70 = sphi 0, %s69
    %s86 = sphi 0, %s70
    %s92 = sphi 0, %s94
    %s95 = sphi 0, %s92
    %s96 = sphi 0, %s95
    %s112 = sphi 0, %s96
  $region4: #{rnn_decoder_forward.3} parent=0 // loop_header_branch
    %12 = sbr.rel (%p10) target = $region8
  $region5: #{rnn_decoder_forward.3} parent=0 // loop_body
    %s14 = ssub.s32 %s9, 1
    %s15 = ssub.s32 %s9, 2
    %s16 = sadd.s32 %s9, 1
    %s18 = sadd.s32 %s17, 1
    %p21 = scmp.eq.s32.totalorder %s9, 2
    %p22 = scmp.ne.s32.totalorder %s17, %s19
    %p23 = scmp.eq.s32.totalorder %s9, 0
    %p24 = por %p22, %p23
    %p25 = scmp.ne.s32.totalorder %s17, %s19
    %p26 = scmp.eq.s32.totalorder %s14, 2
    %p27 = por %p25, %p26
    %p28 = scmp.ne.s32.totalorder %s19, %s20
    %p29 = scmp.eq.s32.totalorder %s14, 0
    %p30 = por %p28, %p29
    %p31 = scmp.ne.s32.totalorder %s19, %s20
    %p32 = scmp.eq.s32.totalorder %s15, 2
    %p33 = por %p31, %p32
    %p35 = scmp.ne.s32.totalorder %s20, %s34
    %p36 = scmp.eq.s32.totalorder %s15, 0
    %p37 = por %p35, %p36
    %s38 = ssub.s32 %s9, %s16
    %p39 = scmp.eq.s32.totalorder %s38, 0
    %s41 = sadd.s32 %s40, 1
    %s42 = scalar_select %p39, %s40, %s41
    %p45 = pneg %p39
    %p46 = scmp.eq.s32.totalorder %s9, 2
    %p47 = por %p45, %p46
    %p48 = scmp.ne.s32.totalorder %s40, %s43
    %p49 = scmp.eq.s32.totalorder %s9, 0
    %p50 = por %p48, %p49
    %p51 = scmp.ne.s32.totalorder %s40, %s43
    %p52 = scmp.eq.s32.totalorder %s14, 2
    %p53 = por %p51, %p52
    %p54 = scmp.ne.s32.totalorder %s43, %s44
    %p55 = scmp.eq.s32.totalorder %s14, 0
    %p56 = por %p54, %p55
    %p57 = scmp.ne.s32.totalorder %s43, %s44
    %p58 = scmp.eq.s32.totalorder %s15, 2
    %p59 = por %p57, %p58
    %p61 = scmp.ne.s32.totalorder %s44, %s60
    %p62 = scmp.eq.s32.totalorder %s15, 0
    %p63 = por %p61, %p62
    %s64 = ssub.s32 %s9, %s16
    %p65 = scmp.eq.s32.totalorder %s64, 0
    %s67 = sadd.s32 %s66, 1
    %s68 = scalar_select %p65, %s66, %s67
    %p71 = pneg %p65
    %p72 = scmp.eq.s32.totalorder %s9, 2
    %p73 = por %p71, %p72
    %p74 = scmp.ne.s32.totalorder %s66, %s69
    %p75 = scmp.eq.s32.totalorder %s9, 0
    %p76 = por %p74, %p75
    %p77 = scmp.ne.s32.totalorder %s66, %s69
    %p78 = scmp.eq.s32.totalorder %s14, 2
    %p79 = por %p77, %p78
    %p80 = scmp.ne.s32.totalorder %s69, %s70
    %p81 = scmp.eq.s32.totalorder %s14, 0
    %p82 = por %p80, %p81
    %p83 = scmp.ne.s32.totalorder %s69, %s70
    %p84 = scmp.eq.s32.totalorder %s15, 2
    %p85 = por %p83, %p84
    %p87 = scmp.ne.s32.totalorder %s70, %s86
    %p88 = scmp.eq.s32.totalorder %s15, 0
    %p89 = por %p87, %p88
    %s90 = ssub.s32 %s9, %s16
    %p91 = scmp.eq.s32.totalorder %s90, 0
    %s93 = sadd.s32 %s92, 1
    %s94 = scalar_select %p91, %s92, %s93
    %p97 = pneg %p91
    %p98 = scmp.eq.s32.totalorder %s9, 2
    %p99 = por %p97, %p98
    %p100 = scmp.ne.s32.totalorder %s92, %s95
    %p101 = scmp.eq.s32.totalorder %s9, 0
    %p102 = por %p100, %p101
    %p103 = scmp.ne.s32.totalorder %s92, %s95
    %p104 = scmp.eq.s32.totalorder %s14, 2
    %p105 = por %p103, %p104
    %p106 = scmp.ne.s32.totalorder %s95, %s96
    %p107 = scmp.eq.s32.totalorder %s14, 0
    %p108 = por %p106, %p107
    %p109 = scmp.ne.s32.totalorder %s95, %s96
    %p110 = scmp.eq.s32.totalorder %s15, 2
    %p111 = por %p109, %p110
    %p113 = scmp.ne.s32.totalorder %s96, %s112
    %p114 = scmp.eq.s32.totalorder %s15, 0
    %p115 = por %p113, %p114
    %p116 = scmp.le.s32.totalorder 1, %s9
    %p117 = scmp.lt.s32.totalorder %s9, 4
    %p118 = pnand %p116, %p117
    %p119 = pneg %p118
    // Predicated region
    $region9: #{rnn_decoder_forward.3} parent=5 // pred_check
      _
    $region10: #{rnn_decoder_forward.3} parent=5 // pred_check_branch
      %121 = sbr.rel (%p118) target = $region12
    $region11: #{rnn_decoder_forward.3} parent=5 // pred_region
      %s122 = ssub.s32 %s9, 1
      // Predicated region
      $region13: #{rnn_decoder_forward.3} parent=11 // pred_check
        %p123 = pneg %p30
      $region14: #{rnn_decoder_forward.3} parent=11 // pred_check_branch
        %125 = sbr.rel (%p123) target = $region16
      $region15: #{rnn_decoder_forward.3} parent=11 // pred_region
        _
      $region16: #{rnn_decoder_forward.3} parent=11 // pred_fallthru
        _
    $region12: #{rnn_decoder_forward.3} parent=5 // pred_fallthru
      _
    %p126 = scmp.lt.s32.totalorder %s9, 3
    // Predicated region
    $region17: #{rnn_decoder_forward.3} parent=5 // pred_check
      %p127 = pneg %p126
    $region18: #{rnn_decoder_forward.3} parent=5 // pred_check_branch
      %129 = sbr.rel (%p127) target = $region20
    $region19: #{rnn_decoder_forward.3} parent=5 // pred_region
      // Predicated region
      $region21: #{rnn_decoder_forward.3} parent=19 // pred_check
        %p130 = pneg %p50
      $region22: #{rnn_decoder_forward.3} parent=19 // pred_check_branch
        %132 = sbr.rel (%p130) target = $region24
      $region23: #{rnn_decoder_forward.3} parent=19 // pred_region
        %p133 = scmp.lt.s32.totalorder %s9, 2
        %s134 = scalar_select %p133, %s9, 2
        %s135 = smul.addr %s134, 16
        %s136 = smul.addr %s135, 8
        %s137 = scalar_lea.vmem %s1, %s136
      $region24: #{rnn_decoder_forward.3} parent=19 // pred_fallthru
        _
      // Predicated region
      $region25: #{rnn_decoder_forward.3} parent=19 // pred_check
        %p138 = pneg %p76
      $region26: #{rnn_decoder_forward.3} parent=19 // pred_check_branch
        %140 = sbr.rel (%p138) target = $region28
      $region27: #{rnn_decoder_forward.3} parent=19 // pred_region
        %p141 = scmp.lt.s32.totalorder %s9, 2
        %s142 = scalar_select %p141, %s9, 2
        %s143 = scalar_lea.vmem %s2, %s142
      $region28: #{rnn_decoder_forward.3} parent=19 // pred_fallthru
        _
    $region20: #{rnn_decoder_forward.3} parent=5 // pred_fallthru
      _
    %p144 = scmp.le.s32.totalorder 1, %s9
    %p145 = scmp.lt.s32.totalorder %s9, 4
    %p146 = pnand %p144, %p145
    %p147 = pneg %p146
    // Predicated region
    $region29: #{rnn_decoder_forward.3} parent=5 // pred_check
      _
    $region30: #{rnn_decoder_forward.3} parent=5 // pred_check_branch
      %149 = sbr.rel (%p146) target = $region32
    $region31: #{rnn_decoder_forward.3} parent=5 // pred_region
      %s150 = ssub.s32 %s9, 1
      %p151 = pneg %p30
      %p152 = pneg %p27
      %p153 = scmp.lt.s32.totalorder %s14, 2
      %s154 = scalar_select %p153, %s14, 2
      %s155 = smul.addr %s154, 16
      %s156 = smul.addr %s155, 8
      %s157 = scalar_lea.vmem %s1, %s156
      %p158 = pneg %p56
      %p159 = pneg %p53
      %p160 = scmp.lt.s32.totalorder %s14, 2
      %s161 = scalar_select %p160, %s14, 2
      %s162 = scalar_lea.vmem %s2, %s161
      %p163 = pneg %p82
      %p164 = pneg %p79
      %p165 = pneg %p108
      %p166 = pneg %p105
      %p167 = scmp.lt.s32.totalorder %s14, 2
      %s168 = scalar_select %p167, %s14, 2
      %s169 = smul.addr %s168, 6
      %s170 = smul.addr %s169, 8
      %s171 = scalar_lea.vmem %s3, %s170
      %p172 = scmp.lt.s32.totalorder %s14, 2
      %s173 = scalar_select %p172, %s14, 2
      %s174 = smul.addr %s173, 16
      %s175 = smul.addr %s174, 8
      %s176 = scalar_lea.vmem %s1, %s175
      %p177 = scmp.lt.s32.totalorder %s14, 2
      %s178 = scalar_select %p177, %s14, 2
      %s179 = scalar_lea.vmem %s2, %s178
      %p180 = scmp.lt.s32.totalorder %s14, 2
      %s181 = scalar_select %p180, %s14, 2
      %s182 = smul.addr %s181, 6
      %s183 = smul.addr %s182, 8
      %s184 = scalar_lea.vmem %s3, %s183
      %v185 = vld [vmem:[%s0] sm:$0xff]
      %v186 = vld [vmem:[%s0 + $0x8] sm:$0xff]
      %v187 = vld [vmem:[%s0 + $0x10] sm:$0xff]
      %v188 = vld [vmem:[%s0 + $0x18] sm:$0xff]
      %v189 = vld [vmem:[%s0 + $0x20] sm:$0xff]
      %v190 = vld [vmem:[%s0 + $0x28] sm:$0xff]
      %v191 = vld [vmem:[%s176] sm:$0xff]
      %v192 = vld [vmem:[%s176 + $0x8] sm:$0xff]
      %v193 = vld [vmem:[%s176 + $0x10] sm:$0xff]
      %v194 = vld [vmem:[%s176 + $0x18] sm:$0xff]
      %v195 = vld [vmem:[%s176 + $0x20] sm:$0xff]
      %v196 = vld [vmem:[%s176 + $0x28] sm:$0xff]
      %v197 = vld [vmem:[%s176 + $0x30] sm:$0xff]
      %v198 = vld [vmem:[%s176 + $0x38] sm:$0xff]
      %v199 = vld [vmem:[%s176 + $0x40] sm:$0xff]
      %v200 = vld [vmem:[%s176 + $0x48] sm:$0xff]
      %v201 = vld [vmem:[%s176 + $0x50] sm:$0xff]
      %v202 = vld [vmem:[%s176 + $0x58] sm:$0xff]
      %v203 = vld [vmem:[%s176 + $0x60] sm:$0xff]
      %v204 = vld [vmem:[%s176 + $0x68] sm:$0xff]
      %v205 = vld [vmem:[%s176 + $0x70] sm:$0xff]
      %v206 = vld [vmem:[%s176 + $0x78] sm:$0xff]
      %v207 = vld [vmem:[%s179] sm:$0x1]
      %v209 = vlaneseq
      %v210 = vshrl.u32 %v209, 7
      %v211 = vsub.s32 0, %v210
      %v212 = vrot.slane %v207, %v211
      %214 = vmatprep.subr.mxu0 0.0
      %215 = vmatpush1.msra.mxu0 %v191
      %216 = vmatprep.subr.mxu0 0.0
      %217 = vmatpush1.msra.mxu0 %v192
      %218 = vmatprep.subr.mxu0 0.0
      %219 = vmatpush1.msra.mxu0 %v193
      %220 = vmatprep.subr.mxu0 0.0
      %221 = vmatpush1.msra.mxu0 %v194
      %222 = vmatprep.subr.mxu0 0.0
      %223 = vmatpush1.msra.mxu0 %v195
      %224 = vmatprep.subr.mxu0 0.0
      %225 = vmatpush1.msra.mxu0 %v196
      %226 = vmatprep.subr.mxu0 0.0
      %227 = vmatpush1.msra.mxu0 %v197
      %228 = vmatprep.subr.mxu0 0.0
      %229 = vmatpush1.msra.mxu0 %v198
      %230 = vmatprep.subr.mxu0 0.0
      %231 = vmatpush1.msra.mxu0 %v199
      %232 = vmatprep.subr.mxu0 0.0
      %233 = vmatpush1.msra.mxu0 %v200
      %234 = vmatprep.subr.mxu0 0.0
      %235 = vmatpush1.msra.mxu0 %v201
      %236 = vmatprep.subr.mxu0 0.0
      %237 = vmatpush1.msra.mxu0 %v202
      %238 = vmatprep.subr.mxu0 0.0
      %239 = vmatpush1.msra.mxu0 %v203
      %240 = vmatprep.subr.mxu0 0.0
      %241 = vmatpush1.msra.mxu0 %v204
      %242 = vmatprep.subr.mxu0 0.0
      %243 = vmatpush1.msra.mxu0 %v205
      %244 = vmatprep.subr.mxu0 0.0
      %245 = vmatpush1.msra.mxu0 %v206
      %246 = vmatprep.subr.mxu0 0.0
      %247 = vmatpush1.msra.mxu0 0.0
      %248 = vmatprep.subr.mxu0 0.0
      %249 = vmatpush1.msra.mxu0 0.0
      %250 = vmatprep.subr.mxu0 0.0
      %251 = vmatpush1.msra.mxu0 0.0
      %252 = vmatprep.subr.mxu0 0.0
      %253 = vmatpush1.msra.mxu0 0.0
      %254 = vmatprep.subr.mxu0 0.0
      %255 = vmatpush1.msra.mxu0 0.0
      %256 = vmatprep.subr.mxu0 0.0
      %257 = vmatpush1.msra.mxu0 0.0
      %258 = vmatprep.subr.mxu0 0.0
      %259 = vmatpush1.msra.mxu0 0.0
      %260 = vmatprep.subr.mxu0 0.0
      %261 = vmatpush1.msra.mxu0 0.0
      %262 = vmatprep.subr.mxu0 0.0
      %263 = vmatpush1.msra.mxu0 0.0
      %264 = vmatprep.subr.mxu0 0.0
      %265 = vmatpush1.msra.mxu0 0.0
      %266 = vmatprep.subr.mxu0 0.0
      %267 = vmatpush1.msra.mxu0 0.0
      %268 = vmatprep.subr.mxu0 0.0
      %269 = vmatpush1.msra.mxu0 0.0
      %270 = vmatprep.subr.mxu0 0.0
      %271 = vmatpush1.msra.mxu0 0.0
      %272 = vmatprep.subr.mxu0 0.0
      %273 = vmatpush1.msra.mxu0 0.0
      %274 = vmatprep.subr.mxu0 0.0
      %275 = vmatpush1.msra.mxu0 0.0
      %276 = vmatprep.subr.mxu0 0.0
      %277 = vmatpush1.msra.mxu0 0.0
      %278 = vmatprep.mubr.f32.mxu0 0.0
      %279 = vmatmul.mubr.f32.gmra.mrb[0].mxu0 %v185
      %v280 = vpop.f32.mrb[0].mxu0
      %v281 = vadd.f32 %v212, %v280
      %v282 = vpop.f32.mrb[0].mxu0
      %283 = vmatprep.mubr.f32.mxu0 0.0
      %284 = vmatmul.mubr.f32.gmra.mrb[0].mxu0 %v186
      %v285 = vpop.f32.mrb[0].mxu0
      %v286 = vadd.f32 %v212, %v285
      %v287 = vpop.f32.mrb[0].mxu0
      %288 = vmatprep.mubr.f32.mxu0 0.0
      %289 = vmatmul.mubr.f32.gmra.mrb[0].mxu0 %v187
      %v290 = vpop.f32.mrb[0].mxu0
      %v291 = vadd.f32 %v212, %v290
      %v292 = vpop.f32.mrb[0].mxu0
      %293 = vmatprep.mubr.f32.mxu0 0.0
      %294 = vmatmul.mubr.f32.gmra.mrb[0].mxu0 %v188
      %v295 = vpop.f32.mrb[0].mxu0
      %v296 = vadd.f32 %v212, %v295
      %v297 = vpop.f32.mrb[0].mxu0
      %298 = vmatprep.mubr.f32.mxu0 0.0
      %299 = vmatmul.mubr.f32.gmra.mrb[0].mxu0 %v189
      %v300 = vpop.f32.mrb[0].mxu0
      %v301 = vadd.f32 %v212, %v300
      %v302 = vpop.f32.mrb[0].mxu0
      %303 = vmatprep.mubr.f32.mxu0 0.0
      %304 = vmatmul.mubr.f32.gmra.mrb[0].mxu0 %v190
      %v305 = vpop.f32.mrb[0].mxu0
      %v306 = vadd.f32 %v212, %v305
      %v307 = vpop.f32.mrb[0].mxu0
      %308 = vdwg.mxu0
      %309 = vst [vmem:[%s184] sm:$0xff] %v281
      %310 = vst [vmem:[%s184 + $0x8] sm:$0xff] %v286
      %311 = vst [vmem:[%s184 + $0x10] sm:$0xff] %v291
      %312 = vst [vmem:[%s184 + $0x18] sm:$0xff] %v296
      %313 = vst [vmem:[%s184 + $0x20] sm:$0xff] %v301
      %314 = vst [vmem:[%s184 + $0x28] sm:$0xff] %v306
      %p315 = scmp.lt.s32.totalorder %s14, 2
      %s316 = scalar_select %p315, %s14, 2
      %s317 = smul.addr %s316, 6
      %s318 = smul.addr %s317, 8
      %s319 = scalar_lea.vmem %s3, %s318
      // Predicated region
      $region33: #{rnn_decoder_forward.3} parent=31 // pred_check
        %p320 = pneg %p105
      $region34: #{rnn_decoder_forward.3} parent=31 // pred_check_branch
        %322 = sbr.rel (%p320) target = $region36
      $region35: #{rnn_decoder_forward.3} parent=31 // pred_region
        _
      $region36: #{rnn_decoder_forward.3} parent=31 // pred_fallthru
        _
    $region32: #{rnn_decoder_forward.3} parent=5 // pred_fallthru
      _
    %p323 = scmp.le.s32.totalorder 2, %s9
    // Predicated region
    $region37: #{rnn_decoder_forward.3} parent=5 // pred_check
      %p324 = pneg %p323
    $region38: #{rnn_decoder_forward.3} parent=5 // pred_check_branch
      %326 = sbr.rel (%p324) target = $region40
    $region39: #{rnn_decoder_forward.3} parent=5 // pred_region
      %s327 = ssub.s32 %s9, 2
      // Predicated region
      $region41: #{rnn_decoder_forward.3} parent=39 // pred_check
        %p328 = pneg %p111
      $region42: #{rnn_decoder_forward.3} parent=39 // pred_check_branch
        %330 = sbr.rel (%p328) target = $region44
      $region43: #{rnn_decoder_forward.3} parent=39 // pred_region
        %p331 = scmp.lt.s32.totalorder %s15, 2
        %s332 = scalar_select %p331, %s15, 2
        %s333 = smul.addr %s332, 6
        %s334 = smul.addr %s333, 8
        %s335 = scalar_lea.vmem %s3, %s334
      $region44: #{rnn_decoder_forward.3} parent=39 // pred_fallthru
        _
    $region40: #{rnn_decoder_forward.3} parent=5 // pred_fallthru
      _
  $region6: #{rnn_decoder_forward.3} parent=0 // loop_footer
    %s13 = sadd.s32 1, %s9
  $region7: #{rnn_decoder_forward.3} parent=0 // loop_footer_branch
    %8 = sbr.rel target = $region3
  $region8: #{rnn_decoder_forward.3} parent=0 // loop_exit
    _

// kernel: rnn_decoder_forward.4
$region0: #{rnn_decoder_forward.4}
  #allocation0 [shape = 'u32[]', space=smem, size = 0x4, offset = 0x4, fixed_abs, tag = 'smem constant byte address 0x4 - core index']
  #allocation1 [shape = 'u32[144,128]{1,0:T(1,128)}', space=vmem, size = 0x12000, scoped, tag = 'internal scratch']
  #allocation2 [shape = 'f32[8,128]{1,0:T(8,128)}', space=vmem, size = 0x1000, scoped, tag = 'scratch operand']
  %s0 = inlined_call_operand.vmem [shape: f32[3,6,8,128], index: 0, kind: input, shape index: {}]
  %s1 = inlined_call_operand.vmem [shape: f32[8,128], index: 1, kind: input, shape index: {}]
  %s2 = inlined_call_operand.vmem [shape: f32[3,128,128], index: 2, kind: input, shape index: {}]
  %s3 = inlined_call_operand.vmem [shape: f32[3,1,128], index: 3, kind: input, shape index: {}]
  %s4 = inlined_call_operand.vmem [shape: f32[6,8,128], index: 4, kind: output, shape index: {}]
  %s5 = sld [smem:[#allocation0]]
  $region91: #{rnn_decoder_forward.4} parent=0
    _
  %s7 = ssub.s32 1, %s5
  %s8 = scalar_select 0, %s7, %s5
  $region1: #{rnn_decoder_forward.4} parent=0
    #allocation3 [shape = 'u8[24576]{0}', space=vmem, size = 0x6000, scoped, tag = 'input window, operand 0']
    loop: start=0, step=1, limit=8
    $region2: #{rnn_decoder_forward.4} parent=1 // loop_pre_header
      _
    $region3: #{rnn_decoder_forward.4} parent=1 // loop_header
      %s10 = sphi 0, %s14
      %p11 = scmp.ge.s32.totalorder %s10, 8
      %s20 = sphi 0, %s22
      %s23 = sphi 0, %s20
      %s24 = sphi 0, %s23
      %s40 = sphi 0, %s24
      %s44 = sphi 0, %s44
      %s46 = sphi 0, %s44
      %s47 = sphi 0, %s46
      %s61 = sphi 0, %s47
      %s65 = sphi 0, %s65
      %s67 = sphi 0, %s65
      %s68 = sphi 0, %s67
      %s82 = sphi 0, %s68
      %s86 = sphi 0, %s86
      %s88 = sphi 0, %s86
      %s89 = sphi 0, %s88
      %s103 = sphi 0, %s89
      %s107 = sphi 0, %s107
      %s109 = sphi 0, %s107
      %s110 = sphi 0, %s109
      %s124 = sphi 0, %s110
    $region4: #{rnn_decoder_forward.4} parent=1 // loop_header_branch
      %13 = sbr.rel (%p11) target = $region8
    $region5: #{rnn_decoder_forward.4} parent=1 // loop_body
      %s15 = ssub.s32 %s10, 1
      %s16 = ssub.s32 %s10, 2
      %s17 = sadd.s32 %s10, 1
      %s18 = ssub.s32 %s10, %s17
      %p19 = scmp.eq.s32.totalorder %s18, 0
      %s21 = sadd.s32 %s20, 1
      %s22 = scalar_select %p19, %s20, %s21
      %p25 = pneg %p19
      %p26 = scmp.eq.s32.totalorder %s10, 5
      %p27 = por %p25, %p26
      %p28 = scmp.ne.s32.totalorder %s20, %s23
      %p29 = scmp.eq.s32.totalorder %s10, 0
      %p30 = por %p28, %p29
      %p31 = scmp.ne.s32.totalorder %s20, %s23
      %p32 = scmp.eq.s32.totalorder %s15, 5
      %p33 = por %p31, %p32
      %p34 = scmp.ne.s32.totalorder %s23, %s24
      %p35 = scmp.eq.s32.totalorder %s15, 0
      %p36 = por %p34, %p35
      %p37 = scmp.ne.s32.totalorder %s23, %s24
      %p38 = scmp.eq.s32.totalorder %s16, 5
      %p39 = por %p37, %p38
      %p41 = scmp.ne.s32.totalorder %s24, %s40
      %p42 = scmp.eq.s32.totalorder %s16, 0
      %p43 = por %p41, %p42
      %s45 = sadd.s32 %s44, 1
      %p48 = scmp.eq.s32.totalorder %s10, 5
      %p49 = scmp.ne.s32.totalorder %s44, %s46
      %p50 = scmp.eq.s32.totalorder %s10, 0
      %p51 = por %p49, %p50
      %p52 = scmp.ne.s32.totalorder %s44, %s46
      %p53 = scmp.eq.s32.totalorder %s15, 5
      %p54 = por %p52, %p53
      %p55 = scmp.ne.s32.totalorder %s46, %s47
      %p56 = scmp.eq.s32.totalorder %s15, 0
      %p57 = por %p55, %p56
      %p58 = scmp.ne.s32.totalorder %s46, %s47
      %p59 = scmp.eq.s32.totalorder %s16, 5
      %p60 = por %p58, %p59
      %p62 = scmp.ne.s32.totalorder %s47, %s61
      %p63 = scmp.eq.s32.totalorder %s16, 0
      %p64 = por %p62, %p63
      %s66 = sadd.s32 %s65, 1
      %p69 = scmp.eq.s32.totalorder %s10, 5
      %p70 = scmp.ne.s32.totalorder %s65, %s67
      %p71 = scmp.eq.s32.totalorder %s10, 0
      %p72 = por %p70, %p71
      %p73 = scmp.ne.s32.totalorder %s65, %s67
      %p74 = scmp.eq.s32.totalorder %s15, 5
      %p75 = por %p73, %p74
      %p76 = scmp.ne.s32.totalorder %s67, %s68
      %p77 = scmp.eq.s32.totalorder %s15, 0
      %p78 = por %p76, %p77
      %p79 = scmp.ne.s32.totalorder %s67, %s68
      %p80 = scmp.eq.s32.totalorder %s16, 5
      %p81 = por %p79, %p80
      %p83 = scmp.ne.s32.totalorder %s68, %s82
      %p84 = scmp.eq.s32.totalorder %s16, 0
      %p85 = por %p83, %p84
      %s87 = sadd.s32 %s86, 1
      %p90 = scmp.eq.s32.totalorder %s10, 5
      %p91 = scmp.ne.s32.totalorder %s86, %s88
      %p92 = scmp.eq.s32.totalorder %s10, 0
      %p93 = por %p91, %p92
      %p94 = scmp.ne.s32.totalorder %s86, %s88
      %p95 = scmp.eq.s32.totalorder %s15, 5
      %p96 = por %p94, %p95
      %p97 = scmp.ne.s32.totalorder %s88, %s89
      %p98 = scmp.eq.s32.totalorder %s15, 0
      %p99 = por %p97, %p98
      %p100 = scmp.ne.s32.totalorder %s88, %s89
      %p101 = scmp.eq.s32.totalorder %s16, 5
      %p102 = por %p100, %p101
      %p104 = scmp.ne.s32.totalorder %s89, %s103
      %p105 = scmp.eq.s32.totalorder %s16, 0
      %p106 = por %p104, %p105
      %s108 = sadd.s32 %s107, 1
      %p111 = scmp.eq.s32.totalorder %s10, 5
      %p112 = scmp.ne.s32.totalorder %s107, %s109
      %p113 = scmp.eq.s32.totalorder %s10, 0
      %p114 = por %p112, %p113
      %p115 = scmp.ne.s32.totalorder %s107, %s109
      %p116 = scmp.eq.s32.totalorder %s15, 5
      %p117 = por %p115, %p116
      %p118 = scmp.ne.s32.totalorder %s109, %s110
      %p119 = scmp.eq.s32.totalorder %s15, 0
      %p120 = por %p118, %p119
      %p121 = scmp.ne.s32.totalorder %s109, %s110
      %p122 = scmp.eq.s32.totalorder %s16, 5
      %p123 = por %p121, %p122
      %p125 = scmp.ne.s32.totalorder %s110, %s124
      %p126 = scmp.eq.s32.totalorder %s16, 0
      %p127 = por %p125, %p126
      %p128 = scmp.le.s32.totalorder 1, %s10
      %p129 = scmp.lt.s32.totalorder %s10, 7
      %p130 = pnand %p128, %p129
      %p131 = pneg %p130
      // Predicated region
      $region9: #{rnn_decoder_forward.4} parent=5 // pred_check
        _
      $region10: #{rnn_decoder_forward.4} parent=5 // pred_check_branch
        %133 = sbr.rel (%p130) target = $region12
      $region11: #{rnn_decoder_forward.4} parent=5 // pred_region
        %s134 = ssub.s32 %s10, 1
        // Predicated region
        $region13: #{rnn_decoder_forward.4} parent=11 // pred_check
          %p135 = pneg %p57
        $region14: #{rnn_decoder_forward.4} parent=11 // pred_check_branch
          %137 = sbr.rel (%p135) target = $region16
        $region15: #{rnn_decoder_forward.4} parent=11 // pred_region
          _
        $region16: #{rnn_decoder_forward.4} parent=11 // pred_fallthru
          _
        // Predicated region
        $region17: #{rnn_decoder_forward.4} parent=11 // pred_check
          %p138 = pneg %p78
        $region18: #{rnn_decoder_forward.4} parent=11 // pred_check_branch
          %140 = sbr.rel (%p138) target = $region20
        $region19: #{rnn_decoder_forward.4} parent=11 // pred_region
          _
        $region20: #{rnn_decoder_forward.4} parent=11 // pred_fallthru
          _
        // Predicated region
        $region21: #{rnn_decoder_forward.4} parent=11 // pred_check
          %p141 = pneg %p99
        $region22: #{rnn_decoder_forward.4} parent=11 // pred_check_branch
          %143 = sbr.rel (%p141) target = $region24
        $region23: #{rnn_decoder_forward.4} parent=11 // pred_region
          _
        $region24: #{rnn_decoder_forward.4} parent=11 // pred_fallthru
          _
      $region12: #{rnn_decoder_forward.4} parent=5 // pred_fallthru
        _
      %p144 = scmp.lt.s32.totalorder %s10, 6
      // Predicated region
      $region25: #{rnn_decoder_forward.4} parent=5 // pred_check
        %p145 = pneg %p144
      $region26: #{rnn_decoder_forward.4} parent=5 // pred_check_branch
        %147 = sbr.rel (%p145) target = $region28
      $region27: #{rnn_decoder_forward.4} parent=5 // pred_region
        // Predicated region
        $region29: #{rnn_decoder_forward.4} parent=27 // pred_check
          %p148 = pneg %p30
        $region30: #{rnn_decoder_forward.4} parent=27 // pred_check_branch
          %150 = sbr.rel (%p148) target = $region32
        $region31: #{rnn_decoder_forward.4} parent=27 // pred_region
          %s151 = sand.u32 %s20, 1
          %s152 = sand.u32 %s20, 1
          %s153 = smul.addr %s152, 24
          %s154 = scalar_lea.vmem [#allocation3], %s153
          %s155 = smul.addr %s10, 8
          %s156 = scalar_lea.vmem %s0, %s155
          // Predicated region
          $region33: #{rnn_decoder_forward.4} parent=31 // pred_check
            _
          $region34: #{rnn_decoder_forward.4} parent=31 // pred_check_branch
            %158 = sbr.rel (0) target = $region36
          $region35: #{rnn_decoder_forward.4} parent=31 // pred_region
            // Predicated region
            $region37: #{rnn_decoder_forward.4} parent=35 // pred_check
              _
            $region38: #{rnn_decoder_forward.4} parent=35 // pred_check_branch
              %160 = sbr.rel (0) target = $region40
            $region39: #{rnn_decoder_forward.4} parent=35 // pred_region
              // Predicated region
              $region52: #{rnn_decoder_forward.4} parent=39 // pred_check
                _
              $region53: #{rnn_decoder_forward.4} parent=39 // pred_check_branch
                %179 = sbr.rel (0) target = $region55
              $region54: #{rnn_decoder_forward.4} parent=39 // pred_region
                loop: start=0, step=1, limit=1
                $region56: #{rnn_decoder_forward.4} parent=54 // loop_pre_header
                  _
                $region57: #{rnn_decoder_forward.4} parent=54 // loop_header
                  %s181 = sphi 0, %s185
                  %p182 = scmp.ge.s32.totalorder %s181, 1
                  %s186 = sphi %s156, %s156
                  %s187 = sphi %s154, %s154
                $region58: #{rnn_decoder_forward.4} parent=54 // loop_header_branch
                  %184 = sbr.rel (%p182) target = $region62
                $region59: #{rnn_decoder_forward.4} parent=54 // loop_body
                  %v188 = vld [vmem:[%s186] sm:$0xff]
                  %189 = vst [vmem:[%s187] sm:$0xff] %v188
                  %v190 = vld [vmem:[%s186 + $0x30] sm:$0xff]
                  %191 = vst [vmem:[%s187 + $0x8] sm:$0xff] %v190
                  %v192 = vld [vmem:[%s186 + $0x60] sm:$0xff]
                  %193 = vst [vmem:[%s187 + $0x10] sm:$0xff] %v192
                $region60: #{rnn_decoder_forward.4} parent=54 // loop_footer
                  %s185 = sadd.s32 1, %s181
                $region61: #{rnn_decoder_forward.4} parent=54 // loop_footer_branch
                  %180 = sbr.rel target = $region57
                $region62: #{rnn_decoder_forward.4} parent=54 // loop_exit
                  _
              $region55: #{rnn_decoder_forward.4} parent=39 // pred_fallthru
                _
              // Predicated region
              $region63: #{rnn_decoder_forward.4} parent=39 // pred_check
                _
              $region64: #{rnn_decoder_forward.4} parent=39 // pred_check_branch
                %195 = sbr.rel target = $region66
              $region65: #{rnn_decoder_forward.4} parent=39 // pred_region
                _
              $region66: #{rnn_decoder_forward.4} parent=39 // pred_fallthru
                _
            $region40: #{rnn_decoder_forward.4} parent=35 // pred_fallthru
              _
            // Predicated region
            $region41: #{rnn_decoder_forward.4} parent=35 // pred_check
              _
            $region42: #{rnn_decoder_forward.4} parent=35 // pred_check_branch
              %162 = sbr.rel target = $region44
            $region43: #{rnn_decoder_forward.4} parent=35 // pred_region
              loop: start=0, step=1, limit=1
              $region45: #{rnn_decoder_forward.4} parent=43 // loop_pre_header
                _
              $region46: #{rnn_decoder_forward.4} parent=43 // loop_header
                %s165 = sphi 0, %s169
                %p166 = scmp.ge.s32.totalorder %s165, 1
                %s170 = sphi %s156, %s156
                %s171 = sphi %s154, %s154
              $region47: #{rnn_decoder_forward.4} parent=43 // loop_header_branch
                %168 = sbr.rel (%p166) target = $region51
              $region48: #{rnn_decoder_forward.4} parent=43 // loop_body
                %v172 = vld [vmem:[%s170] sm:$0xff]
                %173 = vst [vmem:[%s171] sm:$0xff] %v172
                %v174 = vld [vmem:[%s170 + $0x30] sm:$0xff]
                %175 = vst [vmem:[%s171 + $0x8] sm:$0xff] %v174
                %v176 = vld [vmem:[%s170 + $0x60] sm:$0xff]
                %177 = vst [vmem:[%s171 + $0x10] sm:$0xff] %v176
              $region49: #{rnn_decoder_forward.4} parent=43 // loop_footer
                %s169 = sadd.s32 1, %s165
              $region50: #{rnn_decoder_forward.4} parent=43 // loop_footer_branch
                %164 = sbr.rel target = $region46
              $region51: #{rnn_decoder_forward.4} parent=43 // loop_exit
                _
            $region44: #{rnn_decoder_forward.4} parent=35 // pred_fallthru
              _
          $region36: #{rnn_decoder_forward.4} parent=31 // pred_fallthru
            _
          %196 = vnop
        $region32: #{rnn_decoder_forward.4} parent=27 // pred_fallthru
          _
      $region28: #{rnn_decoder_forward.4} parent=5 // pred_fallthru
        _
      %p197 = scmp.le.s32.totalorder 1, %s10
      %p198 = scmp.lt.s32.totalorder %s10, 7
      %p199 = pnand %p197, %p198
      %p200 = pneg %p199
      // Predicated region
      $region67: #{rnn_decoder_forward.4} parent=5 // pred_check
        _
      $region68: #{rnn_decoder_forward.4} parent=5 // pred_check_branch
        %202 = sbr.rel (%p199) target = $region70
      $region69: #{rnn_decoder_forward.4} parent=5 // pred_region
        %s203 = ssub.s32 %s10, 1
        %s204 = sand.u32 %s23, 1
        %s205 = sand.u32 %s23, 1
        %s206 = smul.addr %s205, 24
        %s207 = scalar_lea.vmem [#allocation3], %s206
        // Predicated region
        $region71: #{rnn_decoder_forward.4} parent=69 // pred_check
          %p208 = pneg %p36
        $region72: #{rnn_decoder_forward.4} parent=69 // pred_check_branch
          %210 = sbr.rel (%p208) target = $region74
        $region73: #{rnn_decoder_forward.4} parent=69 // pred_region
          _
        $region74: #{rnn_decoder_forward.4} parent=69 // pred_fallthru
          _
        %s211 = sand.u32 %s23, 1
        %s212 = sand.u32 %s23, 1
        %s213 = smul.addr %s212, 24
        %s214 = scalar_lea.vmem [#allocation3], %s213
        %p215 = pneg %p36
        %p216 = pneg %p33
        %p217 = pneg %p57
        %p218 = pneg %p54
        %p219 = pneg %p78
        %p220 = pneg %p75
        %p221 = pneg %p99
        %p222 = pneg %p96
        %p223 = pneg %p120
        %p224 = pneg %p117
        %p225 = scmp.eq.s32.totalorder %s15, 0
        // Predicated region
        $region75: #{rnn_decoder_forward.4} parent=69 // pred_check
          %p226 = pneg %p225
        $region76: #{rnn_decoder_forward.4} parent=69 // pred_check_branch
          %228 = sbr.rel (%p226) target = $region78
        $region77: #{rnn_decoder_forward.4} parent=69 // pred_region
          %v229 = vld [vmem:[%s1] sm:$0xff]
          %230 = vst [vmem:[#allocation2] sm:$0xff] %v229
        $region78: #{rnn_decoder_forward.4} parent=69 // pred_fallthru
          _
        %v231 = vld [vmem:[#allocation2] sm:$0xff]
        %v232 = vld [vmem:[%s207] sm:$0xff]
        %s233 = scalar_lea.vmem %s207, 8 [#allocation3]
        %v234 = vld [vmem:[%s233] sm:$0xff]
        %s235 = scalar_lea.vmem %s207, 16 [#allocation3]
        %v236 = vld [vmem:[%s235] sm:$0xff]
        %v237 = vld [vmem:[%s2] sm:$0xff]
        %v238 = vld [vmem:[%s2 + $0x8] sm:$0xff]
        %v239 = vld [vmem:[%s2 + $0x10] sm:$0xff]
        %v240 = vld [vmem:[%s2 + $0x18] sm:$0xff]
        %v241 = vld [vmem:[%s2 + $0x20] sm:$0xff]
        %v242 = vld [vmem:[%s2 + $0x28] sm:$0xff]
        %v243 = vld [vmem:[%s2 + $0x30] sm:$0xff]
        %v244 = vld [vmem:[%s2 + $0x38] sm:$0xff]
        %v245 = vld [vmem:[%s2 + $0x40] sm:$0xff]
        %v246 = vld [vmem:[%s2 + $0x48] sm:$0xff]
        %v247 = vld [vmem:[%s2 + $0x50] sm:$0xff]
        %v248 = vld [vmem:[%s2 + $0x58] sm:$0xff]
        %v249 = vld [vmem:[%s2 + $0x60] sm:$0xff]
        %v250 = vld [vmem:[%s2 + $0x68] sm:$0xff]
        %v251 = vld [vmem:[%s2 + $0x70] sm:$0xff]
        %v252 = vld [vmem:[%s2 + $0x78] sm:$0xff]
        %v253 = vld [vmem:[%s3] sm:$0x1]
        %v255 = vlaneseq
        %v256 = vshrl.u32 %v255, 7
        %v257 = vsub.s32 0, %v256
        %v258 = vrot.slane %v253, %v257
        %260 = vmatprep.subr.mxu0 0.0
        %261 = vmatpush1.msra.mxu0 %v237
        %262 = vmatprep.subr.mxu0 0.0
        %263 = vmatpush1.msra.mxu0 %v238
        %264 = vmatprep.subr.mxu0 0.0
        %265 = vmatpush1.msra.mxu0 %v239
        %266 = vmatprep.subr.mxu0 0.0
        %267 = vmatpush1.msra.mxu0 %v240
        %268 = vmatprep.subr.mxu0 0.0
        %269 = vmatpush1.msra.mxu0 %v241
        %270 = vmatprep.subr.mxu0 0.0
        %271 = vmatpush1.msra.mxu0 %v242
        %272 = vmatprep.subr.mxu0 0.0
        %273 = vmatpush1.msra.mxu0 %v243
        %274 = vmatprep.subr.mxu0 0.0
        %275 = vmatpush1.msra.mxu0 %v244
        %276 = vmatprep.subr.mxu0 0.0
        %277 = vmatpush1.msra.mxu0 %v245
        %278 = vmatprep.subr.mxu0 0.0
        %279 = vmatpush1.msra.mxu0 %v246
        %280 = vmatprep.subr.mxu0 0.0
        %281 = vmatpush1.msra.mxu0 %v247
        %282 = vmatprep.subr.mxu0 0.0
        %283 = vmatpush1.msra.mxu0 %v248
        %284 = vmatprep.subr.mxu0 0.0
        %285 = vmatpush1.msra.mxu0 %v249
        %286 = vmatprep.subr.mxu0 0.0
        %287 = vmatpush1.msra.mxu0 %v250
        %288 = vmatprep.subr.mxu0 0.0
        %289 = vmatpush1.msra.mxu0 %v251
        %290 = vmatprep.subr.mxu0 0.0
        %291 = vmatpush1.msra.mxu0 %v252
        %292 = vmatprep.subr.mxu0 0.0
        %293 = vmatpush1.msra.mxu0 0.0
        %294 = vmatprep.subr.mxu0 0.0
        %295 = vmatpush1.msra.mxu0 0.0
        %296 = vmatprep.subr.mxu0 0.0
        %297 = vmatpush1.msra.mxu0 0.0
        %298 = vmatprep.subr.mxu0 0.0
        %299 = vmatpush1.msra.mxu0 0.0
        %300 = vmatprep.subr.mxu0 0.0
        %301 = vmatpush1.msra.mxu0 0.0
        %302 = vmatprep.subr.mxu0 0.0
        %303 = vmatpush1.msra.mxu0 0.0
        %304 = vmatprep.subr.mxu0 0.0
        %305 = vmatpush1.msra.mxu0 0.0
        %306 = vmatprep.subr.mxu0 0.0
        %307 = vmatpush1.msra.mxu0 0.0
        %308 = vmatprep.subr.mxu0 0.0
        %309 = vmatpush1.msra.mxu0 0.0
        %310 = vmatprep.subr.mxu0 0.0
        %311 = vmatpush1.msra.mxu0 0.0
        %312 = vmatprep.subr.mxu0 0.0
        %313 = vmatpush1.msra.mxu0 0.0
        %314 = vmatprep.subr.mxu0 0.0
        %315 = vmatpush1.msra.mxu0 0.0
        %316 = vmatprep.subr.mxu0 0.0
        %317 = vmatpush1.msra.mxu0 0.0
        %318 = vmatprep.subr.mxu0 0.0
        %319 = vmatpush1.msra.mxu0 0.0
        %320 = vmatprep.subr.mxu0 0.0
        %321 = vmatpush1.msra.mxu0 0.0
        %322 = vmatprep.subr.mxu0 0.0
        %323 = vmatpush1.msra.mxu0 0.0
        %324 = vmatprep.mubr.f32.mxu0 0.0
        %325 = vmatmul.mubr.f32.gmra.mrb[0].mxu0 %v231
        %v326 = vpop.f32.mrb[0].mxu0
        %v327 = vadd.f32 %v258, %v326
        %v328 = vpop.f32.mrb[0].mxu0
        %329 = vdwg.mxu0
        %s330 = scalar_lea.vmem %s2, 128
        %v331 = vld [vmem:[%s330] sm:$0xff]
        %v332 = vld [vmem:[%s330 + $0x8] sm:$0xff]
        %v333 = vld [vmem:[%s330 + $0x10] sm:$0xff]
        %v334 = vld [vmem:[%s330 + $0x18] sm:$0xff]
        %v335 = vld [vmem:[%s330 + $0x20] sm:$0xff]
        %v336 = vld [vmem:[%s330 + $0x28] sm:$0xff]
        %v337 = vld [vmem:[%s330 + $0x30] sm:$0xff]
        %v338 = vld [vmem:[%s330 + $0x38] sm:$0xff]
        %v339 = vld [vmem:[%s330 + $0x40] sm:$0xff]
        %v340 = vld [vmem:[%s330 + $0x48] sm:$0xff]
        %v341 = vld [vmem:[%s330 + $0x50] sm:$0xff]
        %v342 = vld [vmem:[%s330 + $0x58] sm:$0xff]
        %v343 = vld [vmem:[%s330 + $0x60] sm:$0xff]
        %v344 = vld [vmem:[%s330 + $0x68] sm:$0xff]
        %v345 = vld [vmem:[%s330 + $0x70] sm:$0xff]
        %v346 = vld [vmem:[%s330 + $0x78] sm:$0xff]
        %s347 = scalar_lea.vmem %s3, 1
        %v348 = vld [vmem:[%s347] sm:$0x1]
        %v350 = vlaneseq
        %v351 = vshrl.u32 %v350, 7
        %v352 = vsub.s32 0, %v351
        %v353 = vrot.slane %v348, %v352
        %355 = vmatprep.subr.mxu0 0.0
        %356 = vmatpush1.msra.mxu0 %v331
        %357 = vmatprep.subr.mxu0 0.0
        %358 = vmatpush1.msra.mxu0 %v332
        %359 = vmatprep.subr.mxu0 0.0
        %360 = vmatpush1.msra.mxu0 %v333
        %361 = vmatprep.subr.mxu0 0.0
        %362 = vmatpush1.msra.mxu0 %v334
        %363 = vmatprep.subr.mxu0 0.0
        %364 = vmatpush1.msra.mxu0 %v335
        %365 = vmatprep.subr.mxu0 0.0
        %366 = vmatpush1.msra.mxu0 %v336
        %367 = vmatprep.subr.mxu0 0.0
        %368 = vmatpush1.msra.mxu0 %v337
        %369 = vmatprep.subr.mxu0 0.0
        %370 = vmatpush1.msra.mxu0 %v338
        %371 = vmatprep.subr.mxu0 0.0
        %372 = vmatpush1.msra.mxu0 %v339
        %373 = vmatprep.subr.mxu0 0.0
        %374 = vmatpush1.msra.mxu0 %v340
        %375 = vmatprep.subr.mxu0 0.0
        %376 = vmatpush1.msra.mxu0 %v341
        %377 = vmatprep.subr.mxu0 0.0
        %378 = vmatpush1.msra.mxu0 %v342
        %379 = vmatprep.subr.mxu0 0.0
        %380 = vmatpush1.msra.mxu0 %v343
        %381 = vmatprep.subr.mxu0 0.0
        %382 = vmatpush1.msra.mxu0 %v344
        %383 = vmatprep.subr.mxu0 0.0
        %384 = vmatpush1.msra.mxu0 %v345
        %385 = vmatprep.subr.mxu0 0.0
        %386 = vmatpush1.msra.mxu0 %v346
        %387 = vmatprep.subr.mxu0 0.0
        %388 = vmatpush1.msra.mxu0 0.0
        %389 = vmatprep.subr.mxu0 0.0
        %390 = vmatpush1.msra.mxu0 0.0
        %391 = vmatprep.subr.mxu0 0.0
        %392 = vmatpush1.msra.mxu0 0.0
        %393 = vmatprep.subr.mxu0 0.0
        %394 = vmatpush1.msra.mxu0 0.0
        %395 = vmatprep.subr.mxu0 0.0
        %396 = vmatpush1.msra.mxu0 0.0
        %397 = vmatprep.subr.mxu0 0.0
        %398 = vmatpush1.msra.mxu0 0.0
        %399 = vmatprep.subr.mxu0 0.0
        %400 = vmatpush1.msra.mxu0 0.0
        %401 = vmatprep.subr.mxu0 0.0
        %402 = vmatpush1.msra.mxu0 0.0
        %403 = vmatprep.subr.mxu0 0.0
        %404 = vmatpush1.msra.mxu0 0.0
        %405 = vmatprep.subr.mxu0 0.0
        %406 = vmatpush1.msra.mxu0 0.0
        %407 = vmatprep.subr.mxu0 0.0
        %408 = vmatpush1.msra.mxu0 0.0
        %409 = vmatprep.subr.mxu0 0.0
        %410 = vmatpush1.msra.mxu0 0.0
        %411 = vmatprep.subr.mxu0 0.0
        %412 = vmatpush1.msra.mxu0 0.0
        %413 = vmatprep.subr.mxu0 0.0
        %414 = vmatpush1.msra.mxu0 0.0
        %415 = vmatprep.subr.mxu0 0.0
        %416 = vmatpush1.msra.mxu0 0.0
        %417 = vmatprep.subr.mxu0 0.0
        %418 = vmatpush1.msra.mxu0 0.0
        %419 = vmatprep.mubr.f32.mxu0 0.0
        %420 = vmatmul.mubr.f32.gmra.mrb[0].mxu0 %v231
        %v421 = vpop.f32.mrb[0].mxu0
        %v422 = vadd.f32 %v353, %v421
        %v423 = vpop.f32.mrb[0].mxu0
        %424 = vdwg.mxu0
        %s425 = scalar_lea.vmem %s2, 256
        %v426 = vld [vmem:[%s425] sm:$0xff]
        %v427 = vld [vmem:[%s425 + $0x8] sm:$0xff]
        %v428 = vld [vmem:[%s425 + $0x10] sm:$0xff]
        %v429 = vld [vmem:[%s425 + $0x18] sm:$0xff]
        %v430 = vld [vmem:[%s425 + $0x20] sm:$0xff]
        %v431 = vld [vmem:[%s425 + $0x28] sm:$0xff]
        %v432 = vld [vmem:[%s425 + $0x30] sm:$0xff]
        %v433 = vld [vmem:[%s425 + $0x38] sm:$0xff]
        %v434 = vld [vmem:[%s425 + $0x40] sm:$0xff]
        %v435 = vld [vmem:[%s425 + $0x48] sm:$0xff]
        %v436 = vld [vmem:[%s425 + $0x50] sm:$0xff]
        %v437 = vld [vmem:[%s425 + $0x58] sm:$0xff]
        %v438 = vld [vmem:[%s425 + $0x60] sm:$0xff]
        %v439 = vld [vmem:[%s425 + $0x68] sm:$0xff]
        %v440 = vld [vmem:[%s425 + $0x70] sm:$0xff]
        %v441 = vld [vmem:[%s425 + $0x78] sm:$0xff]
        %s442 = scalar_lea.vmem %s3, 2
        %v443 = vld [vmem:[%s442] sm:$0x1]
        %v445 = vlaneseq
        %v446 = vshrl.u32 %v445, 7
        %v447 = vsub.s32 0, %v446
        %v448 = vrot.slane %v443, %v447
        %450 = vmatprep.subr.mxu0 0.0
        %451 = vmatpush1.msra.mxu0 %v426
        %452 = vmatprep.subr.mxu0 0.0
        %453 = vmatpush1.msra.mxu0 %v427
        %454 = vmatprep.subr.mxu0 0.0
        %455 = vmatpush1.msra.mxu0 %v428
        %456 = vmatprep.subr.mxu0 0.0
        %457 = vmatpush1.msra.mxu0 %v429
        %458 = vmatprep.subr.mxu0 0.0
        %459 = vmatpush1.msra.mxu0 %v430
        %460 = vmatprep.subr.mxu0 0.0
        %461 = vmatpush1.msra.mxu0 %v431
        %462 = vmatprep.subr.mxu0 0.0
        %463 = vmatpush1.msra.mxu0 %v432
        %464 = vmatprep.subr.mxu0 0.0
        %465 = vmatpush1.msra.mxu0 %v433
        %466 = vmatprep.subr.mxu0 0.0
        %467 = vmatpush1.msra.mxu0 %v434
        %468 = vmatprep.subr.mxu0 0.0
        %469 = vmatpush1.msra.mxu0 %v435
        %470 = vmatprep.subr.mxu0 0.0
        %471 = vmatpush1.msra.mxu0 %v436
        %472 = vmatprep.subr.mxu0 0.0
        %473 = vmatpush1.msra.mxu0 %v437
        %474 = vmatprep.subr.mxu0 0.0
        %475 = vmatpush1.msra.mxu0 %v438
        %476 = vmatprep.subr.mxu0 0.0
        %477 = vmatpush1.msra.mxu0 %v439
        %478 = vmatprep.subr.mxu0 0.0
        %479 = vmatpush1.msra.mxu0 %v440
        %480 = vmatprep.subr.mxu0 0.0
        %481 = vmatpush1.msra.mxu0 %v441
        %482 = vmatprep.subr.mxu0 0.0
        %483 = vmatpush1.msra.mxu0 0.0
        %484 = vmatprep.subr.mxu0 0.0
        %485 = vmatpush1.msra.mxu0 0.0
        %486 = vmatprep.subr.mxu0 0.0
        %487 = vmatpush1.msra.mxu0 0.0
        %488 = vmatprep.subr.mxu0 0.0
        %489 = vmatpush1.msra.mxu0 0.0
        %490 = vmatprep.subr.mxu0 0.0
        %491 = vmatpush1.msra.mxu0 0.0
        %492 = vmatprep.subr.mxu0 0.0
        %493 = vmatpush1.msra.mxu0 0.0
        %494 = vmatprep.subr.mxu0 0.0
        %495 = vmatpush1.msra.mxu0 0.0
        %496 = vmatprep.subr.mxu0 0.0
        %497 = vmatpush1.msra.mxu0 0.0
        %498 = vmatprep.subr.mxu0 0.0
        %499 = vmatpush1.msra.mxu0 0.0
        %500 = vmatprep.subr.mxu0 0.0
        %501 = vmatpush1.msra.mxu0 0.0
        %502 = vmatprep.subr.mxu0 0.0
        %503 = vmatpush1.msra.mxu0 0.0
        %504 = vmatprep.subr.mxu0 0.0
        %505 = vmatpush1.msra.mxu0 0.0
        %506 = vmatprep.subr.mxu0 0.0
        %507 = vmatpush1.msra.mxu0 0.0
        %508 = vmatprep.subr.mxu0 0.0
        %509 = vmatpush1.msra.mxu0 0.0
        %510 = vmatprep.subr.mxu0 0.0
        %511 = vmatpush1.msra.mxu0 0.0
        %512 = vmatprep.subr.mxu0 0.0
        %513 = vmatpush1.msra.mxu0 0.0
        %514 = vmatprep.mubr.f32.mxu0 0.0
        %515 = vmatmul.mubr.f32.gmra.mrb[0].mxu0 %v231
        %v516 = vpop.f32.mrb[0].mxu0
        %v517 = vadd.f32 %v448, %v516
        %v518 = vpop.f32.mrb[0].mxu0
        %519 = vdwg.mxu0
        %v520 = vadd.f32 %v232, %v327
        %v521 = vxor.u32 %v520, 2147483648
        %v522 = vmul.f32 %v521, 1.442695
        %v523 = vpow.pop %v522
        %v524 = vadd.f32 %v523, 1.0
        %v525 = vrcp.pop %v524
        %v526 = vmul.f32 1.0, %v525
        %v527 = vadd.f32 %v234, %v422
        %v528 = vxor.u32 %v527, 2147483648
        %v529 = vmul.f32 %v528, 1.442695
        %v530 = vpow.pop %v529
        %v531 = vadd.f32 %v530, 1.0
        %v532 = vrcp.pop %v531
        %v533 = vmul.f32 1.0, %v532
        %v534 = vmul.f32 %v526, %v517
        %v535 = vadd.f32 %v236, %v534
        %v536 = vtanh.pop %v535
        %v537 = vsub.f32 1.0, %v533
        %v538 = vmul.f32 %v537, %v536
        %v539 = vmul.f32 %v533, %v231
        %v540 = vadd.f32 %v538, %v539
        %541 = vst [vmem:[#allocation2] sm:$0xff] %v540
        %s542 = smul.u32 %s15, 8
        %s543 = scalar_lea.vmem %s4, %s542
        %544 = vst [vmem:[%s543] sm:$0xff] %v540
        // Predicated region
        $region79: #{rnn_decoder_forward.4} parent=69 // pred_check
          %p545 = pneg %p117
        $region80: #{rnn_decoder_forward.4} parent=69 // pred_check_branch
          %547 = sbr.rel (%p545) target = $region82
        $region81: #{rnn_decoder_forward.4} parent=69 // pred_region
          _
        $region82: #{rnn_decoder_forward.4} parent=69 // pred_fallthru
          _
        // Predicated region
        $region83: #{rnn_decoder_forward.4} parent=69 // pred_check
          %p548 = pneg %p117
        $region84: #{rnn_decoder_forward.4} parent=69 // pred_check_branch
          %550 = sbr.rel (%p548) target = $region86
        $region85: #{rnn_decoder_forward.4} parent=69 // pred_region
          _
        $region86: #{rnn_decoder_forward.4} parent=69 // pred_fallthru
          _
      $region70: #{rnn_decoder_forward.4} parent=5 // pred_fallthru
        _
      %p551 = scmp.le.s32.totalorder 2, %s10
      // Predicated region
      $region87: #{rnn_decoder_forward.4} parent=5 // pred_check
        %p552 = pneg %p551
      $region88: #{rnn_decoder_forward.4} parent=5 // pred_check_branch
        %554 = sbr.rel (%p552) target = $region90
      $region89: #{rnn_decoder_forward.4} parent=5 // pred_region
        %s555 = ssub.s32 %s10, 2
      $region90: #{rnn_decoder_forward.4} parent=5 // pred_fallthru
        _
    $region6: #{rnn_decoder_forward.4} parent=1 // loop_footer
      %s14 = sadd.s32 1, %s10
    $region7: #{rnn_decoder_forward.4} parent=1 // loop_footer_branch
      %9 = sbr.rel target = $region3
    $region8: #{rnn_decoder_forward.4} parent=1 // loop_exit
      _

// kernel: rnn_decoder_forward.5
$region0: #{rnn_decoder_forward.5}
  #allocation0 [shape = 'u32[]', space=smem, size = 0x4, offset = 0x4, fixed_abs, tag = 'smem constant byte address 0x4 - core index']
  #allocation1 [shape = 'u32[144,128]{1,0:T(1,128)}', space=vmem, size = 0x12000, scoped, tag = 'internal scratch']
  #allocation2 [shape = 's32[1]{0}', space=sflag, size = 0x4, scoped, tag = 'scoped memory for rnn_decoder_forward.5']
  #allocation3 [shape = 'u8[512]{0}', space=smem, size = 0x200, scoped, tag = 'prefetched SMEM operand 0']
  %s0 = inlined_call_operand.vmem [shape: s32[8], index: 0, kind: input, shape index: {}]
  %s1 = inlined_call_operand.vmem [shape: f32[6,8,128], index: 1, kind: input, shape index: {}]
  %s2 = inlined_call_operand.vmem [shape: f32[8,8,128], index: 2, kind: input, shape index: {}]
  %s3 = inlined_call_operand.vmem [shape: f32[128,128], index: 3, kind: input, shape index: {}]
  %s4 = inlined_call_operand.vmem [shape: f32[128,128], index: 4, kind: input, shape index: {}]
  %s5 = inlined_call_operand.vmem [shape: f32[128,128], index: 5, kind: input, shape index: {}]
  %s6 = inlined_call_operand.vmem [shape: f32[6,8,128], index: 6, kind: output, shape index: {0}]
  %s7 = inlined_call_operand.hbm [shape: f32[6,8,8], index: 7, kind: output, shape index: {1}]
  %8 = xla_tuple %s6, %s7
  %s9 = sld [smem:[#allocation0]]
  $region38: #{rnn_decoder_forward.5} parent=0
    _
  %s11 = ssub.s32 1, %s9
  %s12 = scalar_select 0, %s11, %s9
  %s13 = sshll.u32 %s0, 4
  %s14 = int_to_ptr.vmem [resolvable:$true] %s13
  %16 = dma.vmem_to_smem %s14, 16, [#allocation3], [#allocation2]
  %17 = dma.done [#allocation2], 16
  %18 = sfence
  $region1: #{rnn_decoder_forward.5} parent=0
    #allocation4 [shape = 'u8[24576]{0}', space=vmem, size = 0x6000, scoped, tag = 'output window, operand 1, single buffered']
    #allocation5 [shape = 's32[1]{0}', space=sflag, size = 0x4, scoped, tag = 'scoped memory for rnn_decoder_forward.5']
    %19 = vsyncpa [#allocation5], 0
    // Predicated region
    $region2: #{rnn_decoder_forward.5} parent=1 // pred_check
      _
    $region3: #{rnn_decoder_forward.5} parent=1 // pred_check_branch
      %21 = sbr.rel (0) target = $region5
    $region4: #{rnn_decoder_forward.5} parent=1 // pred_region
      _
    $region5: #{rnn_decoder_forward.5} parent=1 // pred_fallthru
      _
    // Predicated region
    $region6: #{rnn_decoder_forward.5} parent=1 // pred_check
      _
    $region7: #{rnn_decoder_forward.5} parent=1 // pred_check_branch
      %23 = sbr.rel (0) target = $region9
    $region8: #{rnn_decoder_forward.5} parent=1 // pred_region
      _
    $region9: #{rnn_decoder_forward.5} parent=1 // pred_fallthru
      _
    // Predicated region
    $region10: #{rnn_decoder_forward.5} parent=1 // pred_check
      _
    $region11: #{rnn_decoder_forward.5} parent=1 // pred_check_branch
      %25 = sbr.rel (0) target = $region13
    $region12: #{rnn_decoder_forward.5} parent=1 // pred_region
      _
    $region13: #{rnn_decoder_forward.5} parent=1 // pred_fallthru
      _
    // Predicated region
    $region14: #{rnn_decoder_forward.5} parent=1 // pred_check
      _
    $region15: #{rnn_decoder_forward.5} parent=1 // pred_check_branch
      %27 = sbr.rel (0) target = $region17
    $region16: #{rnn_decoder_forward.5} parent=1 // pred_region
      _
    $region17: #{rnn_decoder_forward.5} parent=1 // pred_fallthru
      _
    // Predicated region
    $region18: #{rnn_decoder_forward.5} parent=1 // pred_check
      _
    $region19: #{rnn_decoder_forward.5} parent=1 // pred_check_branch
      %29 = sbr.rel (0) target = $region21
    $region20: #{rnn_decoder_forward.5} parent=1 // pred_region
      _
    $region21: #{rnn_decoder_forward.5} parent=1 // pred_fallthru
      _
    %v30 = vld [vmem:[%s1] sm:$0xff]
    %v31 = vld [vmem:[%s1 + $0x8] sm:$0xff]
    %v32 = vld [vmem:[%s1 + $0x10] sm:$0xff]
    %v33 = vld [vmem:[%s1 + $0x18] sm:$0xff]
    %v34 = vld [vmem:[%s1 + $0x20] sm:$0xff]
    %v35 = vld [vmem:[%s1 + $0x28] sm:$0xff]
    %v36 = vld [vmem:[%s2] sm:$0xff]
    %v37 = vld [vmem:[%s2 + $0x8] sm:$0xff]
    %v38 = vld [vmem:[%s2 + $0x10] sm:$0xff]
    %v39 = vld [vmem:[%s2 + $0x18] sm:$0xff]
    %v40 = vld [vmem:[%s2 + $0x20] sm:$0xff]
    %v41 = vld [vmem:[%s2 + $0x28] sm:$0xff]
    %v42 = vld [vmem:[%s2 + $0x30] sm:$0xff]
    %v43 = vld [vmem:[%s2 + $0x38] sm:$0xff]
    %v44 = vld [vmem:[%s3] sm:$0xff]
    %v45 = vld [vmem:[%s3 + $0x8] sm:$0xff]
    %v46 = vld [vmem:[%s3 + $0x10] sm:$0xff]
    %v47 = vld [vmem:[%s3 + $0x18] sm:$0xff]
    %v48 = vld [vmem:[%s3 + $0x20] sm:$0xff]
    %v49 = vld [vmem:[%s3 + $0x28] sm:$0xff]
    %v50 = vld [vmem:[%s3 + $0x30] sm:$0xff]
    %v51 = vld [vmem:[%s3 + $0x38] sm:$0xff]
    %v52 = vld [vmem:[%s3 + $0x40] sm:$0xff]
    %v53 = vld [vmem:[%s3 + $0x48] sm:$0xff]
    %v54 = vld [vmem:[%s3 + $0x50] sm:$0xff]
    %v55 = vld [vmem:[%s3 + $0x58] sm:$0xff]
    %v56 = vld [vmem:[%s3 + $0x60] sm:$0xff]
    %v57 = vld [vmem:[%s3 + $0x68] sm:$0xff]
    %v58 = vld [vmem:[%s3 + $0x70] sm:$0xff]
    %v59 = vld [vmem:[%s3 + $0x78] sm:$0xff]
    %v60 = vld [vmem:[%s4] sm:$0xff]
    %v61 = vld [vmem:[%s4 + $0x8] sm:$0xff]
    %v62 = vld [vmem:[%s4 + $0x10] sm:$0xff]
    %v63 = vld [vmem:[%s4 + $0x18] sm:$0xff]
    %v64 = vld [vmem:[%s4 + $0x20] sm:$0xff]
    %v65 = vld [vmem:[%s4 + $0x28] sm:$0xff]
    %v66 = vld [vmem:[%s4 + $0x30] sm:$0xff]
    %v67 = vld [vmem:[%s4 + $0x38] sm:$0xff]
    %v68 = vld [vmem:[%s4 + $0x40] sm:$0xff]
    %v69 = vld [vmem:[%s4 + $0x48] sm:$0xff]
    %v70 = vld [vmem:[%s4 + $0x50] sm:$0xff]
    %v71 = vld [vmem:[%s4 + $0x58] sm:$0xff]
    %v72 = vld [vmem:[%s4 + $0x60] sm:$0xff]
    %v73 = vld [vmem:[%s4 + $0x68] sm:$0xff]
    %v74 = vld [vmem:[%s4 + $0x70] sm:$0xff]
    %v75 = vld [vmem:[%s4 + $0x78] sm:$0xff]
    %v76 = vld [vmem:[%s5] sm:$0xff]
    %v77 = vld [vmem:[%s5 + $0x8] sm:$0xff]
    %v78 = vld [vmem:[%s5 + $0x10] sm:$0xff]
    %v79 = vld [vmem:[%s5 + $0x18] sm:$0xff]
    %v80 = vld [vmem:[%s5 + $0x20] sm:$0xff]
    %v81 = vld [vmem:[%s5 + $0x28] sm:$0xff]
    %v82 = vld [vmem:[%s5 + $0x30] sm:$0xff]
    %v83 = vld [vmem:[%s5 + $0x38] sm:$0xff]
    %v84 = vld [vmem:[%s5 + $0x40] sm:$0xff]
    %v85 = vld [vmem:[%s5 + $0x48] sm:$0xff]
    %v86 = vld [vmem:[%s5 + $0x50] sm:$0xff]
    %v87 = vld [vmem:[%s5 + $0x58] sm:$0xff]
    %v88 = vld [vmem:[%s5 + $0x60] sm:$0xff]
    %v89 = vld [vmem:[%s5 + $0x68] sm:$0xff]
    %v90 = vld [vmem:[%s5 + $0x70] sm:$0xff]
    %v91 = vld [vmem:[%s5 + $0x78] sm:$0xff]
    %v98 = vrot.slane %v31, 7
    %vm99 = vcmask 1041409
    %v100 = vsel %vm99, %v98, %v30
    %v101 = vrot.slane %v32, 6
    %vm102 = vcmask 1042434
    %v103 = vsel %vm102, %v101, %v100
    %v104 = vrot.slane %v33, 5
    %vm105 = vcmask 1043459
    %v106 = vsel %vm105, %v104, %v103
    %v107 = vrot.slane %v34, 4
    %vm108 = vcmask 1044484
    %v109 = vsel %vm108, %v107, %v106
    %v110 = vrot.slane %v35, 3
    %vm111 = vcmask 1045509
    %v112 = vsel %vm111, %v110, %v109
    %114 = vmatprep.subr.mxu0 0.0
    %115 = vmatpush1.msra.mxu0 %v44
    %116 = vmatprep.subr.mxu0 0.0
    %117 = vmatpush1.msra.mxu0 %v45
    %118 = vmatprep.subr.mxu0 0.0
    %119 = vmatpush1.msra.mxu0 %v46
    %120 = vmatprep.subr.mxu0 0.0
    %121 = vmatpush1.msra.mxu0 %v47
    %122 = vmatprep.subr.mxu0 0.0
    %123 = vmatpush1.msra.mxu0 %v48
    %124 = vmatprep.subr.mxu0 0.0
    %125 = vmatpush1.msra.mxu0 %v49
    %126 = vmatprep.subr.mxu0 0.0
    %127 = vmatpush1.msra.mxu0 %v50
    %128 = vmatprep.subr.mxu0 0.0
    %129 = vmatpush1.msra.mxu0 %v51
    %130 = vmatprep.subr.mxu0 0.0
    %131 = vmatpush1.msra.mxu0 %v52
    %132 = vmatprep.subr.mxu0 0.0
    %133 = vmatpush1.msra.mxu0 %v53
    %134 = vmatprep.subr.mxu0 0.0
    %135 = vmatpush1.msra.mxu0 %v54
    %136 = vmatprep.subr.mxu0 0.0
    %137 = vmatpush1.msra.mxu0 %v55
    %138 = vmatprep.subr.mxu0 0.0
    %139 = vmatpush1.msra.mxu0 %v56
    %140 = vmatprep.subr.mxu0 0.0
    %141 = vmatpush1.msra.mxu0 %v57
    %142 = vmatprep.subr.mxu0 0.0
    %143 = vmatpush1.msra.mxu0 %v58
    %144 = vmatprep.subr.mxu0 0.0
    %145 = vmatpush1.msra.mxu0 %v59
    %146 = vmatprep.subr.mxu0 0.0
    %147 = vmatpush1.msra.mxu0 0.0
    %148 = vmatprep.subr.mxu0 0.0
    %149 = vmatpush1.msra.mxu0 0.0
    %150 = vmatprep.subr.mxu0 0.0
    %151 = vmatpush1.msra.mxu0 0.0
    %152 = vmatprep.subr.mxu0 0.0
    %153 = vmatpush1.msra.mxu0 0.0
    %154 = vmatprep.subr.mxu0 0.0
    %155 = vmatpush1.msra.mxu0 0.0
    %156 = vmatprep.subr.mxu0 0.0
    %157 = vmatpush1.msra.mxu0 0.0
    %158 = vmatprep.subr.mxu0 0.0
    %159 = vmatpush1.msra.mxu0 0.0
    %160 = vmatprep.subr.mxu0 0.0
    %161 = vmatpush1.msra.mxu0 0.0
    %162 = vmatprep.subr.mxu0 0.0
    %163 = vmatpush1.msra.mxu0 0.0
    %164 = vmatprep.subr.mxu0 0.0
    %165 = vmatpush1.msra.mxu0 0.0
    %166 = vmatprep.subr.mxu0 0.0
    %167 = vmatpush1.msra.mxu0 0.0
    %168 = vmatprep.subr.mxu0 0.0
    %169 = vmatpush1.msra.mxu0 0.0
    %170 = vmatprep.subr.mxu0 0.0
    %171 = vmatpush1.msra.mxu0 0.0
    %172 = vmatprep.subr.mxu0 0.0
    %173 = vmatpush1.msra.mxu0 0.0
    %174 = vmatprep.subr.mxu0 0.0
    %175 = vmatpush1.msra.mxu0 0.0
    %176 = vmatprep.subr.mxu0 0.0
    %177 = vmatpush1.msra.mxu0 0.0
    %178 = vmatprep.mubr.f32.mxu0 0.0
    %179 = vmatmul.mubr.f32.gmra.mrb[0].mxu0 %v112
    %v180 = vpop.f32.mrb[0].mxu0
    %v181 = vadd.f32 0.0, %v180
    %v182 = vpop.f32.mrb[0].mxu0
    %183 = vdwg.mxu0
    %v192 = vrot.slane %v37, 7
    %v193 = vsel %vm99, %v192, %v36
    %v194 = vrot.slane %v38, 6
    %v195 = vsel %vm102, %v194, %v193
    %v196 = vrot.slane %v39, 5
    %v197 = vsel %vm105, %v196, %v195
    %v198 = vrot.slane %v40, 4
    %v199 = vsel %vm108, %v198, %v197
    %v200 = vrot.slane %v41, 3
    %v201 = vsel %vm111, %v200, %v199
    %v202 = vrot.slane %v42, 2
    %vm203 = vcmask 1046534
    %v204 = vsel %vm203, %v202, %v201
    %v205 = vrot.slane %v43, 1
    %vm206 = vcmask 1047559
    %v207 = vsel %vm206, %v205, %v204
    %209 = vmatprep.subr.mxu0 0.0
    %210 = vmatpush1.xpose.msra.mxu0 %v207
    %211 = vmatprep.subr.mxu0 0.0
    %212 = vmatpush1.xpose.msra.mxu0 0.0
    %213 = vmatprep.subr.mxu0 0.0
    %214 = vmatpush1.xpose.msra.mxu0 0.0
    %215 = vmatprep.subr.mxu0 0.0
    %216 = vmatpush1.xpose.msra.mxu0 0.0
    %217 = vmatprep.subr.mxu0 0.0
    %218 = vmatpush1.xpose.msra.mxu0 0.0
    %219 = vmatprep.subr.mxu0 0.0
    %220 = vmatpush1.xpose.msra.mxu0 0.0
    %221 = vmatprep.subr.mxu0 0.0
    %222 = vmatpush1.xpose.msra.mxu0 0.0
    %223 = vmatprep.subr.mxu0 0.0
    %224 = vmatpush1.xpose.msra.mxu0 0.0
    %225 = vmatprep.subr.mxu0 0.0
    %226 = vmatpush1.xpose.msra.mxu0 0.0
    %227 = vmatprep.subr.mxu0 0.0
    %228 = vmatpush1.xpose.msra.mxu0 0.0
    %229 = vmatprep.subr.mxu0 0.0
    %230 = vmatpush1.xpose.msra.mxu0 0.0
    %231 = vmatprep.subr.mxu0 0.0
    %232 = vmatpush1.xpose.msra.mxu0 0.0
    %233 = vmatprep.subr.mxu0 0.0
    %234 = vmatpush1.xpose.msra.mxu0 0.0
    %235 = vmatprep.subr.mxu0 0.0
    %236 = vmatpush1.xpose.msra.mxu0 0.0
    %237 = vmatprep.subr.mxu0 0.0
    %238 = vmatpush1.xpose.msra.mxu0 0.0
    %239 = vmatprep.subr.mxu0 0.0
    %240 = vmatpush1.xpose.msra.mxu0 0.0
    %241 = vmatprep.subr.mxu0 0.0
    %242 = vmatpush1.xpose.msra.mxu0 0.0
    %243 = vmatprep.subr.mxu0 0.0
    %244 = vmatpush1.xpose.msra.mxu0 0.0
    %245 = vmatprep.subr.mxu0 0.0
    %246 = vmatpush1.xpose.msra.mxu0 0.0
    %247 = vmatprep.subr.mxu0 0.0
    %248 = vmatpush1.xpose.msra.mxu0 0.0
    %249 = vmatprep.subr.mxu0 0.0
    %250 = vmatpush1.xpose.msra.mxu0 0.0
    %251 = vmatprep.subr.mxu0 0.0
    %252 = vmatpush1.xpose.msra.mxu0 0.0
    %253 = vmatprep.subr.mxu0 0.0
    %254 = vmatpush1.xpose.msra.mxu0 0.0
    %255 = vmatprep.subr.mxu0 0.0
    %256 = vmatpush1.xpose.msra.mxu0 0.0
    %257 = vmatprep.subr.mxu0 0.0
    %258 = vmatpush1.xpose.msra.mxu0 0.0
    %259 = vmatprep.subr.mxu0 0.0
    %260 = vmatpush1.xpose.msra.mxu0 0.0
    %261 = vmatprep.subr.mxu0 0.0
    %262 = vmatpush1.xpose.msra.mxu0 0.0
    %263 = vmatprep.subr.mxu0 0.0
    %264 = vmatpush1.xpose.msra.mxu0 0.0
    %265 = vmatprep.subr.mxu0 0.0
    %266 = vmatpush1.xpose.msra.mxu0 0.0
    %267 = vmatprep.subr.mxu0 0.0
    %268 = vmatpush1.xpose.msra.mxu0 0.0
    %269 = vmatprep.subr.mxu0 0.0
    %270 = vmatpush1.xpose.msra.mxu0 0.0
    %271 = vmatprep.subr.mxu0 0.0
    %272 = vmatpush1.xpose.msra.mxu0 0.0
    %273 = vmatprep.mubr.f32.mxu0 0.0
    %274 = vmatmul.mubr.f32.gmra.mrb[0].mxu0 %v181
    %v275 = vpop.f32.mrb[0].mxu0
    %v276 = vadd.f32 0.0, %v275
    %v277 = vpop.f32.mrb[0].mxu0
    %278 = vdwg.mxu0
    %v279 = vlaneseq
    %v280 = vand.u32 %v279, 127
    %s281 = sld [smem:[#allocation3]]
    %v282 = vstv %s281
    %vm283 = vcmp.lt.s32.totalorder %v280, %v282
    %v284 = vsel %vm283, %v276, -1e+30
    %vm285 = vcmask 62464
    %v286 = vsel %vm285, %v284, -inf
    %287 = vmax.xlane.f32.xlu0 %v286
    %v288 = vpop.xlane.xlu0 %287
    %v289 = vsub.f32 %v284, %v288
    %v290 = vmul.f32 %v289, 1.442695
    %v291 = vpow.pop %v290
    %v292 = vsel %vm285, %v291, 0.0
    %293 = vadd.xlane.f32.xlu0 %v292
    %v294 = vpop.xlane.xlu0 %293
    %v295 = vrcp.pop %v294
    %v296 = vmul.f32 %v291, %v295
    %vm297 = vcmask 64512
    %v299 = vsel %vm297, %v296, 0
    %301 = vmatprep.subr.mxu0 0.0
    %302 = vmatpush1.msra.mxu0 %v207
    %303 = vmatprep.subr.mxu0 0.0
    %304 = vmatpush1.msra.mxu0 0.0
    %305 = vmatprep.subr.mxu0 0.0
    %306 = vmatpush1.msra.mxu0 0.0
    %307 = vmatprep.subr.mxu0 0.0
    %308 = vmatpush1.msra.mxu0 0.0
    %309 = vmatprep.subr.mxu0 0.0
    %310 = vmatpush1.msra.mxu0 0.0
    %311 = vmatprep.subr.mxu0 0.0
    %312 = vmatpush1.msra.mxu0 0.0
    %313 = vmatprep.subr.mxu0 0.0
    %314 = vmatpush1.msra.mxu0 0.0
    %315 = vmatprep.subr.mxu0 0.0
    %316 = vmatpush1.msra.mxu0 0.0
    %317 = vmatprep.subr.mxu0 0.0
    %318 = vmatpush1.msra.mxu0 0.0
    %319 = vmatprep.subr.mxu0 0.0
    %320 = vmatpush1.msra.mxu0 0.0
    %321 = vmatprep.subr.mxu0 0.0
    %322 = vmatpush1.msra.mxu0 0.0
    %323 = vmatprep.subr.mxu0 0.0
    %324 = vmatpush1.msra.mxu0 0.0
    %325 = vmatprep.subr.mxu0 0.0
    %326 = vmatpush1.msra.mxu0 0.0
    %327 = vmatprep.subr.mxu0 0.0
    %328 = vmatpush1.msra.mxu0 0.0
    %329 = vmatprep.subr.mxu0 0.0
    %330 = vmatpush1.msra.mxu0 0.0
    %331 = vmatprep.subr.mxu0 0.0
    %332 = vmatpush1.msra.mxu0 0.0
    %333 = vmatprep.subr.mxu0 0.0
    %334 = vmatpush1.msra.mxu0 0.0
    %335 = vmatprep.subr.mxu0 0.0
    %336 = vmatpush1.msra.mxu0 0.0
    %337 = vmatprep.subr.mxu0 0.0
    %338 = vmatpush1.msra.mxu0 0.0
    %339 = vmatprep.subr.mxu0 0.0
    %340 = vmatpush1.msra.mxu0 0.0
    %341 = vmatprep.subr.mxu0 0.0
    %342 = vmatpush1.msra.mxu0 0.0
    %343 = vmatprep.subr.mxu0 0.0
    %344 = vmatpush1.msra.mxu0 0.0
    %345 = vmatprep.subr.mxu0 0.0
    %346 = vmatpush1.msra.mxu0 0.0
    %347 = vmatprep.subr.mxu0 0.0
    %348 = vmatpush1.msra.mxu0 0.0
    %349 = vmatprep.subr.mxu0 0.0
    %350 = vmatpush1.msra.mxu0 0.0
    %351 = vmatprep.subr.mxu0 0.0
    %352 = vmatpush1.msra.mxu0 0.0
    %353 = vmatprep.subr.mxu0 0.0
    %354 = vmatpush1.msra.mxu0 0.0
    %355 = vmatprep.subr.mxu0 0.0
    %356 = vmatpush1.msra.mxu0 0.0
    %357 = vmatprep.subr.mxu0 0.0
    %358 = vmatpush1.msra.mxu0 0.0
    %359 = vmatprep.subr.mxu0 0.0
    %360 = vmatpush1.msra.mxu0 0.0
    %361 = vmatprep.subr.mxu0 0.0
    %362 = vmatpush1.msra.mxu0 0.0
    %363 = vmatprep.subr.mxu0 0.0
    %364 = vmatpush1.msra.mxu0 0.0
    %365 = vmatprep.mubr.f32.mxu0 0.0
    %366 = vmatmul.mubr.f32.gmra.mrb[0].mxu0 %v299
    %v367 = vpop.f32.mrb[0].mxu0
    %v368 = vadd.f32 0.0, %v367
    %v369 = vpop.f32.mrb[0].mxu0
    %370 = vdwg.mxu0
    %371 = vmatprep.subr.mxu0 0.0
    %372 = vmatpush1.msra.mxu0 %v76
    %373 = vmatprep.subr.mxu0 0.0
    %374 = vmatpush1.msra.mxu0 %v77
    %375 = vmatprep.subr.mxu0 0.0
    %376 = vmatpush1.msra.mxu0 %v78
    %377 = vmatprep.subr.mxu0 0.0
    %378 = vmatpush1.msra.mxu0 %v79
    %379 = vmatprep.subr.mxu0 0.0
    %380 = vmatpush1.msra.mxu0 %v80
    %381 = vmatprep.subr.mxu0 0.0
    %382 = vmatpush1.msra.mxu0 %v81
    %383 = vmatprep.subr.mxu0 0.0
    %384 = vmatpush1.msra.mxu0 %v82
    %385 = vmatprep.subr.mxu0 0.0
    %386 = vmatpush1.msra.mxu0 %v83
    %387 = vmatprep.subr.mxu0 0.0
    %388 = vmatpush1.msra.mxu0 %v84
    %389 = vmatprep.subr.mxu0 0.0
    %390 = vmatpush1.msra.mxu0 %v85
    %391 = vmatprep.subr.mxu0 0.0
    %392 = vmatpush1.msra.mxu0 %v86
    %393 = vmatprep.subr.mxu0 0.0
    %394 = vmatpush1.msra.mxu0 %v87
    %395 = vmatprep.subr.mxu0 0.0
    %396 = vmatpush1.msra.mxu0 %v88
    %397 = vmatprep.subr.mxu0 0.0
    %398 = vmatpush1.msra.mxu0 %v89
    %399 = vmatprep.subr.mxu0 0.0
    %400 = vmatpush1.msra.mxu0 %v90
    %401 = vmatprep.subr.mxu0 0.0
    %402 = vmatpush1.msra.mxu0 %v91
    %403 = vmatprep.subr.mxu0 0.0
    %404 = vmatpush1.msra.mxu0 0.0
    %405 = vmatprep.subr.mxu0 0.0
    %406 = vmatpush1.msra.mxu0 0.0
    %407 = vmatprep.subr.mxu0 0.0
    %408 = vmatpush1.msra.mxu0 0.0
    %409 = vmatprep.subr.mxu0 0.0
    %410 = vmatpush1.msra.mxu0 0.0
    %411 = vmatprep.subr.mxu0 0.0
    %412 = vmatpush1.msra.mxu0 0.0
    %413 = vmatprep.subr.mxu0 0.0
    %414 = vmatpush1.msra.mxu0 0.0
    %415 = vmatprep.subr.mxu0 0.0
    %416 = vmatpush1.msra.mxu0 0.0
    %417 = vmatprep.subr.mxu0 0.0
    %418 = vmatpush1.msra.mxu0 0.0
    %419 = vmatprep.subr.mxu0 0.0
    %420 = vmatpush1.msra.mxu0 0.0
    %421 = vmatprep.subr.mxu0 0.0
    %422 = vmatpush1.msra.mxu0 0.0
    %423 = vmatprep.subr.mxu0 0.0
    %424 = vmatpush1.msra.mxu0 0.0
    %425 = vmatprep.subr.mxu0 0.0
    %426 = vmatpush1.msra.mxu0 0.0
    %427 = vmatprep.subr.mxu0 0.0
    %428 = vmatpush1.msra.mxu0 0.0
    %429 = vmatprep.subr.mxu0 0.0
    %430 = vmatpush1.msra.mxu0 0.0
    %431 = vmatprep.subr.mxu0 0.0
    %432 = vmatpush1.msra.mxu0 0.0
    %433 = vmatprep.subr.mxu0 0.0
    %434 = vmatpush1.msra.mxu0 0.0
    %435 = vmatprep.mubr.f32.mxu0 0.0
    %436 = vmatmul.mubr.f32.gmra.mrb[0].mxu0 %v112
    %v437 = vpop.f32.mrb[0].mxu0
    %v438 = vadd.f32 0.0, %v437
    %v439 = vpop.f32.mrb[0].mxu0
    %440 = vdwg.mxu0
    %441 = vmatprep.subr.mxu0 0.0
    %442 = vmatpush1.msra.mxu0 %v60
    %443 = vmatprep.subr.mxu0 0.0
    %444 = vmatpush1.msra.mxu0 %v61
    %445 = vmatprep.subr.mxu0 0.0
    %446 = vmatpush1.msra.mxu0 %v62
    %447 = vmatprep.subr.mxu0 0.0
    %448 = vmatpush1.msra.mxu0 %v63
    %449 = vmatprep.subr.mxu0 0.0
    %450 = vmatpush1.msra.mxu0 %v64
    %451 = vmatprep.subr.mxu0 0.0
    %452 = vmatpush1.msra.mxu0 %v65
    %453 = vmatprep.subr.mxu0 0.0
    %454 = vmatpush1.msra.mxu0 %v66
    %455 = vmatprep.subr.mxu0 0.0
    %456 = vmatpush1.msra.mxu0 %v67
    %457 = vmatprep.subr.mxu0 0.0
    %458 = vmatpush1.msra.mxu0 %v68
    %459 = vmatprep.subr.mxu0 0.0
    %460 = vmatpush1.msra.mxu0 %v69
    %461 = vmatprep.subr.mxu0 0.0
    %462 = vmatpush1.msra.mxu0 %v70
    %463 = vmatprep.subr.mxu0 0.0
    %464 = vmatpush1.msra.mxu0 %v71
    %465 = vmatprep.subr.mxu0 0.0
    %466 = vmatpush1.msra.mxu0 %v72
    %467 = vmatprep.subr.mxu0 0.0
    %468 = vmatpush1.msra.mxu0 %v73
    %469 = vmatprep.subr.mxu0 0.0
    %470 = vmatpush1.msra.mxu0 %v74
    %471 = vmatprep.subr.mxu0 0.0
    %472 = vmatpush1.msra.mxu0 %v75
    %473 = vmatprep.subr.mxu0 0.0
    %474 = vmatpush1.msra.mxu0 0.0
    %475 = vmatprep.subr.mxu0 0.0
    %476 = vmatpush1.msra.mxu0 0.0
    %477 = vmatprep.subr.mxu0 0.0
    %478 = vmatpush1.msra.mxu0 0.0
    %479 = vmatprep.subr.mxu0 0.0
    %480 = vmatpush1.msra.mxu0 0.0
    %481 = vmatprep.subr.mxu0 0.0
    %482 = vmatpush1.msra.mxu0 0.0
    %483 = vmatprep.subr.mxu0 0.0
    %484 = vmatpush1.msra.mxu0 0.0
    %485 = vmatprep.subr.mxu0 0.0
    %486 = vmatpush1.msra.mxu0 0.0
    %487 = vmatprep.subr.mxu0 0.0
    %488 = vmatpush1.msra.mxu0 0.0
    %489 = vmatprep.subr.mxu0 0.0
    %490 = vmatpush1.msra.mxu0 0.0
    %491 = vmatprep.subr.mxu0 0.0
    %492 = vmatpush1.msra.mxu0 0.0
    %493 = vmatprep.subr.mxu0 0.0
    %494 = vmatpush1.msra.mxu0 0.0
    %495 = vmatprep.subr.mxu0 0.0
    %496 = vmatpush1.msra.mxu0 0.0
    %497 = vmatprep.subr.mxu0 0.0
    %498 = vmatpush1.msra.mxu0 0.0
    %499 = vmatprep.subr.mxu0 0.0
    %500 = vmatpush1.msra.mxu0 0.0
    %501 = vmatprep.subr.mxu0 0.0
    %502 = vmatpush1.msra.mxu0 0.0
    %503 = vmatprep.subr.mxu0 0.0
    %504 = vmatpush1.msra.mxu0 0.0
    %505 = vmatprep.mubr.f32.mxu0 0.0
    %506 = vmatmul.mubr.f32.gmra.mrb[0].mxu0 %v368
    %v507 = vpop.f32.mrb[0].mxu0
    %v508 = vadd.f32 %v438, %v507
    %v509 = vpop.f32.mrb[0].mxu0
    %510 = vdwg.mxu0
    %v511 = vtanh.pop %v508
    %v512 = vrot.slane %v30, 1
    %v513 = vsel %vm99, %v31, %v512
    %v514 = vrot.slane %v32, 7
    %v515 = vsel %vm102, %v514, %v513
    %v516 = vrot.slane %v33, 6
    %v517 = vsel %vm105, %v516, %v515
    %v518 = vrot.slane %v34, 5
    %v519 = vsel %vm108, %v518, %v517
    %v520 = vrot.slane %v35, 4
    %v521 = vsel %vm111, %v520, %v519
    %523 = vmatprep.subr.mxu0 0.0
    %524 = vmatpush1.msra.mxu0 %v44
    %525 = vmatprep.subr.mxu0 0.0
    %526 = vmatpush1.msra.mxu0 %v45
    %527 = vmatprep.subr.mxu0 0.0
    %528 = vmatpush1.msra.mxu0 %v46
    %529 = vmatprep.subr.mxu0 0.0
    %530 = vmatpush1.msra.mxu0 %v47
    %531 = vmatprep.subr.mxu0 0.0
    %532 = vmatpush1.msra.mxu0 %v48
    %533 = vmatprep.subr.mxu0 0.0
    %534 = vmatpush1.msra.mxu0 %v49
    %535 = vmatprep.subr.mxu0 0.0
    %536 = vmatpush1.msra.mxu0 %v50
    %537 = vmatprep.subr.mxu0 0.0
    %538 = vmatpush1.msra.mxu0 %v51
    %539 = vmatprep.subr.mxu0 0.0
    %540 = vmatpush1.msra.mxu0 %v52
    %541 = vmatprep.subr.mxu0 0.0
    %542 = vmatpush1.msra.mxu0 %v53
    %543 = vmatprep.subr.mxu0 0.0
    %544 = vmatpush1.msra.mxu0 %v54
    %545 = vmatprep.subr.mxu0 0.0
    %546 = vmatpush1.msra.mxu0 %v55
    %547 = vmatprep.subr.mxu0 0.0
    %548 = vmatpush1.msra.mxu0 %v56
    %549 = vmatprep.subr.mxu0 0.0
    %550 = vmatpush1.msra.mxu0 %v57
    %551 = vmatprep.subr.mxu0 0.0
    %552 = vmatpush1.msra.mxu0 %v58
    %553 = vmatprep.subr.mxu0 0.0
    %554 = vmatpush1.msra.mxu0 %v59
    %555 = vmatprep.subr.mxu0 0.0
    %556 = vmatpush1.msra.mxu0 0.0
    %557 = vmatprep.subr.mxu0 0.0
    %558 = vmatpush1.msra.mxu0 0.0
    %559 = vmatprep.subr.mxu0 0.0
    %560 = vmatpush1.msra.mxu0 0.0
    %561 = vmatprep.subr.mxu0 0.0
    %562 = vmatpush1.msra.mxu0 0.0
    %563 = vmatprep.subr.mxu0 0.0
    %564 = vmatpush1.msra.mxu0 0.0
    %565 = vmatprep.subr.mxu0 0.0
    %566 = vmatpush1.msra.mxu0 0.0
    %567 = vmatprep.subr.mxu0 0.0
    %568 = vmatpush1.msra.mxu0 0.0
    %569 = vmatprep.subr.mxu0 0.0
    %570 = vmatpush1.msra.mxu0 0.0
    %571 = vmatprep.subr.mxu0 0.0
    %572 = vmatpush1.msra.mxu0 0.0
    %573 = vmatprep.subr.mxu0 0.0
    %574 = vmatpush1.msra.mxu0 0.0
    %575 = vmatprep.subr.mxu0 0.0
    %576 = vmatpush1.msra.mxu0 0.0
    %577 = vmatprep.subr.mxu0 0.0
    %578 = vmatpush1.msra.mxu0 0.0
    %579 = vmatprep.subr.mxu0 0.0
    %580 = vmatpush1.msra.mxu0 0.0
    %581 = vmatprep.subr.mxu0 0.0
    %582 = vmatpush1.msra.mxu0 0.0
    %583 = vmatprep.subr.mxu0 0.0
    %584 = vmatpush1.msra.mxu0 0.0
    %585 = vmatprep.subr.mxu0 0.0
    %586 = vmatpush1.msra.mxu0 0.0
    %587 = vmatprep.mubr.f32.mxu0 0.0
    %588 = vmatmul.mubr.f32.gmra.mrb[0].mxu0 %v521
    %v589 = vpop.f32.mrb[0].mxu0
    %v590 = vadd.f32 0.0, %v589
    %v591 = vpop.f32.mrb[0].mxu0
    %592 = vdwg.mxu0
    %v593 = vrot.slane %v36, 1
    %v594 = vsel %vm99, %v37, %v593
    %v595 = vrot.slane %v38, 7
    %v596 = vsel %vm102, %v595, %v594
    %v597 = vrot.slane %v39, 6
    %v598 = vsel %vm105, %v597, %v596
    %v599 = vrot.slane %v40, 5
    %v600 = vsel %vm108, %v599, %v598
    %v601 = vrot.slane %v41, 4
    %v602 = vsel %vm111, %v601, %v600
    %v603 = vrot.slane %v42, 3
    %v604 = vsel %vm203, %v603, %v602
    %v605 = vrot.slane %v43, 2
    %v606 = vsel %vm206, %v605, %v604
    %608 = vmatprep.subr.mxu0 0.0
    %609 = vmatpush1.xpose.msra.mxu0 %v606
    %610 = vmatprep.subr.mxu0 0.0
    %611 = vmatpush1.xpose.msra.mxu0 0.0
    %612 = vmatprep.subr.mxu0 0.0
    %613 = vmatpush1.xpose.msra.mxu0 0.0
    %614 = vmatprep.subr.mxu0 0.0
    %615 = vmatpush1.xpose.msra.mxu0 0.0
    %616 = vmatprep.subr.mxu0 0.0
    %617 = vmatpush1.xpose.msra.mxu0 0.0
    %618 = vmatprep.subr.mxu0 0.0
    %619 = vmatpush1.xpose.msra.mxu0 0.0
    %620 = vmatprep.subr.mxu0 0.0
    %621 = vmatpush1.xpose.msra.mxu0 0.0
    %622 = vmatprep.subr.mxu0 0.0
    %623 = vmatpush1.xpose.msra.mxu0 0.0
    %624 = vmatprep.subr.mxu0 0.0
    %625 = vmatpush1.xpose.msra.mxu0 0.0
    %626 = vmatprep.subr.mxu0 0.0
    %627 = vmatpush1.xpose.msra.mxu0 0.0
    %628 = vmatprep.subr.mxu0 0.0
    %629 = vmatpush1.xpose.msra.mxu0 0.0
    %630 = vmatprep.subr.mxu0 0.0
    %631 = vmatpush1.xpose.msra.mxu0 0.0
    %632 = vmatprep.subr.mxu0 0.0
    %633 = vmatpush1.xpose.msra.mxu0 0.0
    %634 = vmatprep.subr.mxu0 0.0
    %635 = vmatpush1.xpose.msra.mxu0 0.0
    %636 = vmatprep.subr.mxu0 0.0
    %637 = vmatpush1.xpose.msra.mxu0 0.0
    %638 = vmatprep.subr.mxu0 0.0
    %639 = vmatpush1.xpose.msra.mxu0 0.0
    %640 = vmatprep.subr.mxu0 0.0
    %641 = vmatpush1.xpose.msra.mxu0 0.0
    %642 = vmatprep.subr.mxu0 0.0
    %643 = vmatpush1.xpose.msra.mxu0 0.0
    %644 = vmatprep.subr.mxu0 0.0
    %645 = vmatpush1.xpose.msra.mxu0 0.0
    %646 = vmatprep.subr.mxu0 0.0
    %647 = vmatpush1.xpose.msra.mxu0 0.0
    %648 = vmatprep.subr.mxu0 0.0
    %649 = vmatpush1.xpose.msra.mxu0 0.0
    %650 = vmatprep.subr.mxu0 0.0
    %651 = vmatpush1.xpose.msra.mxu0 0.0
    %652 = vmatprep.subr.mxu0 0.0
    %653 = vmatpush1.xpose.msra.mxu0 0.0
    %654 = vmatprep.subr.mxu0 0.0
    %655 = vmatpush1.xpose.msra.mxu0 0.0
    %656 = vmatprep.subr.mxu0 0.0
    %657 = vmatpush1.xpose.msra.mxu0 0.0
    %658 = vmatprep.subr.mxu0 0.0
    %659 = vmatpush1.xpose.msra.mxu0 0.0
    %660 = vmatprep.subr.mxu0 0.0
    %661 = vmatpush1.xpose.msra.mxu0 0.0
    %662 = vmatprep.subr.mxu0 0.0
    %663 = vmatpush1.xpose.msra.mxu0 0.0
    %664 = vmatprep.subr.mxu0 0.0
    %665 = vmatpush1.xpose.msra.mxu0 0.0
    %666 = vmatprep.subr.mxu0 0.0
    %667 = vmatpush1.xpose.msra.mxu0 0.0
    %668 = vmatprep.subr.mxu0 0.0
    %669 = vmatpush1.xpose.msra.mxu0 0.0
    %670 = vmatprep.subr.mxu0 0.0
    %671 = vmatpush1.xpose.msra.mxu0 0.0
    %672 = vmatprep.mubr.f32.mxu0 0.0
    %673 = vmatmul.mubr.f32.gmra.mrb[0].mxu0 %v590
    %v674 = vpop.f32.mrb[0].mxu0
    %v675 = vadd.f32 0.0, %v674
    %v676 = vpop.f32.mrb[0].mxu0
    %677 = vdwg.mxu0
    %s678 = sld [smem:[#allocation3 + $0x1]]
    %v679 = vstv %s678
    %vm680 = vcmp.lt.s32.totalorder %v280, %v679
    %v681 = vsel %vm680, %v675, -1e+30
    %v682 = vsel %vm285, %v681, -inf
    %683 = vmax.xlane.f32.xlu0 %v682
    %v684 = vpop.xlane.xlu0 %683
    %v685 = vsub.f32 %v681, %v684
    %v686 = vmul.f32 %v685, 1.442695
    %v687 = vpow.pop %v686
    %v688 = vsel %vm285, %v687, 0.0
    %689 = vadd.xlane.f32.xlu0 %v688
    %v690 = vpop.xlane.xlu0 %689
    %v691 = vrcp.pop %v690
    %v692 = vmul.f32 %v687, %v691
    %v694 = vsel %vm297, %v692, 0
    %696 = vmatprep.subr.mxu0 0.0
    %697 = vmatpush1.msra.mxu0 %v606
    %698 = vmatprep.subr.mxu0 0.0
    %699 = vmatpush1.msra.mxu0 0.0
    %700 = vmatprep.subr.mxu0 0.0
    %701 = vmatpush1.msra.mxu0 0.0
    %702 = vmatprep.subr.mxu0 0.0
    %703 = vmatpush1.msra.mxu0 0.0
    %704 = vmatprep.subr.mxu0 0.0
    %705 = vmatpush1.msra.mxu0 0.0
    %706 = vmatprep.subr.mxu0 0.0
    %707 = vmatpush1.msra.mxu0 0.0
    %708 = vmatprep.subr.mxu0 0.0
    %709 = vmatpush1.msra.mxu0 0.0
    %710 = vmatprep.subr.mxu0 0.0
    %711 = vmatpush1.msra.mxu0 0.0
    %712 = vmatprep.subr.mxu0 0.0
    %713 = vmatpush1.msra.mxu0 0.0
    %714 = vmatprep.subr.mxu0 0.0
    %715 = vmatpush1.msra.mxu0 0.0
    %716 = vmatprep.subr.mxu0 0.0
    %717 = vmatpush1.msra.mxu0 0.0
    %718 = vmatprep.subr.mxu0 0.0
    %719 = vmatpush1.msra.mxu0 0.0
    %720 = vmatprep.subr.mxu0 0.0
    %721 = vmatpush1.msra.mxu0 0.0
    %722 = vmatprep.subr.mxu0 0.0
    %723 = vmatpush1.msra.mxu0 0.0
    %724 = vmatprep.subr.mxu0 0.0
    %725 = vmatpush1.msra.mxu0 0.0
    %726 = vmatprep.subr.mxu0 0.0
    %727 = vmatpush1.msra.mxu0 0.0
    %728 = vmatprep.subr.mxu0 0.0
    %729 = vmatpush1.msra.mxu0 0.0
    %730 = vmatprep.subr.mxu0 0.0
    %731 = vmatpush1.msra.mxu0 0.0
    %732 = vmatprep.subr.mxu0 0.0
    %733 = vmatpush1.msra.mxu0 0.0
    %734 = vmatprep.subr.mxu0 0.0
    %735 = vmatpush1.msra.mxu0 0.0
    %736 = vmatprep.subr.mxu0 0.0
    %737 = vmatpush1.msra.mxu0 0.0
    %738 = vmatprep.subr.mxu0 0.0
    %739 = vmatpush1.msra.mxu0 0.0
    %740 = vmatprep.subr.mxu0 0.0
    %741 = vmatpush1.msra.mxu0 0.0
    %742 = vmatprep.subr.mxu0 0.0
    %743 = vmatpush1.msra.mxu0 0.0
    %744 = vmatprep.subr.mxu0 0.0
    %745 = vmatpush1.msra.mxu0 0.0
    %746 = vmatprep.subr.mxu0 0.0
    %747 = vmatpush1.msra.mxu0 0.0
    %748 = vmatprep.subr.mxu0 0.0
    %749 = vmatpush1.msra.mxu0 0.0
    %750 = vmatprep.subr.mxu0 0.0
    %751 = vmatpush1.msra.mxu0 0.0
    %752 = vmatprep.subr.mxu0 0.0
    %753 = vmatpush1.msra.mxu0 0.0
    %754 = vmatprep.subr.mxu0 0.0
    %755 = vmatpush1.msra.mxu0 0.0
    %756 = vmatprep.subr.mxu0 0.0
    %757 = vmatpush1.msra.mxu0 0.0
    %758 = vmatprep.subr.mxu0 0.0
    %759 = vmatpush1.msra.mxu0 0.0
    %760 = vmatprep.mubr.f32.mxu0 0.0
    %761 = vmatmul.mubr.f32.gmra.mrb[0].mxu0 %v694
    %v762 = vpop.f32.mrb[0].mxu0
    %v763 = vadd.f32 0.0, %v762
    %v764 = vpop.f32.mrb[0].mxu0
    %765 = vdwg.mxu0
    %766 = vmatprep.subr.mxu0 0.0
    %767 = vmatpush1.msra.mxu0 %v76
    %768 = vmatprep.subr.mxu0 0.0
    %769 = vmatpush1.msra.mxu0 %v77
    %770 = vmatprep.subr.mxu0 0.0
    %771 = vmatpush1.msra.mxu0 %v78
    %772 = vmatprep.subr.mxu0 0.0
    %773 = vmatpush1.msra.mxu0 %v79
    %774 = vmatprep.subr.mxu0 0.0
    %775 = vmatpush1.msra.mxu0 %v80
    %776 = vmatprep.subr.mxu0 0.0
    %777 = vmatpush1.msra.mxu0 %v81
    %778 = vmatprep.subr.mxu0 0.0
    %779 = vmatpush1.msra.mxu0 %v82
    %780 = vmatprep.subr.mxu0 0.0
    %781 = vmatpush1.msra.mxu0 %v83
    %782 = vmatprep.subr.mxu0 0.0
    %783 = vmatpush1.msra.mxu0 %v84
    %784 = vmatprep.subr.mxu0 0.0
    %785 = vmatpush1.msra.mxu0 %v85
    %786 = vmatprep.subr.mxu0 0.0
    %787 = vmatpush1.msra.mxu0 %v86
    %788 = vmatprep.subr.mxu0 0.0
    %789 = vmatpush1.msra.mxu0 %v87
    %790 = vmatprep.subr.mxu0 0.0
    %791 = vmatpush1.msra.mxu0 %v88
    %792 = vmatprep.subr.mxu0 0.0
    %793 = vmatpush1.msra.mxu0 %v89
    %794 = vmatprep.subr.mxu0 0.0
    %795 = vmatpush1.msra.mxu0 %v90
    %796 = vmatprep.subr.mxu0 0.0
    %797 = vmatpush1.msra.mxu0 %v91
    %798 = vmatprep.subr.mxu0 0.0
    %799 = vmatpush1.msra.mxu0 0.0
    %800 = vmatprep.subr.mxu0 0.0
    %801 = vmatpush1.msra.mxu0 0.0
    %802 = vmatprep.subr.mxu0 0.0
    %803 = vmatpush1.msra.mxu0 0.0
    %804 = vmatprep.subr.mxu0 0.0
    %805 = vmatpush1.msra.mxu0 0.0
    %806 = vmatprep.subr.mxu0 0.0
    %807 = vmatpush1.msra.mxu0 0.0
    %808 = vmatprep.subr.mxu0 0.0
    %809 = vmatpush1.msra.mxu0 0.0
    %810 = vmatprep.subr.mxu0 0.0
    %811 = vmatpush1.msra.mxu0 0.0
    %812 = vmatprep.subr.mxu0 0.0
    %813 = vmatpush1.msra.mxu0 0.0
    %814 = vmatprep.subr.mxu0 0.0
    %815 = vmatpush1.msra.mxu0 0.0
    %816 = vmatprep.subr.mxu0 0.0
    %817 = vmatpush1.msra.mxu0 0.0
    %818 = vmatprep.subr.mxu0 0.0
    %819 = vmatpush1.msra.mxu0 0.0
    %820 = vmatprep.subr.mxu0 0.0
    %821 = vmatpush1.msra.mxu0 0.0
    %822 = vmatprep.subr.mxu0 0.0
    %823 = vmatpush1.msra.mxu0 0.0
    %824 = vmatprep.subr.mxu0 0.0
    %825 = vmatpush1.msra.mxu0 0.0
    %826 = vmatprep.subr.mxu0 0.0
    %827 = vmatpush1.msra.mxu0 0.0
    %828 = vmatprep.subr.mxu0 0.0
    %829 = vmatpush1.msra.mxu0 0.0
    %830 = vmatprep.mubr.f32.mxu0 0.0
    %831 = vmatmul.mubr.f32.gmra.mrb[0].mxu0 %v521
    %v832 = vpop.f32.mrb[0].mxu0
    %v833 = vadd.f32 0.0, %v832
    %v834 = vpop.f32.mrb[0].mxu0
    %835 = vdwg.mxu0
    %836 = vmatprep.subr.mxu0 0.0
    %837 = vmatpush1.msra.mxu0 %v60
    %838 = vmatprep.subr.mxu0 0.0
    %839 = vmatpush1.msra.mxu0 %v61
    %840 = vmatprep.subr.mxu0 0.0
    %841 = vmatpush1.msra.mxu0 %v62
    %842 = vmatprep.subr.mxu0 0.0
    %843 = vmatpush1.msra.mxu0 %v63
    %844 = vmatprep.subr.mxu0 0.0
    %845 = vmatpush1.msra.mxu0 %v64
    %846 = vmatprep.subr.mxu0 0.0
    %847 = vmatpush1.msra.mxu0 %v65
    %848 = vmatprep.subr.mxu0 0.0
    %849 = vmatpush1.msra.mxu0 %v66
    %850 = vmatprep.subr.mxu0 0.0
    %851 = vmatpush1.msra.mxu0 %v67
    %852 = vmatprep.subr.mxu0 0.0
    %853 = vmatpush1.msra.mxu0 %v68
    %854 = vmatprep.subr.mxu0 0.0
    %855 = vmatpush1.msra.mxu0 %v69
    %856 = vmatprep.subr.mxu0 0.0
    %857 = vmatpush1.msra.mxu0 %v70
    %858 = vmatprep.subr.mxu0 0.0
    %859 = vmatpush1.msra.mxu0 %v71
    %860 = vmatprep.subr.mxu0 0.0
    %861 = vmatpush1.msra.mxu0 %v72
    %862 = vmatprep.subr.mxu0 0.0
    %863 = vmatpush1.msra.mxu0 %v73
    %864 = vmatprep.subr.mxu0 0.0
    %865 = vmatpush1.msra.mxu0 %v74
    %866 = vmatprep.subr.mxu0 0.0
    %867 = vmatpush1.msra.mxu0 %v75
    %868 = vmatprep.subr.mxu0 0.0
    %869 = vmatpush1.msra.mxu0 0.0
    %870 = vmatprep.subr.mxu0 0.0
    %871 = vmatpush1.msra.mxu0 0.0
    %872 = vmatprep.subr.mxu0 0.0
    %873 = vmatpush1.msra.mxu0 0.0
    %874 = vmatprep.subr.mxu0 0.0
    %875 = vmatpush1.msra.mxu0 0.0
    %876 = vmatprep.subr.mxu0 0.0
    %877 = vmatpush1.msra.mxu0 0.0
    %878 = vmatprep.subr.mxu0 0.0
    %879 = vmatpush1.msra.mxu0 0.0
    %880 = vmatprep.subr.mxu0 0.0
    %881 = vmatpush1.msra.mxu0 0.0
    %882 = vmatprep.subr.mxu0 0.0
    %883 = vmatpush1.msra.mxu0 0.0
    %884 = vmatprep.subr.mxu0 0.0
    %885 = vmatpush1.msra.mxu0 0.0
    %886 = vmatprep.subr.mxu0 0.0
    %887 = vmatpush1.msra.mxu0 0.0
    %888 = vmatprep.subr.mxu0 0.0
    %889 = vmatpush1.msra.mxu0 0.0
    %890 = vmatprep.subr.mxu0 0.0
    %891 = vmatpush1.msra.mxu0 0.0
    %892 = vmatprep.subr.mxu0 0.0
    %893 = vmatpush1.msra.mxu0 0.0
    %894 = vmatprep.subr.mxu0 0.0
    %895 = vmatpush1.msra.mxu0 0.0
    %896 = vmatprep.subr.mxu0 0.0
    %897 = vmatpush1.msra.mxu0 0.0
    %898 = vmatprep.subr.mxu0 0.0
    %899 = vmatpush1.msra.mxu0 0.0
    %900 = vmatprep.mubr.f32.mxu0 0.0
    %901 = vmatmul.mubr.f32.gmra.mrb[0].mxu0 %v763
    %v902 = vpop.f32.mrb[0].mxu0
    %v903 = vadd.f32 %v833, %v902
    %v904 = vpop.f32.mrb[0].mxu0
    %905 = vdwg.mxu0
    %v906 = vtanh.pop %v903
    %v907 = vrot.slane %v30, 2
    %v908 = vrot.slane %v31, 1
    %v909 = vsel %vm99, %v908, %v907
    %v910 = vsel %vm102, %v32, %v909
    %v911 = vrot.slane %v33, 7
    %v912 = vsel %vm105, %v911, %v910
    %v913 = vrot.slane %v34, 6
    %v914 = vsel %vm108, %v913, %v912
    %v915 = vrot.slane %v35, 5
    %v916 = vsel %vm111, %v915, %v914
    %918 = vmatprep.subr.mxu0 0.0
    %919 = vmatpush1.msra.mxu0 %v44
    %920 = vmatprep.subr.mxu0 0.0
    %921 = vmatpush1.msra.mxu0 %v45
    %922 = vmatprep.subr.mxu0 0.0
    %923 = vmatpush1.msra.mxu0 %v46
    %924 = vmatprep.subr.mxu0 0.0
    %925 = vmatpush1.msra.mxu0 %v47
    %926 = vmatprep.subr.mxu0 0.0
    %927 = vmatpush1.msra.mxu0 %v48
    %928 = vmatprep.subr.mxu0 0.0
    %929 = vmatpush1.msra.mxu0 %v49
    %930 = vmatprep.subr.mxu0 0.0
    %931 = vmatpush1.msra.mxu0 %v50
    %932 = vmatprep.subr.mxu0 0.0
    %933 = vmatpush1.msra.mxu0 %v51
    %934 = vmatprep.subr.mxu0 0.0
    %935 = vmatpush1.msra.mxu0 %v52
    %936 = vmatprep.subr.mxu0 0.0
    %937 = vmatpush1.msra.mxu0 %v53
    %938 = vmatprep.subr.mxu0 0.0
    %939 = vmatpush1.msra.mxu0 %v54
    %940 = vmatprep.subr.mxu0 0.0
    %941 = vmatpush1.msra.mxu0 %v55
    %942 = vmatprep.subr.mxu0 0.0
    %943 = vmatpush1.msra.mxu0 %v56
    %944 = vmatprep.subr.mxu0 0.0
    %945 = vmatpush1.msra.mxu0 %v57
    %946 = vmatprep.subr.mxu0 0.0
    %947 = vmatpush1.msra.mxu0 %v58
    %948 = vmatprep.subr.mxu0 0.0
    %949 = vmatpush1.msra.mxu0 %v59
    %950 = vmatprep.subr.mxu0 0.0
    %951 = vmatpush1.msra.mxu0 0.0
    %952 = vmatprep.subr.mxu0 0.0
    %953 = vmatpush1.msra.mxu0 0.0
    %954 = vmatprep.subr.mxu0 0.0
    %955 = vmatpush1.msra.mxu0 0.0
    %956 = vmatprep.subr.mxu0 0.0
    %957 = vmatpush1.msra.mxu0 0.0
    %958 = vmatprep.subr.mxu0 0.0
    %959 = vmatpush1.msra.mxu0 0.0
    %960 = vmatprep.subr.mxu0 0.0
    %961 = vmatpush1.msra.mxu0 0.0
    %962 = vmatprep.subr.mxu0 0.0
    %963 = vmatpush1.msra.mxu0 0.0
    %964 = vmatprep.subr.mxu0 0.0
    %965 = vmatpush1.msra.mxu0 0.0
    %966 = vmatprep.subr.mxu0 0.0
    %967 = vmatpush1.msra.mxu0 0.0
    %968 = vmatprep.subr.mxu0 0.0
    %969 = vmatpush1.msra.mxu0 0.0
    %970 = vmatprep.subr.mxu0 0.0
    %971 = vmatpush1.msra.mxu0 0.0
    %972 = vmatprep.subr.mxu0 0.0
    %973 = vmatpush1.msra.mxu0 0.0
    %974 = vmatprep.subr.mxu0 0.0
    %975 = vmatpush1.msra.mxu0 0.0
    %976 = vmatprep.subr.mxu0 0.0
    %977 = vmatpush1.msra.mxu0 0.0
    %978 = vmatprep.subr.mxu0 0.0
    %979 = vmatpush1.msra.mxu0 0.0
    %980 = vmatprep.subr.mxu0 0.0
    %981 = vmatpush1.msra.mxu0 0.0
    %982 = vmatprep.mubr.f32.mxu0 0.0
    %983 = vmatmul.mubr.f32.gmra.mrb[0].mxu0 %v916
    %v984 = vpop.f32.mrb[0].mxu0
    %v985 = vadd.f32 0.0, %v984
    %v986 = vpop.f32.mrb[0].mxu0
    %987 = vdwg.mxu0
    %v988 = vrot.slane %v36, 2
    %v989 = vrot.slane %v37, 1
    %v990 = vsel %vm99, %v989, %v988
    %v991 = vsel %vm102, %v38, %v990
    %v992 = vrot.slane %v39, 7
    %v993 = vsel %vm105, %v992, %v991
    %v994 = vrot.slane %v40, 6
    %v995 = vsel %vm108, %v994, %v993
    %v996 = vrot.slane %v41, 5
    %v997 = vsel %vm111, %v996, %v995
    %v998 = vrot.slane %v42, 4
    %v999 = vsel %vm203, %v998, %v997
    %v1000 = vrot.slane %v43, 3
    %v1001 = vsel %vm206, %v1000, %v999
    %1003 = vmatprep.subr.mxu0 0.0
    %1004 = vmatpush1.xpose.msra.mxu0 %v1001
    %1005 = vmatprep.subr.mxu0 0.0
    %1006 = vmatpush1.xpose.msra.mxu0 0.0
    %1007 = vmatprep.subr.mxu0 0.0
    %1008 = vmatpush1.xpose.msra.mxu0 0.0
    %1009 = vmatprep.subr.mxu0 0.0
    %1010 = vmatpush1.xpose.msra.mxu0 0.0
    %1011 = vmatprep.subr.mxu0 0.0
    %1012 = vmatpush1.xpose.msra.mxu0 0.0
    %1013 = vmatprep.subr.mxu0 0.0
    %1014 = vmatpush1.xpose.msra.mxu0 0.0
    %1015 = vmatprep.subr.mxu0 0.0
    %1016 = vmatpush1.xpose.msra.mxu0 0.0
    %1017 = vmatprep.subr.mxu0 0.0
    %1018 = vmatpush1.xpose.msra.mxu0 0.0
    %1019 = vmatprep.subr.mxu0 0.0
    %1020 = vmatpush1.xpose.msra.mxu0 0.0
    %1021 = vmatprep.subr.mxu0 0.0
    %1022 = vmatpush1.xpose.msra.mxu0 0.0
    %1023 = vmatprep.subr.mxu0 0.0
    %1024 = vmatpush1.xpose.msra.mxu0 0.0
    %1025 = vmatprep.subr.mxu0 0.0
    %1026 = vmatpush1.xpose.msra.mxu0 0.0
    %1027 = vmatprep.subr.mxu0 0.0
    %1028 = vmatpush1.xpose.msra.mxu0 0.0
    %1029 = vmatprep.subr.mxu0 0.0
    %1030 = vmatpush1.xpose.msra.mxu0 0.0
    %1031 = vmatprep.subr.mxu0 0.0
    %1032 = vmatpush1.xpose.msra.mxu0 0.0
    %1033 = vmatprep.subr.mxu0 0.0
    %1034 = vmatpush1.xpose.msra.mxu0 0.0
    %1035 = vmatprep.subr.mxu0 0.0
    %1036 = vmatpush1.xpose.msra.mxu0 0.0
    %1037 = vmatprep.subr.mxu0 0.0
    %1038 = vmatpush1.xpose.msra.mxu0 0.0
    %1039 = vmatprep.subr.mxu0 0.0
    %1040 = vmatpush1.xpose.msra.mxu0 0.0
    %1041 = vmatprep.subr.mxu0 0.0
    %1042 = vmatpush1.xpose.msra.mxu0 0.0
    %1043 = vmatprep.subr.mxu0 0.0
    %1044 = vmatpush1.xpose.msra.mxu0 0.0
    %1045 = vmatprep.subr.mxu0 0.0
    %1046 = vmatpush1.xpose.msra.mxu0 0.0
    %1047 = vmatprep.subr.mxu0 0.0
    %1048 = vmatpush1.xpose.msra.mxu0 0.0
    %1049 = vmatprep.subr.mxu0 0.0
    %1050 = vmatpush1.xpose.msra.mxu0 0.0
    %1051 = vmatprep.subr.mxu0 0.0
    %1052 = vmatpush1.xpose.msra.mxu0 0.0
    %1053 = vmatprep.subr.mxu0 0.0
    %1054 = vmatpush1.xpose.msra.mxu0 0.0
    %1055 = vmatprep.subr.mxu0 0.0
    %1056 = vmatpush1.xpose.msra.mxu0 0.0
    %1057 = vmatprep.subr.mxu0 0.0
    %1058 = vmatpush1.xpose.msra.mxu0 0.0
    %1059 = vmatprep.subr.mxu0 0.0
    %1060 = vmatpush1.xpose.msra.mxu0 0.0
    %1061 = vmatprep.subr.mxu0 0.0
    %1062 = vmatpush1.xpose.msra.mxu0 0.0
    %1063 = vmatprep.subr.mxu0 0.0
    %1064 = vmatpush1.xpose.msra.mxu0 0.0
    %1065 = vmatprep.subr.mxu0 0.0
    %1066 = vmatpush1.xpose.msra.mxu0 0.0
    %1067 = vmatprep.mubr.f32.mxu0 0.0
    %1068 = vmatmul.mubr.f32.gmra.mrb[0].mxu0 %v985
    %v1069 = vpop.f32.mrb[0].mxu0
    %v1070 = vadd.f32 0.0, %v1069
    %v1071 = vpop.f32.mrb[0].mxu0
    %1072 = vdwg.mxu0
    %s1073 = sld [smem:[#allocation3 + $0x2]]
    %v1074 = vstv %s1073
    %vm1075 = vcmp.lt.s32.totalorder %v280, %v1074
    %v1076 = vsel %vm1075, %v1070, -1e+30
    %v1077 = vsel %vm285, %v1076, -inf
    %1078 = vmax.xlane.f32.xlu0 %v1077
    %v1079 = vpop.xlane.xlu0 %1078
    %v1080 = vsub.f32 %v1076, %v1079
    %v1081 = vmul.f32 %v1080, 1.442695
    %v1082 = vpow.pop %v1081
    %v1083 = vsel %vm285, %v1082, 0.0
    %1084 = vadd.xlane.f32.xlu0 %v1083
    %v1085 = vpop.xlane.xlu0 %1084
    %v1086 = vrcp.pop %v1085
    %v1087 = vmul.f32 %v1082, %v1086
    %v1089 = vsel %vm297, %v1087, 0
    %1091 = vmatprep.subr.mxu0 0.0
    %1092 = vmatpush1.msra.mxu0 %v1001
    %1093 = vmatprep.subr.mxu0 0.0
    %1094 = vmatpush1.msra.mxu0 0.0
    %1095 = vmatprep.subr.mxu0 0.0
    %1096 = vmatpush1.msra.mxu0 0.0
    %1097 = vmatprep.subr.mxu0 0.0
    %1098 = vmatpush1.msra.mxu0 0.0
    %1099 = vmatprep.subr.mxu0 0.0
    %1100 = vmatpush1.msra.mxu0 0.0
    %1101 = vmatprep.subr.mxu0 0.0
    %1102 = vmatpush1.msra.mxu0 0.0
    %1103 = vmatprep.subr.mxu0 0.0
    %1104 = vmatpush1.msra.mxu0 0.0
    %1105 = vmatprep.subr.mxu0 0.0
    %1106 = vmatpush1.msra.mxu0 0.0
    %1107 = vmatprep.subr.mxu0 0.0
    %1108 = vmatpush1.msra.mxu0 0.0
    %1109 = vmatprep.subr.mxu0 0.0
    %1110 = vmatpush1.msra.mxu0 0.0
    %1111 = vmatprep.subr.mxu0 0.0
    %1112 = vmatpush1.msra.mxu0 0.0
    %1113 = vmatprep.subr.mxu0 0.0
    %1114 = vmatpush1.msra.mxu0 0.0
    %1115 = vmatprep.subr.mxu0 0.0
    %1116 = vmatpush1.msra.mxu0 0.0
    %1117 = vmatprep.subr.mxu0 0.0
    %1118 = vmatpush1.msra.mxu0 0.0
    %1119 = vmatprep.subr.mxu0 0.0
    %1120 = vmatpush1.msra.mxu0 0.0
    %1121 = vmatprep.subr.mxu0 0.0
    %1122 = vmatpush1.msra.mxu0 0.0
    %1123 = vmatprep.subr.mxu0 0.0
    %1124 = vmatpush1.msra.mxu0 0.0
    %1125 = vmatprep.subr.mxu0 0.0
    %1126 = vmatpush1.msra.mxu0 0.0
    %1127 = vmatprep.subr.mxu0 0.0
    %1128 = vmatpush1.msra.mxu0 0.0
    %1129 = vmatprep.subr.mxu0 0.0
    %1130 = vmatpush1.msra.mxu0 0.0
    %1131 = vmatprep.subr.mxu0 0.0
    %1132 = vmatpush1.msra.mxu0 0.0
    %1133 = vmatprep.subr.mxu0 0.0
    %1134 = vmatpush1.msra.mxu0 0.0
    %1135 = vmatprep.subr.mxu0 0.0
    %1136 = vmatpush1.msra.mxu0 0.0
    %1137 = vmatprep.subr.mxu0 0.0
    %1138 = vmatpush1.msra.mxu0 0.0
    %1139 = vmatprep.subr.mxu0 0.0
    %1140 = vmatpush1.msra.mxu0 0.0
    %1141 = vmatprep.subr.mxu0 0.0
    %1142 = vmatpush1.msra.mxu0 0.0
    %1143 = vmatprep.subr.mxu0 0.0
    %1144 = vmatpush1.msra.mxu0 0.0
    %1145 = vmatprep.subr.mxu0 0.0
    %1146 = vmatpush1.msra.mxu0 0.0
    %1147 = vmatprep.subr.mxu0 0.0
    %1148 = vmatpush1.msra.mxu0 0.0
    %1149 = vmatprep.subr.mxu0 0.0
    %1150 = vmatpush1.msra.mxu0 0.0
    %1151 = vmatprep.subr.mxu0 0.0
    %1152 = vmatpush1.msra.mxu0 0.0
    %1153 = vmatprep.subr.mxu0 0.0
    %1154 = vmatpush1.msra.mxu0 0.0
    %1155 = vmatprep.mubr.f32.mxu0 0.0
    %1156 = vmatmul.mubr.f32.gmra.mrb[0].mxu0 %v1089
    %v1157 = vpop.f32.mrb[0].mxu0
    %v1158 = vadd.f32 0.0, %v1157
    %v1159 = vpop.f32.mrb[0].mxu0
    %1160 = vdwg.mxu0
    %1161 = vmatprep.subr.mxu0 0.0
    %1162 = vmatpush1.msra.mxu0 %v76
    %1163 = vmatprep.subr.mxu0 0.0
    %1164 = vmatpush1.msra.mxu0 %v77
    %1165 = vmatprep.subr.mxu0 0.0
    %1166 = vmatpush1.msra.mxu0 %v78
    %1167 = vmatprep.subr.mxu0 0.0
    %1168 = vmatpush1.msra.mxu0 %v79
    %1169 = vmatprep.subr.mxu0 0.0
    %1170 = vmatpush1.msra.mxu0 %v80
    %1171 = vmatprep.subr.mxu0 0.0
    %1172 = vmatpush1.msra.mxu0 %v81
    %1173 = vmatprep.subr.mxu0 0.0
    %1174 = vmatpush1.msra.mxu0 %v82
    %1175 = vmatprep.subr.mxu0 0.0
    %1176 = vmatpush1.msra.mxu0 %v83
    %1177 = vmatprep.subr.mxu0 0.0
    %1178 = vmatpush1.msra.mxu0 %v84
    %1179 = vmatprep.subr.mxu0 0.0
    %1180 = vmatpush1.msra.mxu0 %v85
    %1181 = vmatprep.subr.mxu0 0.0
    %1182 = vmatpush1.msra.mxu0 %v86
    %1183 = vmatprep.subr.mxu0 0.0
    %1184 = vmatpush1.msra.mxu0 %v87
    %1185 = vmatprep.subr.mxu0 0.0
    %1186 = vmatpush1.msra.mxu0 %v88
    %1187 = vmatprep.subr.mxu0 0.0
    %1188 = vmatpush1.msra.mxu0 %v89
    %1189 = vmatprep.subr.mxu0 0.0
    %1190 = vmatpush1.msra.mxu0 %v90
    %1191 = vmatprep.subr.mxu0 0.0
    %1192 = vmatpush1.msra.mxu0 %v91
    %1193 = vmatprep.subr.mxu0 0.0
    %1194 = vmatpush1.msra.mxu0 0.0
    %1195 = vmatprep.subr.mxu0 0.0
    %1196 = vmatpush1.msra.mxu0 0.0
    %1197 = vmatprep.subr.mxu0 0.0
    %1198 = vmatpush1.msra.mxu0 0.0
    %1199 = vmatprep.subr.mxu0 0.0
    %1200 = vmatpush1.msra.mxu0 0.0
    %1201 = vmatprep.subr.mxu0 0.0
    %1202 = vmatpush1.msra.mxu0 0.0
    %1203 = vmatprep.subr.mxu0 0.0
    %1204 = vmatpush1.msra.mxu0 0.0
    %1205 = vmatprep.subr.mxu0 0.0
    %1206 = vmatpush1.msra.mxu0 0.0
    %1207 = vmatprep.subr.mxu0 0.0
    %1208 = vmatpush1.msra.mxu0 0.0
    %1209 = vmatprep.subr.mxu0 0.0
    %1210 = vmatpush1.msra.mxu0 0.0
    %1211 = vmatprep.subr.mxu0 0.0
    %1212 = vmatpush1.msra.mxu0 0.0
    %1213 = vmatprep.subr.mxu0 0.0
    %1214 = vmatpush1.msra.mxu0 0.0
    %1215 = vmatprep.subr.mxu0 0.0
    %1216 = vmatpush1.msra.mxu0 0.0
    %1217 = vmatprep.subr.mxu0 0.0
    %1218 = vmatpush1.msra.mxu0 0.0
    %1219 = vmatprep.subr.mxu0 0.0
    %1220 = vmatpush1.msra.mxu0 0.0
    %1221 = vmatprep.subr.mxu0 0.0
    %1222 = vmatpush1.msra.mxu0 0.0
    %1223 = vmatprep.subr.mxu0 0.0
    %1224 = vmatpush1.msra.mxu0 0.0
    %1225 = vmatprep.mubr.f32.mxu0 0.0
    %1226 = vmatmul.mubr.f32.gmra.mrb[0].mxu0 %v916
    %v1227 = vpop.f32.mrb[0].mxu0
    %v1228 = vadd.f32 0.0, %v1227
    %v1229 = vpop.f32.mrb[0].mxu0
    %1230 = vdwg.mxu0
    %1231 = vmatprep.subr.mxu0 0.0
    %1232 = vmatpush1.msra.mxu0 %v60
    %1233 = vmatprep.subr.mxu0 0.0
    %1234 = vmatpush1.msra.mxu0 %v61
    %1235 = vmatprep.subr.mxu0 0.0
    %1236 = vmatpush1.msra.mxu0 %v62
    %1237 = vmatprep.subr.mxu0 0.0
    %1238 = vmatpush1.msra.mxu0 %v63
    %1239 = vmatprep.subr.mxu0 0.0
    %1240 = vmatpush1.msra.mxu0 %v64
    %1241 = vmatprep.subr.mxu0 0.0
    %1242 = vmatpush1.msra.mxu0 %v65
    %1243 = vmatprep.subr.mxu0 0.0
    %1244 = vmatpush1.msra.mxu0 %v66
    %1245 = vmatprep.subr.mxu0 0.0
    %1246 = vmatpush1.msra.mxu0 %v67
    %1247 = vmatprep.subr.mxu0 0.0
    %1248 = vmatpush1.msra.mxu0 %v68
    %1249 = vmatprep.subr.mxu0 0.0
    %1250 = vmatpush1.msra.mxu0 %v69
    %1251 = vmatprep.subr.mxu0 0.0
    %1252 = vmatpush1.msra.mxu0 %v70
    %1253 = vmatprep.subr.mxu0 0.0
    %1254 = vmatpush1.msra.mxu0 %v71
    %1255 = vmatprep.subr.mxu0 0.0
    %1256 = vmatpush1.msra.mxu0 %v72
    %1257 = vmatprep.subr.mxu0 0.0
    %1258 = vmatpush1.msra.mxu0 %v73
    %1259 = vmatprep.subr.mxu0 0.0
    %1260 = vmatpush1.msra.mxu0 %v74
    %1261 = vmatprep.subr.mxu0 0.0
    %1262 = vmatpush1.msra.mxu0 %v75
    %1263 = vmatprep.subr.mxu0 0.0
    %1264 = vmatpush1.msra.mxu0 0.0
    %1265 = vmatprep.subr.mxu0 0.0
    %1266 = vmatpush1.msra.mxu0 0.0
    %1267 = vmatprep.subr.mxu0 0.0
    %1268 = vmatpush1.msra.mxu0 0.0
    %1269 = vmatprep.subr.mxu0 0.0
    %1270 = vmatpush1.msra.mxu0 0.0
    %1271 = vmatprep.subr.mxu0 0.0
    %1272 = vmatpush1.msra.mxu0 0.0
    %1273 = vmatprep.subr.mxu0 0.0
    %1274 = vmatpush1.msra.mxu0 0.0
    %1275 = vmatprep.subr.mxu0 0.0
    %1276 = vmatpush1.msra.mxu0 0.0
    %1277 = vmatprep.subr.mxu0 0.0
    %1278 = vmatpush1.msra.mxu0 0.0
    %1279 = vmatprep.subr.mxu0 0.0
    %1280 = vmatpush1.msra.mxu0 0.0
    %1281 = vmatprep.subr.mxu0 0.0
    %1282 = vmatpush1.msra.mxu0 0.0
    %1283 = vmatprep.subr.mxu0 0.0
    %1284 = vmatpush1.msra.mxu0 0.0
    %1285 = vmatprep.subr.mxu0 0.0
    %1286 = vmatpush1.msra.mxu0 0.0
    %1287 = vmatprep.subr.mxu0 0.0
    %1288 = vmatpush1.msra.mxu0 0.0
    %1289 = vmatprep.subr.mxu0 0.0
    %1290 = vmatpush1.msra.mxu0 0.0
    %1291 = vmatprep.subr.mxu0 0.0
    %1292 = vmatpush1.msra.mxu0 0.0
    %1293 = vmatprep.subr.mxu0 0.0
    %1294 = vmatpush1.msra.mxu0 0.0
    %1295 = vmatprep.mubr.f32.mxu0 0.0
    %1296 = vmatmul.mubr.f32.gmra.mrb[0].mxu0 %v1158
    %v1297 = vpop.f32.mrb[0].mxu0
    %v1298 = vadd.f32 %v1228, %v1297
    %v1299 = vpop.f32.mrb[0].mxu0
    %1300 = vdwg.mxu0
    %v1301 = vtanh.pop %v1298
    %v1302 = vrot.slane %v30, 3
    %v1303 = vrot.slane %v31, 2
    %v1304 = vsel %vm99, %v1303, %v1302
    %v1305 = vrot.slane %v32, 1
    %v1306 = vsel %vm102, %v1305, %v1304
    %v1307 = vsel %vm105, %v33, %v1306
    %v1308 = vrot.slane %v34, 7
    %v1309 = vsel %vm108, %v1308, %v1307
    %v1310 = vrot.slane %v35, 6
    %v1311 = vsel %vm111, %v1310, %v1309
    %1313 = vmatprep.subr.mxu0 0.0
    %1314 = vmatpush1.msra.mxu0 %v44
    %1315 = vmatprep.subr.mxu0 0.0
    %1316 = vmatpush1.msra.mxu0 %v45
    %1317 = vmatprep.subr.mxu0 0.0
    %1318 = vmatpush1.msra.mxu0 %v46
    %1319 = vmatprep.subr.mxu0 0.0
    %1320 = vmatpush1.msra.mxu0 %v47
    %1321 = vmatprep.subr.mxu0 0.0
    %1322 = vmatpush1.msra.mxu0 %v48
    %1323 = vmatprep.subr.mxu0 0.0
    %1324 = vmatpush1.msra.mxu0 %v49
    %1325 = vmatprep.subr.mxu0 0.0
    %1326 = vmatpush1.msra.mxu0 %v50
    %1327 = vmatprep.subr.mxu0 0.0
    %1328 = vmatpush1.msra.mxu0 %v51
    %1329 = vmatprep.subr.mxu0 0.0
    %1330 = vmatpush1.msra.mxu0 %v52
    %1331 = vmatprep.subr.mxu0 0.0
    %1332 = vmatpush1.msra.mxu0 %v53
    %1333 = vmatprep.subr.mxu0 0.0
    %1334 = vmatpush1.msra.mxu0 %v54
    %1335 = vmatprep.subr.mxu0 0.0
    %1336 = vmatpush1.msra.mxu0 %v55
    %1337 = vmatprep.subr.mxu0 0.0
    %1338 = vmatpush1.msra.mxu0 %v56
    %1339 = vmatprep.subr.mxu0 0.0
    %1340 = vmatpush1.msra.mxu0 %v57
    %1341 = vmatprep.subr.mxu0 0.0
    %1342 = vmatpush1.msra.mxu0 %v58
    %1343 = vmatprep.subr.mxu0 0.0
    %1344 = vmatpush1.msra.mxu0 %v59
    %1345 = vmatprep.subr.mxu0 0.0
    %1346 = vmatpush1.msra.mxu0 0.0
    %1347 = vmatprep.subr.mxu0 0.0
    %1348 = vmatpush1.msra.mxu0 0.0
    %1349 = vmatprep.subr.mxu0 0.0
    %1350 = vmatpush1.msra.mxu0 0.0
    %1351 = vmatprep.subr.mxu0 0.0
    %1352 = vmatpush1.msra.mxu0 0.0
    %1353 = vmatprep.subr.mxu0 0.0
    %1354 = vmatpush1.msra.mxu0 0.0
    %1355 = vmatprep.subr.mxu0 0.0
    %1356 = vmatpush1.msra.mxu0 0.0
    %1357 = vmatprep.subr.mxu0 0.0
    %1358 = vmatpush1.msra.mxu0 0.0
    %1359 = vmatprep.subr.mxu0 0.0
    %1360 = vmatpush1.msra.mxu0 0.0
    %1361 = vmatprep.subr.mxu0 0.0
    %1362 = vmatpush1.msra.mxu0 0.0
    %1363 = vmatprep.subr.mxu0 0.0
    %1364 = vmatpush1.msra.mxu0 0.0
    %1365 = vmatprep.subr.mxu0 0.0
    %1366 = vmatpush1.msra.mxu0 0.0
    %1367 = vmatprep.subr.mxu0 0.0
    %1368 = vmatpush1.msra.mxu0 0.0
    %1369 = vmatprep.subr.mxu0 0.0
    %1370 = vmatpush1.msra.mxu0 0.0
    %1371 = vmatprep.subr.mxu0 0.0
    %1372 = vmatpush1.msra.mxu0 0.0
    %1373 = vmatprep.subr.mxu0 0.0
    %1374 = vmatpush1.msra.mxu0 0.0
    %1375 = vmatprep.subr.mxu0 0.0
    %1376 = vmatpush1.msra.mxu0 0.0
    %1377 = vmatprep.mubr.f32.mxu0 0.0
    %1378 = vmatmul.mubr.f32.gmra.mrb[0].mxu0 %v1311
    %v1379 = vpop.f32.mrb[0].mxu0
    %v1380 = vadd.f32 0.0, %v1379
    %v1381 = vpop.f32.mrb[0].mxu0
    %1382 = vdwg.mxu0
    %v1383 = vrot.slane %v36, 3
    %v1384 = vrot.slane %v37, 2
    %v1385 = vsel %vm99, %v1384, %v1383
    %v1386 = vrot.slane %v38, 1
    %v1387 = vsel %vm102, %v1386, %v1385
    %v1388 = vsel %vm105, %v39, %v1387
    %v1389 = vrot.slane %v40, 7
    %v1390 = vsel %vm108, %v1389, %v1388
    %v1391 = vrot.slane %v41, 6
    %v1392 = vsel %vm111, %v1391, %v1390
    %v1393 = vrot.slane %v42, 5
    %v1394 = vsel %vm203, %v1393, %v1392
    %v1395 = vrot.slane %v43, 4
    %v1396 = vsel %vm206, %v1395, %v1394
    %1398 = vmatprep.subr.mxu0 0.0
    %1399 = vmatpush1.xpose.msra.mxu0 %v1396
    %1400 = vmatprep.subr.mxu0 0.0
    %1401 = vmatpush1.xpose.msra.mxu0 0.0
    %1402 = vmatprep.subr.mxu0 0.0
    %1403 = vmatpush1.xpose.msra.mxu0 0.0
    %1404 = vmatprep.subr.mxu0 0.0
    %1405 = vmatpush1.xpose.msra.mxu0 0.0
    %1406 = vmatprep.subr.mxu0 0.0
    %1407 = vmatpush1.xpose.msra.mxu0 0.0
    %1408 = vmatprep.subr.mxu0 0.0
    %1409 = vmatpush1.xpose.msra.mxu0 0.0
    %1410 = vmatprep.subr.mxu0 0.0
    %1411 = vmatpush1.xpose.msra.mxu0 0.0
    %1412 = vmatprep.subr.mxu0 0.0
    %1413 = vmatpush1.xpose.msra.mxu0 0.0
    %1414 = vmatprep.subr.mxu0 0.0
    %1415 = vmatpush1.xpose.msra.mxu0 0.0
    %1416 = vmatprep.subr.mxu0 0.0
    %1417 = vmatpush1.xpose.msra.mxu0 0.0
    %1418 = vmatprep.subr.mxu0 0.0
    %1419 = vmatpush1.xpose.msra.mxu0 0.0
    %1420 = vmatprep.subr.mxu0 0.0
    %1421 = vmatpush1.xpose.msra.mxu0 0.0
    %1422 = vmatprep.subr.mxu0 0.0
    %1423 = vmatpush1.xpose.msra.mxu0 0.0
    %1424 = vmatprep.subr.mxu0 0.0
    %1425 = vmatpush1.xpose.msra.mxu0 0.0
    %1426 = vmatprep.subr.mxu0 0.0
    %1427 = vmatpush1.xpose.msra.mxu0 0.0
    %1428 = vmatprep.subr.mxu0 0.0
    %1429 = vmatpush1.xpose.msra.mxu0 0.0
    %1430 = vmatprep.subr.mxu0 0.0
    %1431 = vmatpush1.xpose.msra.mxu0 0.0
    %1432 = vmatprep.subr.mxu0 0.0
    %1433 = vmatpush1.xpose.msra.mxu0 0.0
    %1434 = vmatprep.subr.mxu0 0.0
    %1435 = vmatpush1.xpose.msra.mxu0 0.0
    %1436 = vmatprep.subr.mxu0 0.0
    %1437 = vmatpush1.xpose.msra.mxu0 0.0
    %1438 = vmatprep.subr.mxu0 0.0
    %1439 = vmatpush1.xpose.msra.mxu0 0.0
    %1440 = vmatprep.subr.mxu0 0.0
    %1441 = vmatpush1.xpose.msra.mxu0 0.0
    %1442 = vmatprep.subr.mxu0 0.0
    %1443 = vmatpush1.xpose.msra.mxu0 0.0
    %1444 = vmatprep.subr.mxu0 0.0
    %1445 = vmatpush1.xpose.msra.mxu0 0.0
    %1446 = vmatprep.subr.mxu0 0.0
    %1447 = vmatpush1.xpose.msra.mxu0 0.0
    %1448 = vmatprep.subr.mxu0 0.0
    %1449 = vmatpush1.xpose.msra.mxu0 0.0
    %1450 = vmatprep.subr.mxu0 0.0
    %1451 = vmatpush1.xpose.msra.mxu0 0.0
    %1452 = vmatprep.subr.mxu0 0.0
    %1453 = vmatpush1.xpose.msra.mxu0 0.0
    %1454 = vmatprep.subr.mxu0 0.0
    %1455 = vmatpush1.xpose.msra.mxu0 0.0
    %1456 = vmatprep.subr.mxu0 0.0
    %1457 = vmatpush1.xpose.msra.mxu0 0.0
    %1458 = vmatprep.subr.mxu0 0.0
    %1459 = vmatpush1.xpose.msra.mxu0 0.0
    %1460 = vmatprep.subr.mxu0 0.0
    %1461 = vmatpush1.xpose.msra.mxu0 0.0
    %1462 = vmatprep.mubr.f32.mxu0 0.0
    %1463 = vmatmul.mubr.f32.gmra.mrb[0].mxu0 %v1380
    %v1464 = vpop.f32.mrb[0].mxu0
    %v1465 = vadd.f32 0.0, %v1464
    %v1466 = vpop.f32.mrb[0].mxu0
    %1467 = vdwg.mxu0
    %s1468 = sld [smem:[#allocation3 + $0x3]]
    %v1469 = vstv %s1468
    %vm1470 = vcmp.lt.s32.totalorder %v280, %v1469
    %v1471 = vsel %vm1470, %v1465, -1e+30
    %v1472 = vsel %vm285, %v1471, -inf
    %1473 = vmax.xlane.f32.xlu0 %v1472
    %v1474 = vpop.xlane.xlu0 %1473
    %v1475 = vsub.f32 %v1471, %v1474
    %v1476 = vmul.f32 %v1475, 1.442695
    %v1477 = vpow.pop %v1476
    %v1478 = vsel %vm285, %v1477, 0.0
    %1479 = vadd.xlane.f32.xlu0 %v1478
    %v1480 = vpop.xlane.xlu0 %1479
    %v1481 = vrcp.pop %v1480
    %v1482 = vmul.f32 %v1477, %v1481
    %v1484 = vsel %vm297, %v1482, 0
    %1486 = vmatprep.subr.mxu0 0.0
    %1487 = vmatpush1.msra.mxu0 %v1396
    %1488 = vmatprep.subr.mxu0 0.0
    %1489 = vmatpush1.msra.mxu0 0.0
    %1490 = vmatprep.subr.mxu0 0.0
    %1491 = vmatpush1.msra.mxu0 0.0
    %1492 = vmatprep.subr.mxu0 0.0
    %1493 = vmatpush1.msra.mxu0 0.0
    %1494 = vmatprep.subr.mxu0 0.0
    %1495 = vmatpush1.msra.mxu0 0.0
    %1496 = vmatprep.subr.mxu0 0.0
    %1497 = vmatpush1.msra.mxu0 0.0
    %1498 = vmatprep.subr.mxu0 0.0
    %1499 = vmatpush1.msra.mxu0 0.0
    %1500 = vmatprep.subr.mxu0 0.0
    %1501 = vmatpush1.msra.mxu0 0.0
    %1502 = vmatprep.subr.mxu0 0.0
    %1503 = vmatpush1.msra.mxu0 0.0
    %1504 = vmatprep.subr.mxu0 0.0
    %1505 = vmatpush1.msra.mxu0 0.0
    %1506 = vmatprep.subr.mxu0 0.0
    %1507 = vmatpush1.msra.mxu0 0.0
    %1508 = vmatprep.subr.mxu0 0.0
    %1509 = vmatpush1.msra.mxu0 0.0
    %1510 = vmatprep.subr.mxu0 0.0
    %1511 = vmatpush1.msra.mxu0 0.0
    %1512 = vmatprep.subr.mxu0 0.0
    %1513 = vmatpush1.msra.mxu0 0.0
    %1514 = vmatprep.subr.mxu0 0.0
    %1515 = vmatpush1.msra.mxu0 0.0
    %1516 = vmatprep.subr.mxu0 0.0
    %1517 = vmatpush1.msra.mxu0 0.0
    %1518 = vmatprep.subr.mxu0 0.0
    %1519 = vmatpush1.msra.mxu0 0.0
    %1520 = vmatprep.subr.mxu0 0.0
    %1521 = vmatpush1.msra.mxu0 0.0
    %1522 = vmatprep.subr.mxu0 0.0
    %1523 = vmatpush1.msra.mxu0 0.0
    %1524 = vmatprep.subr.mxu0 0.0
    %1525 = vmatpush1.msra.mxu0 0.0
    %1526 = vmatprep.subr.mxu0 0.0
    %1527 = vmatpush1.msra.mxu0 0.0
    %1528 = vmatprep.subr.mxu0 0.0
    %1529 = vmatpush1.msra.mxu0 0.0
    %1530 = vmatprep.subr.mxu0 0.0
    %1531 = vmatpush1.msra.mxu0 0.0
    %1532 = vmatprep.subr.mxu0 0.0
    %1533 = vmatpush1.msra.mxu0 0.0
    %1534 = vmatprep.subr.mxu0 0.0
    %1535 = vmatpush1.msra.mxu0 0.0
    %1536 = vmatprep.subr.mxu0 0.0
    %1537 = vmatpush1.msra.mxu0 0.0
    %1538 = vmatprep.subr.mxu0 0.0
    %1539 = vmatpush1.msra.mxu0 0.0
    %1540 = vmatprep.subr.mxu0 0.0
    %1541 = vmatpush1.msra.mxu0 0.0
    %1542 = vmatprep.subr.mxu0 0.0
    %1543 = vmatpush1.msra.mxu0 0.0
    %1544 = vmatprep.subr.mxu0 0.0
    %1545 = vmatpush1.msra.mxu0 0.0
    %1546 = vmatprep.subr.mxu0 0.0
    %1547 = vmatpush1.msra.mxu0 0.0
    %1548 = vmatprep.subr.mxu0 0.0
    %1549 = vmatpush1.msra.mxu0 0.0
    %1550 = vmatprep.mubr.f32.mxu0 0.0
    %1551 = vmatmul.mubr.f32.gmra.mrb[0].mxu0 %v1484
    %v1552 = vpop.f32.mrb[0].mxu0
    %v1553 = vadd.f32 0.0, %v1552
    %v1554 = vpop.f32.mrb[0].mxu0
    %1555 = vdwg.mxu0
    %1556 = vmatprep.subr.mxu0 0.0
    %1557 = vmatpush1.msra.mxu0 %v76
    %1558 = vmatprep.subr.mxu0 0.0
    %1559 = vmatpush1.msra.mxu0 %v77
    %1560 = vmatprep.subr.mxu0 0.0
    %1561 = vmatpush1.msra.mxu0 %v78
    %1562 = vmatprep.subr.mxu0 0.0
    %1563 = vmatpush1.msra.mxu0 %v79
    %1564 = vmatprep.subr.mxu0 0.0
    %1565 = vmatpush1.msra.mxu0 %v80
    %1566 = vmatprep.subr.mxu0 0.0
    %1567 = vmatpush1.msra.mxu0 %v81
    %1568 = vmatprep.subr.mxu0 0.0
    %1569 = vmatpush1.msra.mxu0 %v82
    %1570 = vmatprep.subr.mxu0 0.0
    %1571 = vmatpush1.msra.mxu0 %v83
    %1572 = vmatprep.subr.mxu0 0.0
    %1573 = vmatpush1.msra.mxu0 %v84
    %1574 = vmatprep.subr.mxu0 0.0
    %1575 = vmatpush1.msra.mxu0 %v85
    %1576 = vmatprep.subr.mxu0 0.0
    %1577 = vmatpush1.msra.mxu0 %v86
    %1578 = vmatprep.subr.mxu0 0.0
    %1579 = vmatpush1.msra.mxu0 %v87
    %1580 = vmatprep.subr.mxu0 0.0
    %1581 = vmatpush1.msra.mxu0 %v88
    %1582 = vmatprep.subr.mxu0 0.0
    %1583 = vmatpush1.msra.mxu0 %v89
    %1584 = vmatprep.subr.mxu0 0.0
    %1585 = vmatpush1.msra.mxu0 %v90
    %1586 = vmatprep.subr.mxu0 0.0
    %1587 = vmatpush1.msra.mxu0 %v91
    %1588 = vmatprep.subr.mxu0 0.0
    %1589 = vmatpush1.msra.mxu0 0.0
    %1590 = vmatprep.subr.mxu0 0.0
    %1591 = vmatpush1.msra.mxu0 0.0
    %1592 = vmatprep.subr.mxu0 0.0
    %1593 = vmatpush1.msra.mxu0 0.0
    %1594 = vmatprep.subr.mxu0 0.0
    %1595 = vmatpush1.msra.mxu0 0.0
    %1596 = vmatprep.subr.mxu0 0.0
    %1597 = vmatpush1.msra.mxu0 0.0
    %1598 = vmatprep.subr.mxu0 0.0
    %1599 = vmatpush1.msra.mxu0 0.0
    %1600 = vmatprep.subr.mxu0 0.0
    %1601 = vmatpush1.msra.mxu0 0.0
    %1602 = vmatprep.subr.mxu0 0.0
    %1603 = vmatpush1.msra.mxu0 0.0
    %1604 = vmatprep.subr.mxu0 0.0
    %1605 = vmatpush1.msra.mxu0 0.0
    %1606 = vmatprep.subr.mxu0 0.0
    %1607 = vmatpush1.msra.mxu0 0.0
    %1608 = vmatprep.subr.mxu0 0.0
    %1609 = vmatpush1.msra.mxu0 0.0
    %1610 = vmatprep.subr.mxu0 0.0
    %1611 = vmatpush1.msra.mxu0 0.0
    %1612 = vmatprep.subr.mxu0 0.0
    %1613 = vmatpush1.msra.mxu0 0.0
    %1614 = vmatprep.subr.mxu0 0.0
    %1615 = vmatpush1.msra.mxu0 0.0
    %1616 = vmatprep.subr.mxu0 0.0
    %1617 = vmatpush1.msra.mxu0 0.0
    %1618 = vmatprep.subr.mxu0 0.0
    %1619 = vmatpush1.msra.mxu0 0.0
    %1620 = vmatprep.mubr.f32.mxu0 0.0
    %1621 = vmatmul.mubr.f32.gmra.mrb[0].mxu0 %v1311
    %v1622 = vpop.f32.mrb[0].mxu0
    %v1623 = vadd.f32 0.0, %v1622
    %v1624 = vpop.f32.mrb[0].mxu0
    %1625 = vdwg.mxu0
    %1626 = vmatprep.subr.mxu0 0.0
    %1627 = vmatpush1.msra.mxu0 %v60
    %1628 = vmatprep.subr.mxu0 0.0
    %1629 = vmatpush1.msra.mxu0 %v61
    %1630 = vmatprep.subr.mxu0 0.0
    %1631 = vmatpush1.msra.mxu0 %v62
    %1632 = vmatprep.subr.mxu0 0.0
    %1633 = vmatpush1.msra.mxu0 %v63
    %1634 = vmatprep.subr.mxu0 0.0
    %1635 = vmatpush1.msra.mxu0 %v64
    %1636 = vmatprep.subr.mxu0 0.0
    %1637 = vmatpush1.msra.mxu0 %v65
    %1638 = vmatprep.subr.mxu0 0.0
    %1639 = vmatpush1.msra.mxu0 %v66
    %1640 = vmatprep.subr.mxu0 0.0
    %1641 = vmatpush1.msra.mxu0 %v67
    %1642 = vmatprep.subr.mxu0 0.0
    %1643 = vmatpush1.msra.mxu0 %v68
    %1644 = vmatprep.subr.mxu0 0.0
    %1645 = vmatpush1.msra.mxu0 %v69
    %1646 = vmatprep.subr.mxu0 0.0
    %1647 = vmatpush1.msra.mxu0 %v70
    %1648 = vmatprep.subr.mxu0 0.0
    %1649 = vmatpush1.msra.mxu0 %v71
    %1650 = vmatprep.subr.mxu0 0.0
    %1651 = vmatpush1.msra.mxu0 %v72
    %1652 = vmatprep.subr.mxu0 0.0
    %1653 = vmatpush1.msra.mxu0 %v73
    %1654 = vmatprep.subr.mxu0 0.0
    %1655 = vmatpush1.msra.mxu0 %v74
    %1656 = vmatprep.subr.mxu0 0.0
    %1657 = vmatpush1.msra.mxu0 %v75
    %1658 = vmatprep.subr.mxu0 0.0
    %1659 = vmatpush1.msra.mxu0 0.0
    %1660 = vmatprep.subr.mxu0 0.0
    %1661 = vmatpush1.msra.mxu0 0.0
    %1662 = vmatprep.subr.mxu0 0.0
    %1663 = vmatpush1.msra.mxu0 0.0
    %1664 = vmatprep.subr.mxu0 0.0
    %1665 = vmatpush1.msra.mxu0 0.0
    %1666 = vmatprep.subr.mxu0 0.0
    %1667 = vmatpush1.msra.mxu0 0.0
    %1668 = vmatprep.subr.mxu0 0.0
    %1669 = vmatpush1.msra.mxu0 0.0
    %1670 = vmatprep.subr.mxu0 0.0
    %1671 = vmatpush1.msra.mxu0 0.0
    %1672 = vmatprep.subr.mxu0 0.0
    %1673 = vmatpush1.msra.mxu0 0.0
    %1674 = vmatprep.subr.mxu0 0.0
    %1675 = vmatpush1.msra.mxu0 0.0
    %1676 = vmatprep.subr.mxu0 0.0
    %1677 = vmatpush1.msra.mxu0 0.0
    %1678 = vmatprep.subr.mxu0 0.0
    %1679 = vmatpush1.msra.mxu0 0.0
    %1680 = vmatprep.subr.mxu0 0.0
    %1681 = vmatpush1.msra.mxu0 0.0
    %1682 = vmatprep.subr.mxu0 0.0
    %1683 = vmatpush1.msra.mxu0 0.0
    %1684 = vmatprep.subr.mxu0 0.0
    %1685 = vmatpush1.msra.mxu0 0.0
    %1686 = vmatprep.subr.mxu0 0.0
    %1687 = vmatpush1.msra.mxu0 0.0
    %1688 = vmatprep.subr.mxu0 0.0
    %1689 = vmatpush1.msra.mxu0 0.0
    %1690 = vmatprep.mubr.f32.mxu0 0.0
    %1691 = vmatmul.mubr.f32.gmra.mrb[0].mxu0 %v1553
    %v1692 = vpop.f32.mrb[0].mxu0
    %v1693 = vadd.f32 %v1623, %v1692
    %v1694 = vpop.f32.mrb[0].mxu0
    %1695 = vdwg.mxu0
    %v1696 = vtanh.pop %v1693
    %v1697 = vrot.slane %v30, 4
    %v1698 = vrot.slane %v31, 3
    %v1699 = vsel %vm99, %v1698, %v1697
    %v1700 = vrot.slane %v32, 2
    %v1701 = vsel %vm102, %v1700, %v1699
    %v1702 = vrot.slane %v33, 1
    %v1703 = vsel %vm105, %v1702, %v1701
    %v1704 = vsel %vm108, %v34, %v1703
    %v1705 = vrot.slane %v35, 7
    %v1706 = vsel %vm111, %v1705, %v1704
    %1708 = vmatprep.subr.mxu0 0.0
    %1709 = vmatpush1.msra.mxu0 %v44
    %1710 = vmatprep.subr.mxu0 0.0
    %1711 = vmatpush1.msra.mxu0 %v45
    %1712 = vmatprep.subr.mxu0 0.0
    %1713 = vmatpush1.msra.mxu0 %v46
    %1714 = vmatprep.subr.mxu0 0.0
    %1715 = vmatpush1.msra.mxu0 %v47
    %1716 = vmatprep.subr.mxu0 0.0
    %1717 = vmatpush1.msra.mxu0 %v48
    %1718 = vmatprep.subr.mxu0 0.0
    %1719 = vmatpush1.msra.mxu0 %v49
    %1720 = vmatprep.subr.mxu0 0.0
    %1721 = vmatpush1.msra.mxu0 %v50
    %1722 = vmatprep.subr.mxu0 0.0
    %1723 = vmatpush1.msra.mxu0 %v51
    %1724 = vmatprep.subr.mxu0 0.0
    %1725 = vmatpush1.msra.mxu0 %v52
    %1726 = vmatprep.subr.mxu0 0.0
    %1727 = vmatpush1.msra.mxu0 %v53
    %1728 = vmatprep.subr.mxu0 0.0
    %1729 = vmatpush1.msra.mxu0 %v54
    %1730 = vmatprep.subr.mxu0 0.0
    %1731 = vmatpush1.msra.mxu0 %v55
    %1732 = vmatprep.subr.mxu0 0.0
    %1733 = vmatpush1.msra.mxu0 %v56
    %1734 = vmatprep.subr.mxu0 0.0
    %1735 = vmatpush1.msra.mxu0 %v57
    %1736 = vmatprep.subr.mxu0 0.0
    %1737 = vmatpush1.msra.mxu0 %v58
    %1738 = vmatprep.subr.mxu0 0.0
    %1739 = vmatpush1.msra.mxu0 %v59
    %1740 = vmatprep.subr.mxu0 0.0
    %1741 = vmatpush1.msra.mxu0 0.0
    %1742 = vmatprep.subr.mxu0 0.0
    %1743 = vmatpush1.msra.mxu0 0.0
    %1744 = vmatprep.subr.mxu0 0.0
    %1745 = vmatpush1.msra.mxu0 0.0
    %1746 = vmatprep.subr.mxu0 0.0
    %1747 = vmatpush1.msra.mxu0 0.0
    %1748 = vmatprep.subr.mxu0 0.0
    %1749 = vmatpush1.msra.mxu0 0.0
    %1750 = vmatprep.subr.mxu0 0.0
    %1751 = vmatpush1.msra.mxu0 0.0
    %1752 = vmatprep.subr.mxu0 0.0
    %1753 = vmatpush1.msra.mxu0 0.0
    %1754 = vmatprep.subr.mxu0 0.0
    %1755 = vmatpush1.msra.mxu0 0.0
    %1756 = vmatprep.subr.mxu0 0.0
    %1757 = vmatpush1.msra.mxu0 0.0
    %1758 = vmatprep.subr.mxu0 0.0
    %1759 = vmatpush1.msra.mxu0 0.0
    %1760 = vmatprep.subr.mxu0 0.0
    %1761 = vmatpush1.msra.mxu0 0.0
    %1762 = vmatprep.subr.mxu0 0.0
    %1763 = vmatpush1.msra.mxu0 0.0
    %1764 = vmatprep.subr.mxu0 0.0
    %1765 = vmatpush1.msra.mxu0 0.0
    %1766 = vmatprep.subr.mxu0 0.0
    %1767 = vmatpush1.msra.mxu0 0.0
    %1768 = vmatprep.subr.mxu0 0.0
    %1769 = vmatpush1.msra.mxu0 0.0
    %1770 = vmatprep.subr.mxu0 0.0
    %1771 = vmatpush1.msra.mxu0 0.0
    %1772 = vmatprep.mubr.f32.mxu0 0.0
    %1773 = vmatmul.mubr.f32.gmra.mrb[0].mxu0 %v1706
    %v1774 = vpop.f32.mrb[0].mxu0
    %v1775 = vadd.f32 0.0, %v1774
    %v1776 = vpop.f32.mrb[0].mxu0
    %1777 = vdwg.mxu0
    %v1778 = vrot.slane %v36, 4
    %v1779 = vrot.slane %v37, 3
    %v1780 = vsel %vm99, %v1779, %v1778
    %v1781 = vrot.slane %v38, 2
    %v1782 = vsel %vm102, %v1781, %v1780
    %v1783 = vrot.slane %v39, 1
    %v1784 = vsel %vm105, %v1783, %v1782
    %v1785 = vsel %vm108, %v40, %v1784
    %v1786 = vrot.slane %v41, 7
    %v1787 = vsel %vm111, %v1786, %v1785
    %v1788 = vrot.slane %v42, 6
    %v1789 = vsel %vm203, %v1788, %v1787
    %v1790 = vrot.slane %v43, 5
    %v1791 = vsel %vm206, %v1790, %v1789
    %1793 = vmatprep.subr.mxu0 0.0
    %1794 = vmatpush1.xpose.msra.mxu0 %v1791
    %1795 = vmatprep.subr.mxu0 0.0
    %1796 = vmatpush1.xpose.msra.mxu0 0.0
    %1797 = vmatprep.subr.mxu0 0.0
    %1798 = vmatpush1.xpose.msra.mxu0 0.0
    %1799 = vmatprep.subr.mxu0 0.0
    %1800 = vmatpush1.xpose.msra.mxu0 0.0
    %1801 = vmatprep.subr.mxu0 0.0
    %1802 = vmatpush1.xpose.msra.mxu0 0.0
    %1803 = vmatprep.subr.mxu0 0.0
    %1804 = vmatpush1.xpose.msra.mxu0 0.0
    %1805 = vmatprep.subr.mxu0 0.0
    %1806 = vmatpush1.xpose.msra.mxu0 0.0
    %1807 = vmatprep.subr.mxu0 0.0
    %1808 = vmatpush1.xpose.msra.mxu0 0.0
    %1809 = vmatprep.subr.mxu0 0.0
    %1810 = vmatpush1.xpose.msra.mxu0 0.0
    %1811 = vmatprep.subr.mxu0 0.0
    %1812 = vmatpush1.xpose.msra.mxu0 0.0
    %1813 = vmatprep.subr.mxu0 0.0
    %1814 = vmatpush1.xpose.msra.mxu0 0.0
    %1815 = vmatprep.subr.mxu0 0.0
    %1816 = vmatpush1.xpose.msra.mxu0 0.0
    %1817 = vmatprep.subr.mxu0 0.0
    %1818 = vmatpush1.xpose.msra.mxu0 0.0
    %1819 = vmatprep.subr.mxu0 0.0
    %1820 = vmatpush1.xpose.msra.mxu0 0.0
    %1821 = vmatprep.subr.mxu0 0.0
    %1822 = vmatpush1.xpose.msra.mxu0 0.0
    %1823 = vmatprep.subr.mxu0 0.0
    %1824 = vmatpush1.xpose.msra.mxu0 0.0
    %1825 = vmatprep.subr.mxu0 0.0
    %1826 = vmatpush1.xpose.msra.mxu0 0.0
    %1827 = vmatprep.subr.mxu0 0.0
    %1828 = vmatpush1.xpose.msra.mxu0 0.0
    %1829 = vmatprep.subr.mxu0 0.0
    %1830 = vmatpush1.xpose.msra.mxu0 0.0
    %1831 = vmatprep.subr.mxu0 0.0
    %1832 = vmatpush1.xpose.msra.mxu0 0.0
    %1833 = vmatprep.subr.mxu0 0.0
    %1834 = vmatpush1.xpose.msra.mxu0 0.0
    %1835 = vmatprep.subr.mxu0 0.0
    %1836 = vmatpush1.xpose.msra.mxu0 0.0
    %1837 = vmatprep.subr.mxu0 0.0
    %1838 = vmatpush1.xpose.msra.mxu0 0.0
    %1839 = vmatprep.subr.mxu0 0.0
    %1840 = vmatpush1.xpose.msra.mxu0 0.0
    %1841 = vmatprep.subr.mxu0 0.0
    %1842 = vmatpush1.xpose.msra.mxu0 0.0
    %1843 = vmatprep.subr.mxu0 0.0
    %1844 = vmatpush1.xpose.msra.mxu0 0.0
    %1845 = vmatprep.subr.mxu0 0.0
    %1846 = vmatpush1.xpose.msra.mxu0 0.0
    %1847 = vmatprep.subr.mxu0 0.0
    %1848 = vmatpush1.xpose.msra.mxu0 0.0
    %1849 = vmatprep.subr.mxu0 0.0
    %1850 = vmatpush1.xpose.msra.mxu0 0.0
    %1851 = vmatprep.subr.mxu0 0.0
    %1852 = vmatpush1.xpose.msra.mxu0 0.0
    %1853 = vmatprep.subr.mxu0 0.0
    %1854 = vmatpush1.xpose.msra.mxu0 0.0
    %1855 = vmatprep.subr.mxu0 0.0
    %1856 = vmatpush1.xpose.msra.mxu0 0.0
    %1857 = vmatprep.mubr.f32.mxu0 0.0
    %1858 = vmatmul.mubr.f32.gmra.mrb[0].mxu0 %v1775
    %v1859 = vpop.f32.mrb[0].mxu0
    %v1860 = vadd.f32 0.0, %v1859
    %v1861 = vpop.f32.mrb[0].mxu0
    %1862 = vdwg.mxu0
    %s1863 = sld [smem:[#allocation3 + $0x4]]
    %v1864 = vstv %s1863
    %vm1865 = vcmp.lt.s32.totalorder %v280, %v1864
    %v1866 = vsel %vm1865, %v1860, -1e+30
    %v1867 = vsel %vm285, %v1866, -inf
    %1868 = vmax.xlane.f32.xlu0 %v1867
    %v1869 = vpop.xlane.xlu0 %1868
    %v1870 = vsub.f32 %v1866, %v1869
    %v1871 = vmul.f32 %v1870, 1.442695
    %v1872 = vpow.pop %v1871
    %v1873 = vsel %vm285, %v1872, 0.0
    %1874 = vadd.xlane.f32.xlu0 %v1873
    %v1875 = vpop.xlane.xlu0 %1874
    %v1876 = vrcp.pop %v1875
    %v1877 = vmul.f32 %v1872, %v1876
    %v1879 = vsel %vm297, %v1877, 0
    %1881 = vmatprep.subr.mxu0 0.0
    %1882 = vmatpush1.msra.mxu0 %v1791
    %1883 = vmatprep.subr.mxu0 0.0
    %1884 = vmatpush1.msra.mxu0 0.0
    %1885 = vmatprep.subr.mxu0 0.0
    %1886 = vmatpush1.msra.mxu0 0.0
    %1887 = vmatprep.subr.mxu0 0.0
    %1888 = vmatpush1.msra.mxu0 0.0
    %1889 = vmatprep.subr.mxu0 0.0
    %1890 = vmatpush1.msra.mxu0 0.0
    %1891 = vmatprep.subr.mxu0 0.0
    %1892 = vmatpush1.msra.mxu0 0.0
    %1893 = vmatprep.subr.mxu0 0.0
    %1894 = vmatpush1.msra.mxu0 0.0
    %1895 = vmatprep.subr.mxu0 0.0
    %1896 = vmatpush1.msra.mxu0 0.0
    %1897 = vmatprep.subr.mxu0 0.0
    %1898 = vmatpush1.msra.mxu0 0.0
    %1899 = vmatprep.subr.mxu0 0.0
    %1900 = vmatpush1.msra.mxu0 0.0
    %1901 = vmatprep.subr.mxu0 0.0
    %1902 = vmatpush1.msra.mxu0 0.0
    %1903 = vmatprep.subr.mxu0 0.0
    %1904 = vmatpush1.msra.mxu0 0.0
    %1905 = vmatprep.subr.mxu0 0.0
    %1906 = vmatpush1.msra.mxu0 0.0
    %1907 = vmatprep.subr.mxu0 0.0
    %1908 = vmatpush1.msra.mxu0 0.0
    %1909 = vmatprep.subr.mxu0 0.0
    %1910 = vmatpush1.msra.mxu0 0.0
    %1911 = vmatprep.subr.mxu0 0.0
    %1912 = vmatpush1.msra.mxu0 0.0
    %1913 = vmatprep.subr.mxu0 0.0
    %1914 = vmatpush1.msra.mxu0 0.0
    %1915 = vmatprep.subr.mxu0 0.0
    %1916 = vmatpush1.msra.mxu0 0.0
    %1917 = vmatprep.subr.mxu0 0.0
    %1918 = vmatpush1.msra.mxu0 0.0
    %1919 = vmatprep.subr.mxu0 0.0
    %1920 = vmatpush1.msra.mxu0 0.0
    %1921 = vmatprep.subr.mxu0 0.0
    %1922 = vmatpush1.msra.mxu0 0.0
    %1923 = vmatprep.subr.mxu0 0.0
    %1924 = vmatpush1.msra.mxu0 0.0
    %1925 = vmatprep.subr.mxu0 0.0
    %1926 = vmatpush1.msra.mxu0 0.0
    %1927 = vmatprep.subr.mxu0 0.0
    %1928 = vmatpush1.msra.mxu0 0.0
    %1929 = vmatprep.subr.mxu0 0.0
    %1930 = vmatpush1.msra.mxu0 0.0
    %1931 = vmatprep.subr.mxu0 0.0
    %1932 = vmatpush1.msra.mxu0 0.0
    %1933 = vmatprep.subr.mxu0 0.0
    %1934 = vmatpush1.msra.mxu0 0.0
    %1935 = vmatprep.subr.mxu0 0.0
    %1936 = vmatpush1.msra.mxu0 0.0
    %1937 = vmatprep.subr.mxu0 0.0
    %1938 = vmatpush1.msra.mxu0 0.0
    %1939 = vmatprep.subr.mxu0 0.0
    %1940 = vmatpush1.msra.mxu0 0.0
    %1941 = vmatprep.subr.mxu0 0.0
    %1942 = vmatpush1.msra.mxu0 0.0
    %1943 = vmatprep.subr.mxu0 0.0
    %1944 = vmatpush1.msra.mxu0 0.0
    %1945 = vmatprep.mubr.f32.mxu0 0.0
    %1946 = vmatmul.mubr.f32.gmra.mrb[0].mxu0 %v1879
    %v1947 = vpop.f32.mrb[0].mxu0
    %v1948 = vadd.f32 0.0, %v1947
    %v1949 = vpop.f32.mrb[0].mxu0
    %1950 = vdwg.mxu0
    %1951 = vmatprep.subr.mxu0 0.0
    %1952 = vmatpush1.msra.mxu0 %v76
    %1953 = vmatprep.subr.mxu0 0.0
    %1954 = vmatpush1.msra.mxu0 %v77
    %1955 = vmatprep.subr.mxu0 0.0
    %1956 = vmatpush1.msra.mxu0 %v78
    %1957 = vmatprep.subr.mxu0 0.0
    %1958 = vmatpush1.msra.mxu0 %v79
    %1959 = vmatprep.subr.mxu0 0.0
    %1960 = vmatpush1.msra.mxu0 %v80
    %1961 = vmatprep.subr.mxu0 0.0
    %1962 = vmatpush1.msra.mxu0 %v81
    %1963 = vmatprep.subr.mxu0 0.0
    %1964 = vmatpush1.msra.mxu0 %v82
    %1965 = vmatprep.subr.mxu0 0.0
    %1966 = vmatpush1.msra.mxu0 %v83
    %1967 = vmatprep.subr.mxu0 0.0
    %1968 = vmatpush1.msra.mxu0 %v84
    %1969 = vmatprep.subr.mxu0 0.0
    %1970 = vmatpush1.msra.mxu0 %v85
    %1971 = vmatprep.subr.mxu0 0.0
    %1972 = vmatpush1.msra.mxu0 %v86
    %1973 = vmatprep.subr.mxu0 0.0
    %1974 = vmatpush1.msra.mxu0 %v87
    %1975 = vmatprep.subr.mxu0 0.0
    %1976 = vmatpush1.msra.mxu0 %v88
    %1977 = vmatprep.subr.mxu0 0.0
    %1978 = vmatpush1.msra.mxu0 %v89
    %1979 = vmatprep.subr.mxu0 0.0
    %1980 = vmatpush1.msra.mxu0 %v90
    %1981 = vmatprep.subr.mxu0 0.0
    %1982 = vmatpush1.msra.mxu0 %v91
    %1983 = vmatprep.subr.mxu0 0.0
    %1984 = vmatpush1.msra.mxu0 0.0
    %1985 = vmatprep.subr.mxu0 0.0
    %1986 = vmatpush1.msra.mxu0 0.0
    %1987 = vmatprep.subr.mxu0 0.0
    %1988 = vmatpush1.msra.mxu0 0.0
    %1989 = vmatprep.subr.mxu0 0.0
    %1990 = vmatpush1.msra.mxu0 0.0
    %1991 = vmatprep.subr.mxu0 0.0
    %1992 = vmatpush1.msra.mxu0 0.0
    %1993 = vmatprep.subr.mxu0 0.0
    %1994 = vmatpush1.msra.mxu0 0.0
    %1995 = vmatprep.subr.mxu0 0.0
    %1996 = vmatpush1.msra.mxu0 0.0
    %1997 = vmatprep.subr.mxu0 0.0
    %1998 = vmatpush1.msra.mxu0 0.0
    %1999 = vmatprep.subr.mxu0 0.0
    %2000 = vmatpush1.msra.mxu0 0.0
    %2001 = vmatprep.subr.mxu0 0.0
    %2002 = vmatpush1.msra.mxu0 0.0
    %2003 = vmatprep.subr.mxu0 0.0
    %2004 = vmatpush1.msra.mxu0 0.0
    %2005 = vmatprep.subr.mxu0 0.0
    %2006 = vmatpush1.msra.mxu0 0.0
    %2007 = vmatprep.subr.mxu0 0.0
    %2008 = vmatpush1.msra.mxu0 0.0
    %2009 = vmatprep.subr.mxu0 0.0
    %2010 = vmatpush1.msra.mxu0 0.0
    %2011 = vmatprep.subr.mxu0 0.0
    %2012 = vmatpush1.msra.mxu0 0.0
    %2013 = vmatprep.subr.mxu0 0.0
    %2014 = vmatpush1.msra.mxu0 0.0
    %2015 = vmatprep.mubr.f32.mxu0 0.0
    %2016 = vmatmul.mubr.f32.gmra.mrb[0].mxu0 %v1706
    %v2017 = vpop.f32.mrb[0].mxu0
    %v2018 = vadd.f32 0.0, %v2017
    %v2019 = vpop.f32.mrb[0].mxu0
    %2020 = vdwg.mxu0
    %2021 = vmatprep.subr.mxu0 0.0
    %2022 = vmatpush1.msra.mxu0 %v60
    %2023 = vmatprep.subr.mxu0 0.0
    %2024 = vmatpush1.msra.mxu0 %v61
    %2025 = vmatprep.subr.mxu0 0.0
    %2026 = vmatpush1.msra.mxu0 %v62
    %2027 = vmatprep.subr.mxu0 0.0
    %2028 = vmatpush1.msra.mxu0 %v63
    %2029 = vmatprep.subr.mxu0 0.0
    %2030 = vmatpush1.msra.mxu0 %v64
    %2031 = vmatprep.subr.mxu0 0.0
    %2032 = vmatpush1.msra.mxu0 %v65
    %2033 = vmatprep.subr.mxu0 0.0
    %2034 = vmatpush1.msra.mxu0 %v66
    %2035 = vmatprep.subr.mxu0 0.0
    %2036 = vmatpush1.msra.mxu0 %v67
    %2037 = vmatprep.subr.mxu0 0.0
    %2038 = vmatpush1.msra.mxu0 %v68
    %2039 = vmatprep.subr.mxu0 0.0
    %2040 = vmatpush1.msra.mxu0 %v69
    %2041 = vmatprep.subr.mxu0 0.0
    %2042 = vmatpush1.msra.mxu0 %v70
    %2043 = vmatprep.subr.mxu0 0.0
    %2044 = vmatpush1.msra.mxu0 %v71
    %2045 = vmatprep.subr.mxu0 0.0
    %2046 = vmatpush1.msra.mxu0 %v72
    %2047 = vmatprep.subr.mxu0 0.0
    %2048 = vmatpush1.msra.mxu0 %v73
    %2049 = vmatprep.subr.mxu0 0.0
    %2050 = vmatpush1.msra.mxu0 %v74
    %2051 = vmatprep.subr.mxu0 0.0
    %2052 = vmatpush1.msra.mxu0 %v75
    %2053 = vmatprep.subr.mxu0 0.0
    %2054 = vmatpush1.msra.mxu0 0.0
    %2055 = vmatprep.subr.mxu0 0.0
    %2056 = vmatpush1.msra.mxu0 0.0
    %2057 = vmatprep.subr.mxu0 0.0
    %2058 = vmatpush1.msra.mxu0 0.0
    %2059 = vmatprep.subr.mxu0 0.0
    %2060 = vmatpush1.msra.mxu0 0.0
    %2061 = vmatprep.subr.mxu0 0.0
    %2062 = vmatpush1.msra.mxu0 0.0
    %2063 = vmatprep.subr.mxu0 0.0
    %2064 = vmatpush1.msra.mxu0 0.0
    %2065 = vmatprep.subr.mxu0 0.0
    %2066 = vmatpush1.msra.mxu0 0.0
    %2067 = vmatprep.subr.mxu0 0.0
    %2068 = vmatpush1.msra.mxu0 0.0
    %2069 = vmatprep.subr.mxu0 0.0
    %2070 = vmatpush1.msra.mxu0 0.0
    %2071 = vmatprep.subr.mxu0 0.0
    %2072 = vmatpush1.msra.mxu0 0.0
    %2073 = vmatprep.subr.mxu0 0.0
    %2074 = vmatpush1.msra.mxu0 0.0
    %2075 = vmatprep.subr.mxu0 0.0
    %2076 = vmatpush1.msra.mxu0 0.0
    %2077 = vmatprep.subr.mxu0 0.0
    %2078 = vmatpush1.msra.mxu0 0.0
    %2079 = vmatprep.subr.mxu0 0.0
    %2080 = vmatpush1.msra.mxu0 0.0
    %2081 = vmatprep.subr.mxu0 0.0
    %2082 = vmatpush1.msra.mxu0 0.0
    %2083 = vmatprep.subr.mxu0 0.0
    %2084 = vmatpush1.msra.mxu0 0.0
    %2085 = vmatprep.mubr.f32.mxu0 0.0
    %2086 = vmatmul.mubr.f32.gmra.mrb[0].mxu0 %v1948
    %v2087 = vpop.f32.mrb[0].mxu0
    %v2088 = vadd.f32 %v2018, %v2087
    %v2089 = vpop.f32.mrb[0].mxu0
    %2090 = vdwg.mxu0
    %v2091 = vtanh.pop %v2088
    %v2092 = vrot.slane %v30, 5
    %v2093 = vrot.slane %v31, 4
    %v2094 = vsel %vm99, %v2093, %v2092
    %v2095 = vrot.slane %v32, 3
    %v2096 = vsel %vm102, %v2095, %v2094
    %v2097 = vrot.slane %v33, 2
    %v2098 = vsel %vm105, %v2097, %v2096
    %v2099 = vrot.slane %v34, 1
    %v2100 = vsel %vm108, %v2099, %v2098
    %v2101 = vsel %vm111, %v35, %v2100
    %2103 = vmatprep.subr.mxu0 0.0
    %2104 = vmatpush1.msra.mxu0 %v44
    %2105 = vmatprep.subr.mxu0 0.0
    %2106 = vmatpush1.msra.mxu0 %v45
    %2107 = vmatprep.subr.mxu0 0.0
    %2108 = vmatpush1.msra.mxu0 %v46
    %2109 = vmatprep.subr.mxu0 0.0
    %2110 = vmatpush1.msra.mxu0 %v47
    %2111 = vmatprep.subr.mxu0 0.0
    %2112 = vmatpush1.msra.mxu0 %v48
    %2113 = vmatprep.subr.mxu0 0.0
    %2114 = vmatpush1.msra.mxu0 %v49
    %2115 = vmatprep.subr.mxu0 0.0
    %2116 = vmatpush1.msra.mxu0 %v50
    %2117 = vmatprep.subr.mxu0 0.0
    %2118 = vmatpush1.msra.mxu0 %v51
    %2119 = vmatprep.subr.mxu0 0.0
    %2120 = vmatpush1.msra.mxu0 %v52
    %2121 = vmatprep.subr.mxu0 0.0
    %2122 = vmatpush1.msra.mxu0 %v53
    %2123 = vmatprep.subr.mxu0 0.0
    %2124 = vmatpush1.msra.mxu0 %v54
    %2125 = vmatprep.subr.mxu0 0.0
    %2126 = vmatpush1.msra.mxu0 %v55
    %2127 = vmatprep.subr.mxu0 0.0
    %2128 = vmatpush1.msra.mxu0 %v56
    %2129 = vmatprep.subr.mxu0 0.0
    %2130 = vmatpush1.msra.mxu0 %v57
    %2131 = vmatprep.subr.mxu0 0.0
    %2132 = vmatpush1.msra.mxu0 %v58
    %2133 = vmatprep.subr.mxu0 0.0
    %2134 = vmatpush1.msra.mxu0 %v59
    %2135 = vmatprep.subr.mxu0 0.0
    %2136 = vmatpush1.msra.mxu0 0.0
    %2137 = vmatprep.subr.mxu0 0.0
    %2138 = vmatpush1.msra.mxu0 0.0
    %2139 = vmatprep.subr.mxu0 0.0
    %2140 = vmatpush1.msra.mxu0 0.0
    %2141 = vmatprep.subr.mxu0 0.0
    %2142 = vmatpush1.msra.mxu0 0.0
    %2143 = vmatprep.subr.mxu0 0.0
    %2144 = vmatpush1.msra.mxu0 0.0
    %2145 = vmatprep.subr.mxu0 0.0
    %2146 = vmatpush1.msra.mxu0 0.0
    %2147 = vmatprep.subr.mxu0 0.0
    %2148 = vmatpush1.msra.mxu0 0.0
    %2149 = vmatprep.subr.mxu0 0.0
    %2150 = vmatpush1.msra.mxu0 0.0
    %2151 = vmatprep.subr.mxu0 0.0
    %2152 = vmatpush1.msra.mxu0 0.0
    %2153 = vmatprep.subr.mxu0 0.0
    %2154 = vmatpush1.msra.mxu0 0.0
    %2155 = vmatprep.subr.mxu0 0.0
    %2156 = vmatpush1.msra.mxu0 0.0
    %2157 = vmatprep.subr.mxu0 0.0
    %2158 = vmatpush1.msra.mxu0 0.0
    %2159 = vmatprep.subr.mxu0 0.0
    %2160 = vmatpush1.msra.mxu0 0.0
    %2161 = vmatprep.subr.mxu0 0.0
    %2162 = vmatpush1.msra.mxu0 0.0
    %2163 = vmatprep.subr.mxu0 0.0
    %2164 = vmatpush1.msra.mxu0 0.0
    %2165 = vmatprep.subr.mxu0 0.0
    %2166 = vmatpush1.msra.mxu0 0.0
    %2167 = vmatprep.mubr.f32.mxu0 0.0
    %2168 = vmatmul.mubr.f32.gmra.mrb[0].mxu0 %v2101
    %v2169 = vpop.f32.mrb[0].mxu0
    %v2170 = vadd.f32 0.0, %v2169
    %v2171 = vpop.f32.mrb[0].mxu0
    %2172 = vdwg.mxu0
    %v2173 = vrot.slane %v36, 5
    %v2174 = vrot.slane %v37, 4
    %v2175 = vsel %vm99, %v2174, %v2173
    %v2176 = vrot.slane %v38, 3
    %v2177 = vsel %vm102, %v2176, %v2175
    %v2178 = vrot.slane %v39, 2
    %v2179 = vsel %vm105, %v2178, %v2177
    %v2180 = vrot.slane %v40, 1
    %v2181 = vsel %vm108, %v2180, %v2179
    %v2182 = vsel %vm111, %v41, %v2181
    %v2183 = vrot.slane %v42, 7
    %v2184 = vsel %vm203, %v2183, %v2182
    %v2185 = vrot.slane %v43, 6
    %v2186 = vsel %vm206, %v2185, %v2184
    %2188 = vmatprep.subr.mxu0 0.0
    %2189 = vmatpush1.xpose.msra.mxu0 %v2186
    %2190 = vmatprep.subr.mxu0 0.0
    %2191 = vmatpush1.xpose.msra.mxu0 0.0
    %2192 = vmatprep.subr.mxu0 0.0
    %2193 = vmatpush1.xpose.msra.mxu0 0.0
    %2194 = vmatprep.subr.mxu0 0.0
    %2195 = vmatpush1.xpose.msra.mxu0 0.0
    %2196 = vmatprep.subr.mxu0 0.0
    %2197 = vmatpush1.xpose.msra.mxu0 0.0
    %2198 = vmatprep.subr.mxu0 0.0
    %2199 = vmatpush1.xpose.msra.mxu0 0.0
    %2200 = vmatprep.subr.mxu0 0.0
    %2201 = vmatpush1.xpose.msra.mxu0 0.0
    %2202 = vmatprep.subr.mxu0 0.0
    %2203 = vmatpush1.xpose.msra.mxu0 0.0
    %2204 = vmatprep.subr.mxu0 0.0
    %2205 = vmatpush1.xpose.msra.mxu0 0.0
    %2206 = vmatprep.subr.mxu0 0.0
    %2207 = vmatpush1.xpose.msra.mxu0 0.0
    %2208 = vmatprep.subr.mxu0 0.0
    %2209 = vmatpush1.xpose.msra.mxu0 0.0
    %2210 = vmatprep.subr.mxu0 0.0
    %2211 = vmatpush1.xpose.msra.mxu0 0.0
    %2212 = vmatprep.subr.mxu0 0.0
    %2213 = vmatpush1.xpose.msra.mxu0 0.0
    %2214 = vmatprep.subr.mxu0 0.0
    %2215 = vmatpush1.xpose.msra.mxu0 0.0
    %2216 = vmatprep.subr.mxu0 0.0
    %2217 = vmatpush1.xpose.msra.mxu0 0.0
    %2218 = vmatprep.subr.mxu0 0.0
    %2219 = vmatpush1.xpose.msra.mxu0 0.0
    %2220 = vmatprep.subr.mxu0 0.0
    %2221 = vmatpush1.xpose.msra.mxu0 0.0
    %2222 = vmatprep.subr.mxu0 0.0
    %2223 = vmatpush1.xpose.msra.mxu0 0.0
    %2224 = vmatprep.subr.mxu0 0.0
    %2225 = vmatpush1.xpose.msra.mxu0 0.0
    %2226 = vmatprep.subr.mxu0 0.0
    %2227 = vmatpush1.xpose.msra.mxu0 0.0
    %2228 = vmatprep.subr.mxu0 0.0
    %2229 = vmatpush1.xpose.msra.mxu0 0.0
    %2230 = vmatprep.subr.mxu0 0.0
    %2231 = vmatpush1.xpose.msra.mxu0 0.0
    %2232 = vmatprep.subr.mxu0 0.0
    %2233 = vmatpush1.xpose.msra.mxu0 0.0
    %2234 = vmatprep.subr.mxu0 0.0
    %2235 = vmatpush1.xpose.msra.mxu0 0.0
    %2236 = vmatprep.subr.mxu0 0.0
    %2237 = vmatpush1.xpose.msra.mxu0 0.0
    %2238 = vmatprep.subr.mxu0 0.0
    %2239 = vmatpush1.xpose.msra.mxu0 0.0
    %2240 = vmatprep.subr.mxu0 0.0
    %2241 = vmatpush1.xpose.msra.mxu0 0.0
    %2242 = vmatprep.subr.mxu0 0.0
    %2243 = vmatpush1.xpose.msra.mxu0 0.0
    %2244 = vmatprep.subr.mxu0 0.0
    %2245 = vmatpush1.xpose.msra.mxu0 0.0
    %2246 = vmatprep.subr.mxu0 0.0
    %2247 = vmatpush1.xpose.msra.mxu0 0.0
    %2248 = vmatprep.subr.mxu0 0.0
    %2249 = vmatpush1.xpose.msra.mxu0 0.0
    %2250 = vmatprep.subr.mxu0 0.0
    %2251 = vmatpush1.xpose.msra.mxu0 0.0
    %2252 = vmatprep.mubr.f32.mxu0 0.0
    %2253 = vmatmul.mubr.f32.gmra.mrb[0].mxu0 %v2170
    %v2254 = vpop.f32.mrb[0].mxu0
    %v2255 = vadd.f32 0.0, %v2254
    %v2256 = vpop.f32.mrb[0].mxu0
    %2257 = vdwg.mxu0
    %s2258 = sld [smem:[#allocation3 + $0x5]]
    %v2259 = vstv %s2258
    %vm2260 = vcmp.lt.s32.totalorder %v280, %v2259
    %v2261 = vsel %vm2260, %v2255, -1e+30
    %v2262 = vsel %vm285, %v2261, -inf
    %2263 = vmax.xlane.f32.xlu0 %v2262
    %v2264 = vpop.xlane.xlu0 %2263
    %v2265 = vsub.f32 %v2261, %v2264
    %v2266 = vmul.f32 %v2265, 1.442695
    %v2267 = vpow.pop %v2266
    %v2268 = vsel %vm285, %v2267, 0.0
    %2269 = vadd.xlane.f32.xlu0 %v2268
    %v2270 = vpop.xlane.xlu0 %2269
    %v2271 = vrcp.pop %v2270
    %v2272 = vmul.f32 %v2267, %v2271
    %v2274 = vsel %vm297, %v2272, 0
    %2276 = vmatprep.subr.mxu0 0.0
    %2277 = vmatpush1.msra.mxu0 %v2186
    %2278 = vmatprep.subr.mxu0 0.0
    %2279 = vmatpush1.msra.mxu0 0.0
    %2280 = vmatprep.subr.mxu0 0.0
    %2281 = vmatpush1.msra.mxu0 0.0
    %2282 = vmatprep.subr.mxu0 0.0
    %2283 = vmatpush1.msra.mxu0 0.0
    %2284 = vmatprep.subr.mxu0 0.0
    %2285 = vmatpush1.msra.mxu0 0.0
    %2286 = vmatprep.subr.mxu0 0.0
    %2287 = vmatpush1.msra.mxu0 0.0
    %2288 = vmatprep.subr.mxu0 0.0
    %2289 = vmatpush1.msra.mxu0 0.0
    %2290 = vmatprep.subr.mxu0 0.0
    %2291 = vmatpush1.msra.mxu0 0.0
    %2292 = vmatprep.subr.mxu0 0.0
    %2293 = vmatpush1.msra.mxu0 0.0
    %2294 = vmatprep.subr.mxu0 0.0
    %2295 = vmatpush1.msra.mxu0 0.0
    %2296 = vmatprep.subr.mxu0 0.0
    %2297 = vmatpush1.msra.mxu0 0.0
    %2298 = vmatprep.subr.mxu0 0.0
    %2299 = vmatpush1.msra.mxu0 0.0
    %2300 = vmatprep.subr.mxu0 0.0
    %2301 = vmatpush1.msra.mxu0 0.0
    %2302 = vmatprep.subr.mxu0 0.0
    %2303 = vmatpush1.msra.mxu0 0.0
    %2304 = vmatprep.subr.mxu0 0.0
    %2305 = vmatpush1.msra.mxu0 0.0
    %2306 = vmatprep.subr.mxu0 0.0
    %2307 = vmatpush1.msra.mxu0 0.0
    %2308 = vmatprep.subr.mxu0 0.0
    %2309 = vmatpush1.msra.mxu0 0.0
    %2310 = vmatprep.subr.mxu0 0.0
    %2311 = vmatpush1.msra.mxu0 0.0
    %2312 = vmatprep.subr.mxu0 0.0
    %2313 = vmatpush1.msra.mxu0 0.0
    %2314 = vmatprep.subr.mxu0 0.0
    %2315 = vmatpush1.msra.mxu0 0.0
    %2316 = vmatprep.subr.mxu0 0.0
    %2317 = vmatpush1.msra.mxu0 0.0
    %2318 = vmatprep.subr.mxu0 0.0
    %2319 = vmatpush1.msra.mxu0 0.0
    %2320 = vmatprep.subr.mxu0 0.0
    %2321 = vmatpush1.msra.mxu0 0.0
    %2322 = vmatprep.subr.mxu0 0.0
    %2323 = vmatpush1.msra.mxu0 0.0
    %2324 = vmatprep.subr.mxu0 0.0
    %2325 = vmatpush1.msra.mxu0 0.0
    %2326 = vmatprep.subr.mxu0 0.0
    %2327 = vmatpush1.msra.mxu0 0.0
    %2328 = vmatprep.subr.mxu0 0.0
    %2329 = vmatpush1.msra.mxu0 0.0
    %2330 = vmatprep.subr.mxu0 0.0
    %2331 = vmatpush1.msra.mxu0 0.0
    %2332 = vmatprep.subr.mxu0 0.0
    %2333 = vmatpush1.msra.mxu0 0.0
    %2334 = vmatprep.subr.mxu0 0.0
    %2335 = vmatpush1.msra.mxu0 0.0
    %2336 = vmatprep.subr.mxu0 0.0
    %2337 = vmatpush1.msra.mxu0 0.0
    %2338 = vmatprep.subr.mxu0 0.0
    %2339 = vmatpush1.msra.mxu0 0.0
    %2340 = vmatprep.mubr.f32.mxu0 0.0
    %2341 = vmatmul.mubr.f32.gmra.mrb[0].mxu0 %v2274
    %v2342 = vpop.f32.mrb[0].mxu0
    %v2343 = vadd.f32 0.0, %v2342
    %v2344 = vpop.f32.mrb[0].mxu0
    %2345 = vdwg.mxu0
    %2346 = vmatprep.subr.mxu0 0.0
    %2347 = vmatpush1.msra.mxu0 %v76
    %2348 = vmatprep.subr.mxu0 0.0
    %2349 = vmatpush1.msra.mxu0 %v77
    %2350 = vmatprep.subr.mxu0 0.0
    %2351 = vmatpush1.msra.mxu0 %v78
    %2352 = vmatprep.subr.mxu0 0.0
    %2353 = vmatpush1.msra.mxu0 %v79
    %2354 = vmatprep.subr.mxu0 0.0
    %2355 = vmatpush1.msra.mxu0 %v80
    %2356 = vmatprep.subr.mxu0 0.0
    %2357 = vmatpush1.msra.mxu0 %v81
    %2358 = vmatprep.subr.mxu0 0.0
    %2359 = vmatpush1.msra.mxu0 %v82
    %2360 = vmatprep.subr.mxu0 0.0
    %2361 = vmatpush1.msra.mxu0 %v83
    %2362 = vmatprep.subr.mxu0 0.0
    %2363 = vmatpush1.msra.mxu0 %v84
    %2364 = vmatprep.subr.mxu0 0.0
    %2365 = vmatpush1.msra.mxu0 %v85
    %2366 = vmatprep.subr.mxu0 0.0
    %2367 = vmatpush1.msra.mxu0 %v86
    %2368 = vmatprep.subr.mxu0 0.0
    %2369 = vmatpush1.msra.mxu0 %v87
    %2370 = vmatprep.subr.mxu0 0.0
    %2371 = vmatpush1.msra.mxu0 %v88
    %2372 = vmatprep.subr.mxu0 0.0
    %2373 = vmatpush1.msra.mxu0 %v89
    %2374 = vmatprep.subr.mxu0 0.0
    %2375 = vmatpush1.msra.mxu0 %v90
    %2376 = vmatprep.subr.mxu0 0.0
    %2377 = vmatpush1.msra.mxu0 %v91
    %2378 = vmatprep.subr.mxu0 0.0
    %2379 = vmatpush1.msra.mxu0 0.0
    %2380 = vmatprep.subr.mxu0 0.0
    %2381 = vmatpush1.msra.mxu0 0.0
    %2382 = vmatprep.subr.mxu0 0.0
    %2383 = vmatpush1.msra.mxu0 0.0
    %2384 = vmatprep.subr.mxu0 0.0
    %2385 = vmatpush1.msra.mxu0 0.0
    %2386 = vmatprep.subr.mxu0 0.0
    %2387 = vmatpush1.msra.mxu0 0.0
    %2388 = vmatprep.subr.mxu0 0.0
    %2389 = vmatpush1.msra.mxu0 0.0
    %2390 = vmatprep.subr.mxu0 0.0
    %2391 = vmatpush1.msra.mxu0 0.0
    %2392 = vmatprep.subr.mxu0 0.0
    %2393 = vmatpush1.msra.mxu0 0.0
    %2394 = vmatprep.subr.mxu0 0.0
    %2395 = vmatpush1.msra.mxu0 0.0
    %2396 = vmatprep.subr.mxu0 0.0
    %2397 = vmatpush1.msra.mxu0 0.0
    %2398 = vmatprep.subr.mxu0 0.0
    %2399 = vmatpush1.msra.mxu0 0.0
    %2400 = vmatprep.subr.mxu0 0.0
    %2401 = vmatpush1.msra.mxu0 0.0
    %2402 = vmatprep.subr.mxu0 0.0
    %2403 = vmatpush1.msra.mxu0 0.0
    %2404 = vmatprep.subr.mxu0 0.0
    %2405 = vmatpush1.msra.mxu0 0.0
    %2406 = vmatprep.subr.mxu0 0.0
    %2407 = vmatpush1.msra.mxu0 0.0
    %2408 = vmatprep.subr.mxu0 0.0
    %2409 = vmatpush1.msra.mxu0 0.0
    %2410 = vmatprep.mubr.f32.mxu0 0.0
    %2411 = vmatmul.mubr.f32.gmra.mrb[0].mxu0 %v2101
    %v2412 = vpop.f32.mrb[0].mxu0
    %v2413 = vadd.f32 0.0, %v2412
    %v2414 = vpop.f32.mrb[0].mxu0
    %2415 = vdwg.mxu0
    %2416 = vmatprep.subr.mxu0 0.0
    %2417 = vmatpush1.msra.mxu0 %v60
    %2418 = vmatprep.subr.mxu0 0.0
    %2419 = vmatpush1.msra.mxu0 %v61
    %2420 = vmatprep.subr.mxu0 0.0
    %2421 = vmatpush1.msra.mxu0 %v62
    %2422 = vmatprep.subr.mxu0 0.0
    %2423 = vmatpush1.msra.mxu0 %v63
    %2424 = vmatprep.subr.mxu0 0.0
    %2425 = vmatpush1.msra.mxu0 %v64
    %2426 = vmatprep.subr.mxu0 0.0
    %2427 = vmatpush1.msra.mxu0 %v65
    %2428 = vmatprep.subr.mxu0 0.0
    %2429 = vmatpush1.msra.mxu0 %v66
    %2430 = vmatprep.subr.mxu0 0.0
    %2431 = vmatpush1.msra.mxu0 %v67
    %2432 = vmatprep.subr.mxu0 0.0
    %2433 = vmatpush1.msra.mxu0 %v68
    %2434 = vmatprep.subr.mxu0 0.0
    %2435 = vmatpush1.msra.mxu0 %v69
    %2436 = vmatprep.subr.mxu0 0.0
    %2437 = vmatpush1.msra.mxu0 %v70
    %2438 = vmatprep.subr.mxu0 0.0
    %2439 = vmatpush1.msra.mxu0 %v71
    %2440 = vmatprep.subr.mxu0 0.0
    %2441 = vmatpush1.msra.mxu0 %v72
    %2442 = vmatprep.subr.mxu0 0.0
    %2443 = vmatpush1.msra.mxu0 %v73
    %2444 = vmatprep.subr.mxu0 0.0
    %2445 = vmatpush1.msra.mxu0 %v74
    %2446 = vmatprep.subr.mxu0 0.0
    %2447 = vmatpush1.msra.mxu0 %v75
    %2448 = vmatprep.subr.mxu0 0.0
    %2449 = vmatpush1.msra.mxu0 0.0
    %2450 = vmatprep.subr.mxu0 0.0
    %2451 = vmatpush1.msra.mxu0 0.0
    %2452 = vmatprep.subr.mxu0 0.0
    %2453 = vmatpush1.msra.mxu0 0.0
    %2454 = vmatprep.subr.mxu0 0.0
    %2455 = vmatpush1.msra.mxu0 0.0
    %2456 = vmatprep.subr.mxu0 0.0
    %2457 = vmatpush1.msra.mxu0 0.0
    %2458 = vmatprep.subr.mxu0 0.0
    %2459 = vmatpush1.msra.mxu0 0.0
    %2460 = vmatprep.subr.mxu0 0.0
    %2461 = vmatpush1.msra.mxu0 0.0
    %2462 = vmatprep.subr.mxu0 0.0
    %2463 = vmatpush1.msra.mxu0 0.0
    %2464 = vmatprep.subr.mxu0 0.0
    %2465 = vmatpush1.msra.mxu0 0.0
    %2466 = vmatprep.subr.mxu0 0.0
    %2467 = vmatpush1.msra.mxu0 0.0
    %2468 = vmatprep.subr.mxu0 0.0
    %2469 = vmatpush1.msra.mxu0 0.0
    %2470 = vmatprep.subr.mxu0 0.0
    %2471 = vmatpush1.msra.mxu0 0.0
    %2472 = vmatprep.subr.mxu0 0.0
    %2473 = vmatpush1.msra.mxu0 0.0
    %2474 = vmatprep.subr.mxu0 0.0
    %2475 = vmatpush1.msra.mxu0 0.0
    %2476 = vmatprep.subr.mxu0 0.0
    %2477 = vmatpush1.msra.mxu0 0.0
    %2478 = vmatprep.subr.mxu0 0.0
    %2479 = vmatpush1.msra.mxu0 0.0
    %2480 = vmatprep.mubr.f32.mxu0 0.0
    %2481 = vmatmul.mubr.f32.gmra.mrb[0].mxu0 %v2343
    %v2482 = vpop.f32.mrb[0].mxu0
    %v2483 = vadd.f32 %v2413, %v2482
    %v2484 = vpop.f32.mrb[0].mxu0
    %2485 = vdwg.mxu0
    %v2486 = vtanh.pop %v2483
    %v2487 = vrot.slane %v30, 6
    %v2488 = vrot.slane %v31, 5
    %v2489 = vsel %vm99, %v2488, %v2487
    %v2490 = vrot.slane %v32, 4
    %v2491 = vsel %vm102, %v2490, %v2489
    %v2492 = vrot.slane %v33, 3
    %v2493 = vsel %vm105, %v2492, %v2491
    %v2494 = vrot.slane %v34, 2
    %v2495 = vsel %vm108, %v2494, %v2493
    %v2496 = vrot.slane %v35, 1
    %v2497 = vsel %vm111, %v2496, %v2495
    %2499 = vmatprep.subr.mxu0 0.0
    %2500 = vmatpush1.msra.mxu0 %v44
    %2501 = vmatprep.subr.mxu0 0.0
    %2502 = vmatpush1.msra.mxu0 %v45
    %2503 = vmatprep.subr.mxu0 0.0
    %2504 = vmatpush1.msra.mxu0 %v46
    %2505 = vmatprep.subr.mxu0 0.0
    %2506 = vmatpush1.msra.mxu0 %v47
    %2507 = vmatprep.subr.mxu0 0.0
    %2508 = vmatpush1.msra.mxu0 %v48
    %2509 = vmatprep.subr.mxu0 0.0
    %2510 = vmatpush1.msra.mxu0 %v49
    %2511 = vmatprep.subr.mxu0 0.0
    %2512 = vmatpush1.msra.mxu0 %v50
    %2513 = vmatprep.subr.mxu0 0.0
    %2514 = vmatpush1.msra.mxu0 %v51
    %2515 = vmatprep.subr.mxu0 0.0
    %2516 = vmatpush1.msra.mxu0 %v52
    %2517 = vmatprep.subr.mxu0 0.0
    %2518 = vmatpush1.msra.mxu0 %v53
    %2519 = vmatprep.subr.mxu0 0.0
    %2520 = vmatpush1.msra.mxu0 %v54
    %2521 = vmatprep.subr.mxu0 0.0
    %2522 = vmatpush1.msra.mxu0 %v55
    %2523 = vmatprep.subr.mxu0 0.0
    %2524 = vmatpush1.msra.mxu0 %v56
    %2525 = vmatprep.subr.mxu0 0.0
    %2526 = vmatpush1.msra.mxu0 %v57
    %2527 = vmatprep.subr.mxu0 0.0
    %2528 = vmatpush1.msra.mxu0 %v58
    %2529 = vmatprep.subr.mxu0 0.0
    %2530 = vmatpush1.msra.mxu0 %v59
    %2531 = vmatprep.subr.mxu0 0.0
    %2532 = vmatpush1.msra.mxu0 0.0
    %2533 = vmatprep.subr.mxu0 0.0
    %2534 = vmatpush1.msra.mxu0 0.0
    %2535 = vmatprep.subr.mxu0 0.0
    %2536 = vmatpush1.msra.mxu0 0.0
    %2537 = vmatprep.subr.mxu0 0.0
    %2538 = vmatpush1.msra.mxu0 0.0
    %2539 = vmatprep.subr.mxu0 0.0
    %2540 = vmatpush1.msra.mxu0 0.0
    %2541 = vmatprep.subr.mxu0 0.0
    %2542 = vmatpush1.msra.mxu0 0.0
    %2543 = vmatprep.subr.mxu0 0.0
    %2544 = vmatpush1.msra.mxu0 0.0
    %2545 = vmatprep.subr.mxu0 0.0
    %2546 = vmatpush1.msra.mxu0 0.0
    %2547 = vmatprep.subr.mxu0 0.0
    %2548 = vmatpush1.msra.mxu0 0.0
    %2549 = vmatprep.subr.mxu0 0.0
    %2550 = vmatpush1.msra.mxu0 0.0
    %2551 = vmatprep.subr.mxu0 0.0
    %2552 = vmatpush1.msra.mxu0 0.0
    %2553 = vmatprep.subr.mxu0 0.0
    %2554 = vmatpush1.msra.mxu0 0.0
    %2555 = vmatprep.subr.mxu0 0.0
    %2556 = vmatpush1.msra.mxu0 0.0
    %2557 = vmatprep.subr.mxu0 0.0
    %2558 = vmatpush1.msra.mxu0 0.0
    %2559 = vmatprep.subr.mxu0 0.0
    %2560 = vmatpush1.msra.mxu0 0.0
    %2561 = vmatprep.subr.mxu0 0.0
    %2562 = vmatpush1.msra.mxu0 0.0
    %2563 = vmatprep.mubr.f32.mxu0 0.0
    %2564 = vmatmul.mubr.f32.gmra.mrb[0].mxu0 %v2497
    %v2565 = vpop.f32.mrb[0].mxu0
    %v2566 = vadd.f32 0.0, %v2565
    %v2567 = vpop.f32.mrb[0].mxu0
    %2568 = vdwg.mxu0
    %v2569 = vrot.slane %v36, 6
    %v2570 = vrot.slane %v37, 5
    %v2571 = vsel %vm99, %v2570, %v2569
    %v2572 = vrot.slane %v38, 4
    %v2573 = vsel %vm102, %v2572, %v2571
    %v2574 = vrot.slane %v39, 3
    %v2575 = vsel %vm105, %v2574, %v2573
    %v2576 = vrot.slane %v40, 2
    %v2577 = vsel %vm108, %v2576, %v2575
    %v2578 = vrot.slane %v41, 1
    %v2579 = vsel %vm111, %v2578, %v2577
    %v2580 = vsel %vm203, %v42, %v2579
    %v2581 = vrot.slane %v43, 7
    %v2582 = vsel %vm206, %v2581, %v2580
    %2584 = vmatprep.subr.mxu0 0.0
    %2585 = vmatpush1.xpose.msra.mxu0 %v2582
    %2586 = vmatprep.subr.mxu0 0.0
    %2587 = vmatpush1.xpose.msra.mxu0 0.0
    %2588 = vmatprep.subr.mxu0 0.0
    %2589 = vmatpush1.xpose.msra.mxu0 0.0
    %2590 = vmatprep.subr.mxu0 0.0
    %2591 = vmatpush1.xpose.msra.mxu0 0.0
    %2592 = vmatprep.subr.mxu0 0.0
    %2593 = vmatpush1.xpose.msra.mxu0 0.0
    %2594 = vmatprep.subr.mxu0 0.0
    %2595 = vmatpush1.xpose.msra.mxu0 0.0
    %2596 = vmatprep.subr.mxu0 0.0
    %2597 = vmatpush1.xpose.msra.mxu0 0.0
    %2598 = vmatprep.subr.mxu0 0.0
    %2599 = vmatpush1.xpose.msra.mxu0 0.0
    %2600 = vmatprep.subr.mxu0 0.0
    %2601 = vmatpush1.xpose.msra.mxu0 0.0
    %2602 = vmatprep.subr.mxu0 0.0
    %2603 = vmatpush1.xpose.msra.mxu0 0.0
    %2604 = vmatprep.subr.mxu0 0.0
    %2605 = vmatpush1.xpose.msra.mxu0 0.0
    %2606 = vmatprep.subr.mxu0 0.0
    %2607 = vmatpush1.xpose.msra.mxu0 0.0
    %2608 = vmatprep.subr.mxu0 0.0
    %2609 = vmatpush1.xpose.msra.mxu0 0.0
    %2610 = vmatprep.subr.mxu0 0.0
    %2611 = vmatpush1.xpose.msra.mxu0 0.0
    %2612 = vmatprep.subr.mxu0 0.0
    %2613 = vmatpush1.xpose.msra.mxu0 0.0
    %2614 = vmatprep.subr.mxu0 0.0
    %2615 = vmatpush1.xpose.msra.mxu0 0.0
    %2616 = vmatprep.subr.mxu0 0.0
    %2617 = vmatpush1.xpose.msra.mxu0 0.0
    %2618 = vmatprep.subr.mxu0 0.0
    %2619 = vmatpush1.xpose.msra.mxu0 0.0
    %2620 = vmatprep.subr.mxu0 0.0
    %2621 = vmatpush1.xpose.msra.mxu0 0.0
    %2622 = vmatprep.subr.mxu0 0.0
    %2623 = vmatpush1.xpose.msra.mxu0 0.0
    %2624 = vmatprep.subr.mxu0 0.0
    %2625 = vmatpush1.xpose.msra.mxu0 0.0
    %2626 = vmatprep.subr.mxu0 0.0
    %2627 = vmatpush1.xpose.msra.mxu0 0.0
    %2628 = vmatprep.subr.mxu0 0.0
    %2629 = vmatpush1.xpose.msra.mxu0 0.0
    %2630 = vmatprep.subr.mxu0 0.0
    %2631 = vmatpush1.xpose.msra.mxu0 0.0
    %2632 = vmatprep.subr.mxu0 0.0
    %2633 = vmatpush1.xpose.msra.mxu0 0.0
    %2634 = vmatprep.subr.mxu0 0.0
    %2635 = vmatpush1.xpose.msra.mxu0 0.0
    %2636 = vmatprep.subr.mxu0 0.0
    %2637 = vmatpush1.xpose.msra.mxu0 0.0
    %2638 = vmatprep.subr.mxu0 0.0
    %2639 = vmatpush1.xpose.msra.mxu0 0.0
    %2640 = vmatprep.subr.mxu0 0.0
    %2641 = vmatpush1.xpose.msra.mxu0 0.0
    %2642 = vmatprep.subr.mxu0 0.0
    %2643 = vmatpush1.xpose.msra.mxu0 0.0
    %2644 = vmatprep.subr.mxu0 0.0
    %2645 = vmatpush1.xpose.msra.mxu0 0.0
    %2646 = vmatprep.subr.mxu0 0.0
    %2647 = vmatpush1.xpose.msra.mxu0 0.0
    %2648 = vmatprep.mubr.f32.mxu0 0.0
    %2649 = vmatmul.mubr.f32.gmra.mrb[0].mxu0 %v2566
    %v2650 = vpop.f32.mrb[0].mxu0
    %v2651 = vadd.f32 0.0, %v2650
    %v2652 = vpop.f32.mrb[0].mxu0
    %2653 = vdwg.mxu0
    %s2654 = sld [smem:[#allocation3 + $0x6]]
    %v2655 = vstv %s2654
    %vm2656 = vcmp.lt.s32.totalorder %v280, %v2655
    %v2657 = vsel %vm2656, %v2651, -1e+30
    %v2658 = vsel %vm285, %v2657, -inf
    %2659 = vmax.xlane.f32.xlu0 %v2658
    %v2660 = vpop.xlane.xlu0 %2659
    %v2661 = vsub.f32 %v2657, %v2660
    %v2662 = vmul.f32 %v2661, 1.442695
    %v2663 = vpow.pop %v2662
    %v2664 = vsel %vm285, %v2663, 0.0
    %2665 = vadd.xlane.f32.xlu0 %v2664
    %v2666 = vpop.xlane.xlu0 %2665
    %v2667 = vrcp.pop %v2666
    %v2668 = vmul.f32 %v2663, %v2667
    %v2670 = vsel %vm297, %v2668, 0
    %2672 = vmatprep.subr.mxu0 0.0
    %2673 = vmatpush1.msra.mxu0 %v2582
    %2674 = vmatprep.subr.mxu0 0.0
    %2675 = vmatpush1.msra.mxu0 0.0
    %2676 = vmatprep.subr.mxu0 0.0
    %2677 = vmatpush1.msra.mxu0 0.0
    %2678 = vmatprep.subr.mxu0 0.0
    %2679 = vmatpush1.msra.mxu0 0.0
    %2680 = vmatprep.subr.mxu0 0.0
    %2681 = vmatpush1.msra.mxu0 0.0
    %2682 = vmatprep.subr.mxu0 0.0
    %2683 = vmatpush1.msra.mxu0 0.0
    %2684 = vmatprep.subr.mxu0 0.0
    %2685 = vmatpush1.msra.mxu0 0.0
    %2686 = vmatprep.subr.mxu0 0.0
    %2687 = vmatpush1.msra.mxu0 0.0
    %2688 = vmatprep.subr.mxu0 0.0
    %2689 = vmatpush1.msra.mxu0 0.0
    %2690 = vmatprep.subr.mxu0 0.0
    %2691 = vmatpush1.msra.mxu0 0.0
    %2692 = vmatprep.subr.mxu0 0.0
    %2693 = vmatpush1.msra.mxu0 0.0
    %2694 = vmatprep.subr.mxu0 0.0
    %2695 = vmatpush1.msra.mxu0 0.0
    %2696 = vmatprep.subr.mxu0 0.0
    %2697 = vmatpush1.msra.mxu0 0.0
    %2698 = vmatprep.subr.mxu0 0.0
    %2699 = vmatpush1.msra.mxu0 0.0
    %2700 = vmatprep.subr.mxu0 0.0
    %2701 = vmatpush1.msra.mxu0 0.0
    %2702 = vmatprep.subr.mxu0 0.0
    %2703 = vmatpush1.msra.mxu0 0.0
    %2704 = vmatprep.subr.mxu0 0.0
    %2705 = vmatpush1.msra.mxu0 0.0
    %2706 = vmatprep.subr.mxu0 0.0
    %2707 = vmatpush1.msra.mxu0 0.0
    %2708 = vmatprep.subr.mxu0 0.0
    %2709 = vmatpush1.msra.mxu0 0.0
    %2710 = vmatprep.subr.mxu0 0.0
    %2711 = vmatpush1.msra.mxu0 0.0
    %2712 = vmatprep.subr.mxu0 0.0
    %2713 = vmatpush1.msra.mxu0 0.0
    %2714 = vmatprep.subr.mxu0 0.0
    %2715 = vmatpush1.msra.mxu0 0.0
    %2716 = vmatprep.subr.mxu0 0.0
    %2717 = vmatpush1.msra.mxu0 0.0
    %2718 = vmatprep.subr.mxu0 0.0
    %2719 = vmatpush1.msra.mxu0 0.0
    %2720 = vmatprep.subr.mxu0 0.0
    %2721 = vmatpush1.msra.mxu0 0.0
    %2722 = vmatprep.subr.mxu0 0.0
    %2723 = vmatpush1.msra.mxu0 0.0
    %2724 = vmatprep.subr.mxu0 0.0
    %2725 = vmatpush1.msra.mxu0 0.0
    %2726 = vmatprep.subr.mxu0 0.0
    %2727 = vmatpush1.msra.mxu0 0.0
    %2728 = vmatprep.subr.mxu0 0.0
    %2729 = vmatpush1.msra.mxu0 0.0
    %2730 = vmatprep.subr.mxu0 0.0
    %2731 = vmatpush1.msra.mxu0 0.0
    %2732 = vmatprep.subr.mxu0 0.0
    %2733 = vmatpush1.msra.mxu0 0.0
    %2734 = vmatprep.subr.mxu0 0.0
    %2735 = vmatpush1.msra.mxu0 0.0
    %2736 = vmatprep.mubr.f32.mxu0 0.0
    %2737 = vmatmul.mubr.f32.gmra.mrb[0].mxu0 %v2670
    %v2738 = vpop.f32.mrb[0].mxu0
    %v2739 = vadd.f32 0.0, %v2738
    %v2740 = vpop.f32.mrb[0].mxu0
    %2741 = vdwg.mxu0
    %2742 = vmatprep.subr.mxu0 0.0
    %2743 = vmatpush1.msra.mxu0 %v76
    %2744 = vmatprep.subr.mxu0 0.0
    %2745 = vmatpush1.msra.mxu0 %v77
    %2746 = vmatprep.subr.mxu0 0.0
    %2747 = vmatpush1.msra.mxu0 %v78
    %2748 = vmatprep.subr.mxu0 0.0
    %2749 = vmatpush1.msra.mxu0 %v79
    %2750 = vmatprep.subr.mxu0 0.0
    %2751 = vmatpush1.msra.mxu0 %v80
    %2752 = vmatprep.subr.mxu0 0.0
    %2753 = vmatpush1.msra.mxu0 %v81
    %2754 = vmatprep.subr.mxu0 0.0
    %2755 = vmatpush1.msra.mxu0 %v82
    %2756 = vmatprep.subr.mxu0 0.0
    %2757 = vmatpush1.msra.mxu0 %v83
    %2758 = vmatprep.subr.mxu0 0.0
    %2759 = vmatpush1.msra.mxu0 %v84
    %2760 = vmatprep.subr.mxu0 0.0
    %2761 = vmatpush1.msra.mxu0 %v85
    %2762 = vmatprep.subr.mxu0 0.0
    %2763 = vmatpush1.msra.mxu0 %v86
    %2764 = vmatprep.subr.mxu0 0.0
    %2765 = vmatpush1.msra.mxu0 %v87
    %2766 = vmatprep.subr.mxu0 0.0
    %2767 = vmatpush1.msra.mxu0 %v88
    %2768 = vmatprep.subr.mxu0 0.0
    %2769 = vmatpush1.msra.mxu0 %v89
    %2770 = vmatprep.subr.mxu0 0.0
    %2771 = vmatpush1.msra.mxu0 %v90
    %2772 = vmatprep.subr.mxu0 0.0
    %2773 = vmatpush1.msra.mxu0 %v91
    %2774 = vmatprep.subr.mxu0 0.0
    %2775 = vmatpush1.msra.mxu0 0.0
    %2776 = vmatprep.subr.mxu0 0.0
    %2777 = vmatpush1.msra.mxu0 0.0
    %2778 = vmatprep.subr.mxu0 0.0
    %2779 = vmatpush1.msra.mxu0 0.0
    %2780 = vmatprep.subr.mxu0 0.0
    %2781 = vmatpush1.msra.mxu0 0.0
    %2782 = vmatprep.subr.mxu0 0.0
    %2783 = vmatpush1.msra.mxu0 0.0
    %2784 = vmatprep.subr.mxu0 0.0
    %2785 = vmatpush1.msra.mxu0 0.0
    %2786 = vmatprep.subr.mxu0 0.0
    %2787 = vmatpush1.msra.mxu0 0.0
    %2788 = vmatprep.subr.mxu0 0.0
    %2789 = vmatpush1.msra.mxu0 0.0
    %2790 = vmatprep.subr.mxu0 0.0
    %2791 = vmatpush1.msra.mxu0 0.0
    %2792 = vmatprep.subr.mxu0 0.0
    %2793 = vmatpush1.msra.mxu0 0.0
    %2794 = vmatprep.subr.mxu0 0.0
    %2795 = vmatpush1.msra.mxu0 0.0
    %2796 = vmatprep.subr.mxu0 0.0
    %2797 = vmatpush1.msra.mxu0 0.0
    %2798 = vmatprep.subr.mxu0 0.0
    %2799 = vmatpush1.msra.mxu0 0.0
    %2800 = vmatprep.subr.mxu0 0.0
    %2801 = vmatpush1.msra.mxu0 0.0
    %2802 = vmatprep.subr.mxu0 0.0
    %2803 = vmatpush1.msra.mxu0 0.0
    %2804 = vmatprep.subr.mxu0 0.0
    %2805 = vmatpush1.msra.mxu0 0.0
    %2806 = vmatprep.mubr.f32.mxu0 0.0
    %2807 = vmatmul.mubr.f32.gmra.mrb[0].mxu0 %v2497
    %v2808 = vpop.f32.mrb[0].mxu0
    %v2809 = vadd.f32 0.0, %v2808
    %v2810 = vpop.f32.mrb[0].mxu0
    %2811 = vdwg.mxu0
    %2812 = vmatprep.subr.mxu0 0.0
    %2813 = vmatpush1.msra.mxu0 %v60
    %2814 = vmatprep.subr.mxu0 0.0
    %2815 = vmatpush1.msra.mxu0 %v61
    %2816 = vmatprep.subr.mxu0 0.0
    %2817 = vmatpush1.msra.mxu0 %v62
    %2818 = vmatprep.subr.mxu0 0.0
    %2819 = vmatpush1.msra.mxu0 %v63
    %2820 = vmatprep.subr.mxu0 0.0
    %2821 = vmatpush1.msra.mxu0 %v64
    %2822 = vmatprep.subr.mxu0 0.0
    %2823 = vmatpush1.msra.mxu0 %v65
    %2824 = vmatprep.subr.mxu0 0.0
    %2825 = vmatpush1.msra.mxu0 %v66
    %2826 = vmatprep.subr.mxu0 0.0
    %2827 = vmatpush1.msra.mxu0 %v67
    %2828 = vmatprep.subr.mxu0 0.0
    %2829 = vmatpush1.msra.mxu0 %v68
    %2830 = vmatprep.subr.mxu0 0.0
    %2831 = vmatpush1.msra.mxu0 %v69
    %2832 = vmatprep.subr.mxu0 0.0
    %2833 = vmatpush1.msra.mxu0 %v70
    %2834 = vmatprep.subr.mxu0 0.0
    %2835 = vmatpush1.msra.mxu0 %v71
    %2836 = vmatprep.subr.mxu0 0.0
    %2837 = vmatpush1.msra.mxu0 %v72
    %2838 = vmatprep.subr.mxu0 0.0
    %2839 = vmatpush1.msra.mxu0 %v73
    %2840 = vmatprep.subr.mxu0 0.0
    %2841 = vmatpush1.msra.mxu0 %v74
    %2842 = vmatprep.subr.mxu0 0.0
    %2843 = vmatpush1.msra.mxu0 %v75
    %2844 = vmatprep.subr.mxu0 0.0
    %2845 = vmatpush1.msra.mxu0 0.0
    %2846 = vmatprep.subr.mxu0 0.0
    %2847 = vmatpush1.msra.mxu0 0.0
    %2848 = vmatprep.subr.mxu0 0.0
    %2849 = vmatpush1.msra.mxu0 0.0
    %2850 = vmatprep.subr.mxu0 0.0
    %2851 = vmatpush1.msra.mxu0 0.0
    %2852 = vmatprep.subr.mxu0 0.0
    %2853 = vmatpush1.msra.mxu0 0.0
    %2854 = vmatprep.subr.mxu0 0.0
    %2855 = vmatpush1.msra.mxu0 0.0
    %2856 = vmatprep.subr.mxu0 0.0
    %2857 = vmatpush1.msra.mxu0 0.0
    %2858 = vmatprep.subr.mxu0 0.0
    %2859 = vmatpush1.msra.mxu0 0.0
    %2860 = vmatprep.subr.mxu0 0.0
    %2861 = vmatpush1.msra.mxu0 0.0
    %2862 = vmatprep.subr.mxu0 0.0
    %2863 = vmatpush1.msra.mxu0 0.0
    %2864 = vmatprep.subr.mxu0 0.0
    %2865 = vmatpush1.msra.mxu0 0.0
    %2866 = vmatprep.subr.mxu0 0.0
    %2867 = vmatpush1.msra.mxu0 0.0
    %2868 = vmatprep.subr.mxu0 0.0
    %2869 = vmatpush1.msra.mxu0 0.0
    %2870 = vmatprep.subr.mxu0 0.0
    %2871 = vmatpush1.msra.mxu0 0.0
    %2872 = vmatprep.subr.mxu0 0.0
    %2873 = vmatpush1.msra.mxu0 0.0
    %2874 = vmatprep.subr.mxu0 0.0
    %2875 = vmatpush1.msra.mxu0 0.0
    %2876 = vmatprep.mubr.f32.mxu0 0.0
    %2877 = vmatmul.mubr.f32.gmra.mrb[0].mxu0 %v2739
    %v2878 = vpop.f32.mrb[0].mxu0
    %v2879 = vadd.f32 %v2809, %v2878
    %v2880 = vpop.f32.mrb[0].mxu0
    %2881 = vdwg.mxu0
    %v2882 = vtanh.pop %v2879
    %v2883 = vrot.slane %v30, 7
    %v2884 = vrot.slane %v31, 6
    %v2885 = vsel %vm99, %v2884, %v2883
    %v2886 = vrot.slane %v32, 5
    %v2887 = vsel %vm102, %v2886, %v2885
    %v2888 = vrot.slane %v33, 4
    %v2889 = vsel %vm105, %v2888, %v2887
    %v2890 = vrot.slane %v34, 3
    %v2891 = vsel %vm108, %v2890, %v2889
    %v2892 = vrot.slane %v35, 2
    %v2893 = vsel %vm111, %v2892, %v2891
    %2895 = vmatprep.subr.mxu0 0.0
    %2896 = vmatpush1.msra.mxu0 %v44
    %2897 = vmatprep.subr.mxu0 0.0
    %2898 = vmatpush1.msra.mxu0 %v45
    %2899 = vmatprep.subr.mxu0 0.0
    %2900 = vmatpush1.msra.mxu0 %v46
    %2901 = vmatprep.subr.mxu0 0.0
    %2902 = vmatpush1.msra.mxu0 %v47
    %2903 = vmatprep.subr.mxu0 0.0
    %2904 = vmatpush1.msra.mxu0 %v48
    %2905 = vmatprep.subr.mxu0 0.0
    %2906 = vmatpush1.msra.mxu0 %v49
    %2907 = vmatprep.subr.mxu0 0.0
    %2908 = vmatpush1.msra.mxu0 %v50
    %2909 = vmatprep.subr.mxu0 0.0
    %2910 = vmatpush1.msra.mxu0 %v51
    %2911 = vmatprep.subr.mxu0 0.0
    %2912 = vmatpush1.msra.mxu0 %v52
    %2913 = vmatprep.subr.mxu0 0.0
    %2914 = vmatpush1.msra.mxu0 %v53
    %2915 = vmatprep.subr.mxu0 0.0
    %2916 = vmatpush1.msra.mxu0 %v54
    %2917 = vmatprep.subr.mxu0 0.0
    %2918 = vmatpush1.msra.mxu0 %v55
    %2919 = vmatprep.subr.mxu0 0.0
    %2920 = vmatpush1.msra.mxu0 %v56
    %2921 = vmatprep.subr.mxu0 0.0
    %2922 = vmatpush1.msra.mxu0 %v57
    %2923 = vmatprep.subr.mxu0 0.0
    %2924 = vmatpush1.msra.mxu0 %v58
    %2925 = vmatprep.subr.mxu0 0.0
    %2926 = vmatpush1.msra.mxu0 %v59
    %2927 = vmatprep.subr.mxu0 0.0
    %2928 = vmatpush1.msra.mxu0 0.0
    %2929 = vmatprep.subr.mxu0 0.0
    %2930 = vmatpush1.msra.mxu0 0.0
    %2931 = vmatprep.subr.mxu0 0.0
    %2932 = vmatpush1.msra.mxu0 0.0
    %2933 = vmatprep.subr.mxu0 0.0
    %2934 = vmatpush1.msra.mxu0 0.0
    %2935 = vmatprep.subr.mxu0 0.0
    %2936 = vmatpush1.msra.mxu0 0.0
    %2937 = vmatprep.subr.mxu0 0.0
    %2938 = vmatpush1.msra.mxu0 0.0
    %2939 = vmatprep.subr.mxu0 0.0
    %2940 = vmatpush1.msra.mxu0 0.0
    %2941 = vmatprep.subr.mxu0 0.0
    %2942 = vmatpush1.msra.mxu0 0.0
    %2943 = vmatprep.subr.mxu0 0.0
    %2944 = vmatpush1.msra.mxu0 0.0
    %2945 = vmatprep.subr.mxu0 0.0
    %2946 = vmatpush1.msra.mxu0 0.0
    %2947 = vmatprep.subr.mxu0 0.0
    %2948 = vmatpush1.msra.mxu0 0.0
    %2949 = vmatprep.subr.mxu0 0.0
    %2950 = vmatpush1.msra.mxu0 0.0
    %2951 = vmatprep.subr.mxu0 0.0
    %2952 = vmatpush1.msra.mxu0 0.0
    %2953 = vmatprep.subr.mxu0 0.0
    %2954 = vmatpush1.msra.mxu0 0.0
    %2955 = vmatprep.subr.mxu0 0.0
    %2956 = vmatpush1.msra.mxu0 0.0
    %2957 = vmatprep.subr.mxu0 0.0
    %2958 = vmatpush1.msra.mxu0 0.0
    %2959 = vmatprep.mubr.f32.mxu0 0.0
    %2960 = vmatmul.mubr.f32.gmra.mrb[0].mxu0 %v2893
    %v2961 = vpop.f32.mrb[0].mxu0
    %v2962 = vadd.f32 0.0, %v2961
    %v2963 = vpop.f32.mrb[0].mxu0
    %2964 = vdwg.mxu0
    %v2965 = vrot.slane %v36, 7
    %v2966 = vrot.slane %v37, 6
    %v2967 = vsel %vm99, %v2966, %v2965
    %v2968 = vrot.slane %v38, 5
    %v2969 = vsel %vm102, %v2968, %v2967
    %v2970 = vrot.slane %v39, 4
    %v2971 = vsel %vm105, %v2970, %v2969
    %v2972 = vrot.slane %v40, 3
    %v2973 = vsel %vm108, %v2972, %v2971
    %v2974 = vrot.slane %v41, 2
    %v2975 = vsel %vm111, %v2974, %v2973
    %v2976 = vrot.slane %v42, 1
    %v2977 = vsel %vm203, %v2976, %v2975
    %v2978 = vsel %vm206, %v43, %v2977
    %2980 = vmatprep.subr.mxu0 0.0
    %2981 = vmatpush1.xpose.msra.mxu0 %v2978
    %2982 = vmatprep.subr.mxu0 0.0
    %2983 = vmatpush1.xpose.msra.mxu0 0.0
    %2984 = vmatprep.subr.mxu0 0.0
    %2985 = vmatpush1.xpose.msra.mxu0 0.0
    %2986 = vmatprep.subr.mxu0 0.0
    %2987 = vmatpush1.xpose.msra.mxu0 0.0
    %2988 = vmatprep.subr.mxu0 0.0
    %2989 = vmatpush1.xpose.msra.mxu0 0.0
    %2990 = vmatprep.subr.mxu0 0.0
    %2991 = vmatpush1.xpose.msra.mxu0 0.0
    %2992 = vmatprep.subr.mxu0 0.0
    %2993 = vmatpush1.xpose.msra.mxu0 0.0
    %2994 = vmatprep.subr.mxu0 0.0
    %2995 = vmatpush1.xpose.msra.mxu0 0.0
    %2996 = vmatprep.subr.mxu0 0.0
    %2997 = vmatpush1.xpose.msra.mxu0 0.0
    %2998 = vmatprep.subr.mxu0 0.0
    %2999 = vmatpush1.xpose.msra.mxu0 0.0
    %3000 = vmatprep.subr.mxu0 0.0
    %3001 = vmatpush1.xpose.msra.mxu0 0.0
    %3002 = vmatprep.subr.mxu0 0.0
    %3003 = vmatpush1.xpose.msra.mxu0 0.0
    %3004 = vmatprep.subr.mxu0 0.0
    %3005 = vmatpush1.xpose.msra.mxu0 0.0
    %3006 = vmatprep.subr.mxu0 0.0
    %3007 = vmatpush1.xpose.msra.mxu0 0.0
    %3008 = vmatprep.subr.mxu0 0.0
    %3009 = vmatpush1.xpose.msra.mxu0 0.0
    %3010 = vmatprep.subr.mxu0 0.0
    %3011 = vmatpush1.xpose.msra.mxu0 0.0
    %3012 = vmatprep.subr.mxu0 0.0
    %3013 = vmatpush1.xpose.msra.mxu0 0.0
    %3014 = vmatprep.subr.mxu0 0.0
    %3015 = vmatpush1.xpose.msra.mxu0 0.0
    %3016 = vmatprep.subr.mxu0 0.0
    %3017 = vmatpush1.xpose.msra.mxu0 0.0
    %3018 = vmatprep.subr.mxu0 0.0
    %3019 = vmatpush1.xpose.msra.mxu0 0.0
    %3020 = vmatprep.subr.mxu0 0.0
    %3021 = vmatpush1.xpose.msra.mxu0 0.0
    %3022 = vmatprep.subr.mxu0 0.0
    %3023 = vmatpush1.xpose.msra.mxu0 0.0
    %3024 = vmatprep.subr.mxu0 0.0
    %3025 = vmatpush1.xpose.msra.mxu0 0.0
    %3026 = vmatprep.subr.mxu0 0.0
    %3027 = vmatpush1.xpose.msra.mxu0 0.0
    %3028 = vmatprep.subr.mxu0 0.0
    %3029 = vmatpush1.xpose.msra.mxu0 0.0
    %3030 = vmatprep.subr.mxu0 0.0
    %3031 = vmatpush1.xpose.msra.mxu0 0.0
    %3032 = vmatprep.subr.mxu0 0.0
    %3033 = vmatpush1.xpose.msra.mxu0 0.0
    %3034 = vmatprep.subr.mxu0 0.0
    %3035 = vmatpush1.xpose.msra.mxu0 0.0
    %3036 = vmatprep.subr.mxu0 0.0
    %3037 = vmatpush1.xpose.msra.mxu0 0.0
    %3038 = vmatprep.subr.mxu0 0.0
    %3039 = vmatpush1.xpose.msra.mxu0 0.0
    %3040 = vmatprep.subr.mxu0 0.0
    %3041 = vmatpush1.xpose.msra.mxu0 0.0
    %3042 = vmatprep.subr.mxu0 0.0
    %3043 = vmatpush1.xpose.msra.mxu0 0.0
    %3044 = vmatprep.mubr.f32.mxu0 0.0
    %3045 = vmatmul.mubr.f32.gmra.mrb[0].mxu0 %v2962
    %v3046 = vpop.f32.mrb[0].mxu0
    %v3047 = vadd.f32 0.0, %v3046
    %v3048 = vpop.f32.mrb[0].mxu0
    %3049 = vdwg.mxu0
    %s3050 = sld [smem:[#allocation3 + $0x7]]
    %v3051 = vstv %s3050
    %vm3052 = vcmp.lt.s32.totalorder %v280, %v3051
    %v3053 = vsel %vm3052, %v3047, -1e+30
    %v3054 = vsel %vm285, %v3053, -inf
    %3055 = vmax.xlane.f32.xlu0 %v3054
    %v3056 = vpop.xlane.xlu0 %3055
    %v3057 = vsub.f32 %v3053, %v3056
    %v3058 = vmul.f32 %v3057, 1.442695
    %v3059 = vpow.pop %v3058
    %v3060 = vsel %vm285, %v3059, 0.0
    %3061 = vadd.xlane.f32.xlu0 %v3060
    %v3062 = vpop.xlane.xlu0 %3061
    %v3063 = vrcp.pop %v3062
    %v3064 = vmul.f32 %v3059, %v3063
    %v3066 = vsel %vm297, %v3064, 0
    %3068 = vmatprep.subr.mxu0 0.0
    %3069 = vmatpush1.msra.mxu0 %v2978
    %3070 = vmatprep.subr.mxu0 0.0
    %3071 = vmatpush1.msra.mxu0 0.0
    %3072 = vmatprep.subr.mxu0 0.0
    %3073 = vmatpush1.msra.mxu0 0.0
    %3074 = vmatprep.subr.mxu0 0.0
    %3075 = vmatpush1.msra.mxu0 0.0
    %3076 = vmatprep.subr.mxu0 0.0
    %3077 = vmatpush1.msra.mxu0 0.0
    %3078 = vmatprep.subr.mxu0 0.0
    %3079 = vmatpush1.msra.mxu0 0.0
    %3080 = vmatprep.subr.mxu0 0.0
    %3081 = vmatpush1.msra.mxu0 0.0
    %3082 = vmatprep.subr.mxu0 0.0
    %3083 = vmatpush1.msra.mxu0 0.0
    %3084 = vmatprep.subr.mxu0 0.0
    %3085 = vmatpush1.msra.mxu0 0.0
    %3086 = vmatprep.subr.mxu0 0.0
    %3087 = vmatpush1.msra.mxu0 0.0
    %3088 = vmatprep.subr.mxu0 0.0
    %3089 = vmatpush1.msra.mxu0 0.0
    %3090 = vmatprep.subr.mxu0 0.0
    %3091 = vmatpush1.msra.mxu0 0.0
    %3092 = vmatprep.subr.mxu0 0.0
    %3093 = vmatpush1.msra.mxu0 0.0
    %3094 = vmatprep.subr.mxu0 0.0
    %3095 = vmatpush1.msra.mxu0 0.0
    %3096 = vmatprep.subr.mxu0 0.0
    %3097 = vmatpush1.msra.mxu0 0.0
    %3098 = vmatprep.subr.mxu0 0.0
    %3099 = vmatpush1.msra.mxu0 0.0
    %3100 = vmatprep.subr.mxu0 0.0
    %3101 = vmatpush1.msra.mxu0 0.0
    %3102 = vmatprep.subr.mxu0 0.0
    %3103 = vmatpush1.msra.mxu0 0.0
    %3104 = vmatprep.subr.mxu0 0.0
    %3105 = vmatpush1.msra.mxu0 0.0
    %3106 = vmatprep.subr.mxu0 0.0
    %3107 = vmatpush1.msra.mxu0 0.0
    %3108 = vmatprep.subr.mxu0 0.0
    %3109 = vmatpush1.msra.mxu0 0.0
    %3110 = vmatprep.subr.mxu0 0.0
    %3111 = vmatpush1.msra.mxu0 0.0
    %3112 = vmatprep.subr.mxu0 0.0
    %3113 = vmatpush1.msra.mxu0 0.0
    %3114 = vmatprep.subr.mxu0 0.0
    %3115 = vmatpush1.msra.mxu0 0.0
    %3116 = vmatprep.subr.mxu0 0.0
    %3117 = vmatpush1.msra.mxu0 0.0
    %3118 = vmatprep.subr.mxu0 0.0
    %3119 = vmatpush1.msra.mxu0 0.0
    %3120 = vmatprep.subr.mxu0 0.0
    %3121 = vmatpush1.msra.mxu0 0.0
    %3122 = vmatprep.subr.mxu0 0.0
    %3123 = vmatpush1.msra.mxu0 0.0
    %3124 = vmatprep.subr.mxu0 0.0
    %3125 = vmatpush1.msra.mxu0 0.0
    %3126 = vmatprep.subr.mxu0 0.0
    %3127 = vmatpush1.msra.mxu0 0.0
    %3128 = vmatprep.subr.mxu0 0.0
    %3129 = vmatpush1.msra.mxu0 0.0
    %3130 = vmatprep.subr.mxu0 0.0
    %3131 = vmatpush1.msra.mxu0 0.0
    %3132 = vmatprep.mubr.f32.mxu0 0.0
    %3133 = vmatmul.mubr.f32.gmra.mrb[0].mxu0 %v3066
    %v3134 = vpop.f32.mrb[0].mxu0
    %v3135 = vadd.f32 0.0, %v3134
    %v3136 = vpop.f32.mrb[0].mxu0
    %3137 = vdwg.mxu0
    %3138 = vmatprep.subr.mxu0 0.0
    %3139 = vmatpush1.msra.mxu0 %v76
    %3140 = vmatprep.subr.mxu0 0.0
    %3141 = vmatpush1.msra.mxu0 %v77
    %3142 = vmatprep.subr.mxu0 0.0
    %3143 = vmatpush1.msra.mxu0 %v78
    %3144 = vmatprep.subr.mxu0 0.0
    %3145 = vmatpush1.msra.mxu0 %v79
    %3146 = vmatprep.subr.mxu0 0.0
    %3147 = vmatpush1.msra.mxu0 %v80
    %3148 = vmatprep.subr.mxu0 0.0
    %3149 = vmatpush1.msra.mxu0 %v81
    %3150 = vmatprep.subr.mxu0 0.0
    %3151 = vmatpush1.msra.mxu0 %v82
    %3152 = vmatprep.subr.mxu0 0.0
    %3153 = vmatpush1.msra.mxu0 %v83
    %3154 = vmatprep.subr.mxu0 0.0
    %3155 = vmatpush1.msra.mxu0 %v84
    %3156 = vmatprep.subr.mxu0 0.0
    %3157 = vmatpush1.msra.mxu0 %v85
    %3158 = vmatprep.subr.mxu0 0.0
    %3159 = vmatpush1.msra.mxu0 %v86
    %3160 = vmatprep.subr.mxu0 0.0
    %3161 = vmatpush1.msra.mxu0 %v87
    %3162 = vmatprep.subr.mxu0 0.0
    %3163 = vmatpush1.msra.mxu0 %v88
    %3164 = vmatprep.subr.mxu0 0.0
    %3165 = vmatpush1.msra.mxu0 %v89
    %3166 = vmatprep.subr.mxu0 0.0
    %3167 = vmatpush1.msra.mxu0 %v90
    %3168 = vmatprep.subr.mxu0 0.0
    %3169 = vmatpush1.msra.mxu0 %v91
    %3170 = vmatprep.subr.mxu0 0.0
    %3171 = vmatpush1.msra.mxu0 0.0
    %3172 = vmatprep.subr.mxu0 0.0
    %3173 = vmatpush1.msra.mxu0 0.0
    %3174 = vmatprep.subr.mxu0 0.0
    %3175 = vmatpush1.msra.mxu0 0.0
    %3176 = vmatprep.subr.mxu0 0.0
    %3177 = vmatpush1.msra.mxu0 0.0
    %3178 = vmatprep.subr.mxu0 0.0
    %3179 = vmatpush1.msra.mxu0 0.0
    %3180 = vmatprep.subr.mxu0 0.0
    %3181 = vmatpush1.msra.mxu0 0.0
    %3182 = vmatprep.subr.mxu0 0.0
    %3183 = vmatpush1.msra.mxu0 0.0
    %3184 = vmatprep.subr.mxu0 0.0
    %3185 = vmatpush1.msra.mxu0 0.0
    %3186 = vmatprep.subr.mxu0 0.0
    %3187 = vmatpush1.msra.mxu0 0.0
    %3188 = vmatprep.subr.mxu0 0.0
    %3189 = vmatpush1.msra.mxu0 0.0
    %3190 = vmatprep.subr.mxu0 0.0
    %3191 = vmatpush1.msra.mxu0 0.0
    %3192 = vmatprep.subr.mxu0 0.0
    %3193 = vmatpush1.msra.mxu0 0.0
    %3194 = vmatprep.subr.mxu0 0.0
    %3195 = vmatpush1.msra.mxu0 0.0
    %3196 = vmatprep.subr.mxu0 0.0
    %3197 = vmatpush1.msra.mxu0 0.0
    %3198 = vmatprep.subr.mxu0 0.0
    %3199 = vmatpush1.msra.mxu0 0.0
    %3200 = vmatprep.subr.mxu0 0.0
    %3201 = vmatpush1.msra.mxu0 0.0
    %3202 = vmatprep.mubr.f32.mxu0 0.0
    %3203 = vmatmul.mubr.f32.gmra.mrb[0].mxu0 %v2893
    %v3204 = vpop.f32.mrb[0].mxu0
    %v3205 = vadd.f32 0.0, %v3204
    %v3206 = vpop.f32.mrb[0].mxu0
    %3207 = vdwg.mxu0
    %3208 = vmatprep.subr.mxu0 0.0
    %3209 = vmatpush1.msra.mxu0 %v60
    %3210 = vmatprep.subr.mxu0 0.0
    %3211 = vmatpush1.msra.mxu0 %v61
    %3212 = vmatprep.subr.mxu0 0.0
    %3213 = vmatpush1.msra.mxu0 %v62
    %3214 = vmatprep.subr.mxu0 0.0
    %3215 = vmatpush1.msra.mxu0 %v63
    %3216 = vmatprep.subr.mxu0 0.0
    %3217 = vmatpush1.msra.mxu0 %v64
    %3218 = vmatprep.subr.mxu0 0.0
    %3219 = vmatpush1.msra.mxu0 %v65
    %3220 = vmatprep.subr.mxu0 0.0
    %3221 = vmatpush1.msra.mxu0 %v66
    %3222 = vmatprep.subr.mxu0 0.0
    %3223 = vmatpush1.msra.mxu0 %v67
    %3224 = vmatprep.subr.mxu0 0.0
    %3225 = vmatpush1.msra.mxu0 %v68
    %3226 = vmatprep.subr.mxu0 0.0
    %3227 = vmatpush1.msra.mxu0 %v69
    %3228 = vmatprep.subr.mxu0 0.0
    %3229 = vmatpush1.msra.mxu0 %v70
    %3230 = vmatprep.subr.mxu0 0.0
    %3231 = vmatpush1.msra.mxu0 %v71
    %3232 = vmatprep.subr.mxu0 0.0
    %3233 = vmatpush1.msra.mxu0 %v72
    %3234 = vmatprep.subr.mxu0 0.0
    %3235 = vmatpush1.msra.mxu0 %v73
    %3236 = vmatprep.subr.mxu0 0.0
    %3237 = vmatpush1.msra.mxu0 %v74
    %3238 = vmatprep.subr.mxu0 0.0
    %3239 = vmatpush1.msra.mxu0 %v75
    %3240 = vmatprep.subr.mxu0 0.0
    %3241 = vmatpush1.msra.mxu0 0.0
    %3242 = vmatprep.subr.mxu0 0.0
    %3243 = vmatpush1.msra.mxu0 0.0
    %3244 = vmatprep.subr.mxu0 0.0
    %3245 = vmatpush1.msra.mxu0 0.0
    %3246 = vmatprep.subr.mxu0 0.0
    %3247 = vmatpush1.msra.mxu0 0.0
    %3248 = vmatprep.subr.mxu0 0.0
    %3249 = vmatpush1.msra.mxu0 0.0
    %3250 = vmatprep.subr.mxu0 0.0
    %3251 = vmatpush1.msra.mxu0 0.0
    %3252 = vmatprep.subr.mxu0 0.0
    %3253 = vmatpush1.msra.mxu0 0.0
    %3254 = vmatprep.subr.mxu0 0.0
    %3255 = vmatpush1.msra.mxu0 0.0
    %3256 = vmatprep.subr.mxu0 0.0
    %3257 = vmatpush1.msra.mxu0 0.0
    %3258 = vmatprep.subr.mxu0 0.0
    %3259 = vmatpush1.msra.mxu0 0.0
    %3260 = vmatprep.subr.mxu0 0.0
    %3261 = vmatpush1.msra.mxu0 0.0
    %3262 = vmatprep.subr.mxu0 0.0
    %3263 = vmatpush1.msra.mxu0 0.0
    %3264 = vmatprep.subr.mxu0 0.0
    %3265 = vmatpush1.msra.mxu0 0.0
    %3266 = vmatprep.subr.mxu0 0.0
    %3267 = vmatpush1.msra.mxu0 0.0
    %3268 = vmatprep.subr.mxu0 0.0
    %3269 = vmatpush1.msra.mxu0 0.0
    %3270 = vmatprep.subr.mxu0 0.0
    %3271 = vmatpush1.msra.mxu0 0.0
    %3272 = vmatprep.mubr.f32.mxu0 0.0
    %3273 = vmatmul.mubr.f32.gmra.mrb[0].mxu0 %v3135
    %v3274 = vpop.f32.mrb[0].mxu0
    %v3275 = vadd.f32 %v3205, %v3274
    %v3276 = vpop.f32.mrb[0].mxu0
    %3277 = vdwg.mxu0
    %v3278 = vtanh.pop %v3275
    %v3280 = vcombine.high %v511, %v511
    %v3282 = vunpack.c.l.s4 1966171168
    %v3283 = vunpack.c.0.s8 %v3282
    %v3284 = vlaneseq
    %v3285 = vshrl.u32 %v3284, 7
    %v3286 = vsub.s32 %v3283, %v3285
    %v3287 = vrot.slane %v511, %v3286
    %v3289 = vunpack.c.l.s4 1966171168
    %v3290 = vunpack.c.0.s8 %v3289
    %v3291 = vlaneseq
    %v3292 = vshrl.u32 %v3291, 7
    %v3293 = vsub.s32 %v3290, %v3292
    %v3294 = vrot.slane %v3280, %v3293
    %v3295 = vcombine.high %v3287, %v3287
    %v3296 = vcombine.high %v3294, %v3294
    %v3298 = vunpack.c.l.s4 1966171168
    %v3299 = vunpack.c.0.s8 %v3298
    %v3300 = vlaneseq
    %v3301 = vshrl.u32 %v3300, 7
    %v3302 = vsub.s32 %v3299, %v3301
    %v3303 = vrot.slane %v3287, %v3302
    %v3305 = vunpack.c.l.s4 1966171168
    %v3306 = vunpack.c.0.s8 %v3305
    %v3307 = vlaneseq
    %v3308 = vshrl.u32 %v3307, 7
    %v3309 = vsub.s32 %v3306, %v3308
    %v3310 = vrot.slane %v3294, %v3309
    %v3312 = vunpack.c.l.s4 1966171168
    %v3313 = vunpack.c.0.s8 %v3312
    %v3314 = vlaneseq
    %v3315 = vshrl.u32 %v3314, 7
    %v3316 = vsub.s32 %v3313, %v3315
    %v3317 = vrot.slane %v3295, %v3316
    %v3319 = vunpack.c.l.s4 1966171168
    %v3320 = vunpack.c.0.s8 %v3319
    %v3321 = vlaneseq
    %v3322 = vshrl.u32 %v3321, 7
    %v3323 = vsub.s32 %v3320, %v3322
    %v3324 = vrot.slane %v3296, %v3323
    %v3325 = vcombine.high %v3303, %v3303
    %v3326 = vcombine.high %v3317, %v3317
    %v3334 = vcombine.high %v906, %v906
    %v3336 = vunpack.c.l.s4 1966171168
    %v3337 = vunpack.c.0.s8 %v3336
    %v3338 = vlaneseq
    %v3339 = vshrl.u32 %v3338, 7
    %v3340 = vsub.s32 %v3337, %v3339
    %v3341 = vrot.slane %v906, %v3340
    %v3343 = vunpack.c.l.s4 1966171168
    %v3344 = vunpack.c.0.s8 %v3343
    %v3345 = vlaneseq
    %v3346 = vshrl.u32 %v3345, 7
    %v3347 = vsub.s32 %v3344, %v3346
    %v3348 = vrot.slane %v3334, %v3347
    %v3349 = vcombine.high %v3341, %v3341
    %v3350 = vcombine.high %v3348, %v3348
    %v3352 = vunpack.c.l.s4 1966171168
    %v3353 = vunpack.c.0.s8 %v3352
    %v3354 = vlaneseq
    %v3355 = vshrl.u32 %v3354, 7
    %v3356 = vsub.s32 %v3353, %v3355
    %v3357 = vrot.slane %v3341, %v3356
    %v3359 = vunpack.c.l.s4 1966171168
    %v3360 = vunpack.c.0.s8 %v3359
    %v3361 = vlaneseq
    %v3362 = vshrl.u32 %v3361, 7
    %v3363 = vsub.s32 %v3360, %v3362
    %v3364 = vrot.slane %v3348, %v3363
    %v3366 = vunpack.c.l.s4 1966171168
    %v3367 = vunpack.c.0.s8 %v3366
    %v3368 = vlaneseq
    %v3369 = vshrl.u32 %v3368, 7
    %v3370 = vsub.s32 %v3367, %v3369
    %v3371 = vrot.slane %v3349, %v3370
    %v3373 = vunpack.c.l.s4 1966171168
    %v3374 = vunpack.c.0.s8 %v3373
    %v3375 = vlaneseq
    %v3376 = vshrl.u32 %v3375, 7
    %v3377 = vsub.s32 %v3374, %v3376
    %v3378 = vrot.slane %v3350, %v3377
    %v3379 = vcombine.high %v3357, %v3357
    %v3380 = vcombine.high %v3371, %v3371
    %v3382 = vcombine.high %v1301, %v1301
    %v3384 = vunpack.c.l.s4 1966171168
    %v3385 = vunpack.c.0.s8 %v3384
    %v3386 = vlaneseq
    %v3387 = vshrl.u32 %v3386, 7
    %v3388 = vsub.s32 %v3385, %v3387
    %v3389 = vrot.slane %v1301, %v3388
    %v3391 = vunpack.c.l.s4 1966171168
    %v3392 = vunpack.c.0.s8 %v3391
    %v3393 = vlaneseq
    %v3394 = vshrl.u32 %v3393, 7
    %v3395 = vsub.s32 %v3392, %v3394
    %v3396 = vrot.slane %v3382, %v3395
    %v3397 = vcombine.high %v3389, %v3389
    %v3398 = vcombine.high %v3396, %v3396
    %v3400 = vunpack.c.l.s4 1966171168
    %v3401 = vunpack.c.0.s8 %v3400
    %v3402 = vlaneseq
    %v3403 = vshrl.u32 %v3402, 7
    %v3404 = vsub.s32 %v3401, %v3403
    %v3405 = vrot.slane %v3389, %v3404
    %v3407 = vunpack.c.l.s4 1966171168
    %v3408 = vunpack.c.0.s8 %v3407
    %v3409 = vlaneseq
    %v3410 = vshrl.u32 %v3409, 7
    %v3411 = vsub.s32 %v3408, %v3410
    %v3412 = vrot.slane %v3396, %v3411
    %v3414 = vunpack.c.l.s4 1966171168
    %v3415 = vunpack.c.0.s8 %v3414
    %v3416 = vlaneseq
    %v3417 = vshrl.u32 %v3416, 7
    %v3418 = vsub.s32 %v3415, %v3417
    %v3419 = vrot.slane %v3397, %v3418
    %v3421 = vunpack.c.l.s4 1966171168
    %v3422 = vunpack.c.0.s8 %v3421
    %v3423 = vlaneseq
    %v3424 = vshrl.u32 %v3423, 7
    %v3425 = vsub.s32 %v3422, %v3424
    %v3426 = vrot.slane %v3398, %v3425
    %v3427 = vcombine.high %v3405, %v3405
    %v3428 = vcombine.high %v3419, %v3419
    %v3430 = vcombine.high %v1696, %v1696
    %v3432 = vunpack.c.l.s4 1966171168
    %v3433 = vunpack.c.0.s8 %v3432
    %v3434 = vlaneseq
    %v3435 = vshrl.u32 %v3434, 7
    %v3436 = vsub.s32 %v3433, %v3435
    %v3437 = vrot.slane %v1696, %v3436
    %v3439 = vunpack.c.l.s4 1966171168
    %v3440 = vunpack.c.0.s8 %v3439
    %v3441 = vlaneseq
    %v3442 = vshrl.u32 %v3441, 7
    %v3443 = vsub.s32 %v3440, %v3442
    %v3444 = vrot.slane %v3430, %v3443
    %v3445 = vcombine.high %v3437, %v3437
    %v3446 = vcombine.high %v3444, %v3444
    %v3448 = vunpack.c.l.s4 1966171168
    %v3449 = vunpack.c.0.s8 %v3448
    %v3450 = vlaneseq
    %v3451 = vshrl.u32 %v3450, 7
    %v3452 = vsub.s32 %v3449, %v3451
    %v3453 = vrot.slane %v3437, %v3452
    %v3455 = vunpack.c.l.s4 1966171168
    %v3456 = vunpack.c.0.s8 %v3455
    %v3457 = vlaneseq
    %v3458 = vshrl.u32 %v3457, 7
    %v3459 = vsub.s32 %v3456, %v3458
    %v3460 = vrot.slane %v3444, %v3459
    %v3462 = vunpack.c.l.s4 1966171168
    %v3463 = vunpack.c.0.s8 %v3462
    %v3464 = vlaneseq
    %v3465 = vshrl.u32 %v3464, 7
    %v3466 = vsub.s32 %v3463, %v3465
    %v3467 = vrot.slane %v3445, %v3466
    %v3469 = vunpack.c.l.s4 1966171168
    %v3470 = vunpack.c.0.s8 %v3469
    %v3471 = vlaneseq
    %v3472 = vshrl.u32 %v3471, 7
    %v3473 = vsub.s32 %v3470, %v3472
    %v3474 = vrot.slane %v3446, %v3473
    %v3475 = vcombine.high %v3453, %v3453
    %v3476 = vcombine.high %v3467, %v3467
    %v3478 = vcombine.high %v2091, %v2091
    %v3480 = vunpack.c.l.s4 1966171168
    %v3481 = vunpack.c.0.s8 %v3480
    %v3482 = vlaneseq
    %v3483 = vshrl.u32 %v3482, 7
    %v3484 = vsub.s32 %v3481, %v3483
    %v3485 = vrot.slane %v2091, %v3484
    %v3487 = vunpack.c.l.s4 1966171168
    %v3488 = vunpack.c.0.s8 %v3487
    %v3489 = vlaneseq
    %v3490 = vshrl.u32 %v3489, 7
    %v3491 = vsub.s32 %v3488, %v3490
    %v3492 = vrot.slane %v3478, %v3491
    %v3493 = vcombine.high %v3485, %v3485
    %v3494 = vcombine.high %v3492, %v3492
    %v3496 = vunpack.c.l.s4 1966171168
    %v3497 = vunpack.c.0.s8 %v3496
    %v3498 = vlaneseq
    %v3499 = vshrl.u32 %v3498, 7
    %v3500 = vsub.s32 %v3497, %v3499
    %v3501 = vrot.slane %v3485, %v3500
    %v3503 = vunpack.c.l.s4 1966171168
    %v3504 = vunpack.c.0.s8 %v3503
    %v3505 = vlaneseq
    %v3506 = vshrl.u32 %v3505, 7
    %v3507 = vsub.s32 %v3504, %v3506
    %v3508 = vrot.slane %v3492, %v3507
    %v3510 = vunpack.c.l.s4 1966171168
    %v3511 = vunpack.c.0.s8 %v3510
    %v3512 = vlaneseq
    %v3513 = vshrl.u32 %v3512, 7
    %v3514 = vsub.s32 %v3511, %v3513
    %v3515 = vrot.slane %v3493, %v3514
    %v3517 = vunpack.c.l.s4 1966171168
    %v3518 = vunpack.c.0.s8 %v3517
    %v3519 = vlaneseq
    %v3520 = vshrl.u32 %v3519, 7
    %v3521 = vsub.s32 %v3518, %v3520
    %v3522 = vrot.slane %v3494, %v3521
    %v3523 = vcombine.high %v3501, %v3501
    %v3524 = vcombine.high %v3515, %v3515
    %v3526 = vcombine.high %v2486, %v2486
    %v3528 = vunpack.c.l.s4 1966171168
    %v3529 = vunpack.c.0.s8 %v3528
    %v3530 = vlaneseq
    %v3531 = vshrl.u32 %v3530, 7
    %v3532 = vsub.s32 %v3529, %v3531
    %v3533 = vrot.slane %v2486, %v3532
    %v3535 = vunpack.c.l.s4 1966171168
    %v3536 = vunpack.c.0.s8 %v3535
    %v3537 = vlaneseq
    %v3538 = vshrl.u32 %v3537, 7
    %v3539 = vsub.s32 %v3536, %v3538
    %v3540 = vrot.slane %v3526, %v3539
    %v3541 = vcombine.high %v3533, %v3533
    %v3542 = vcombine.high %v3540, %v3540
    %v3544 = vunpack.c.l.s4 1966171168
    %v3545 = vunpack.c.0.s8 %v3544
    %v3546 = vlaneseq
    %v3547 = vshrl.u32 %v3546, 7
    %v3548 = vsub.s32 %v3545, %v3547
    %v3549 = vrot.slane %v3533, %v3548
    %v3551 = vunpack.c.l.s4 1966171168
    %v3552 = vunpack.c.0.s8 %v3551
    %v3553 = vlaneseq
    %v3554 = vshrl.u32 %v3553, 7
    %v3555 = vsub.s32 %v3552, %v3554
    %v3556 = vrot.slane %v3540, %v3555
    %v3558 = vunpack.c.l.s4 1966171168
    %v3559 = vunpack.c.0.s8 %v3558
    %v3560 = vlaneseq
    %v3561 = vshrl.u32 %v3560, 7
    %v3562 = vsub.s32 %v3559, %v3561
    %v3563 = vrot.slane %v3541, %v3562
    %v3565 = vunpack.c.l.s4 1966171168
    %v3566 = vunpack.c.0.s8 %v3565
    %v3567 = vlaneseq
    %v3568 = vshrl.u32 %v3567, 7
    %v3569 = vsub.s32 %v3566, %v3568
    %v3570 = vrot.slane %v3542, %v3569
    %v3571 = vcombine.high %v3549, %v3549
    %v3572 = vcombine.high %v3563, %v3563
    %v3574 = vcombine.high %v2882, %v2882
    %v3576 = vunpack.c.l.s4 1966171168
    %v3577 = vunpack.c.0.s8 %v3576
    %v3578 = vlaneseq
    %v3579 = vshrl.u32 %v3578, 7
    %v3580 = vsub.s32 %v3577, %v3579
    %v3581 = vrot.slane %v2882, %v3580
    %v3583 = vunpack.c.l.s4 1966171168
    %v3584 = vunpack.c.0.s8 %v3583
    %v3585 = vlaneseq
    %v3586 = vshrl.u32 %v3585, 7
    %v3587 = vsub.s32 %v3584, %v3586
    %v3588 = vrot.slane %v3574, %v3587
    %v3589 = vcombine.high %v3581, %v3581
    %v3590 = vcombine.high %v3588, %v3588
    %v3592 = vunpack.c.l.s4 1966171168
    %v3593 = vunpack.c.0.s8 %v3592
    %v3594 = vlaneseq
    %v3595 = vshrl.u32 %v3594, 7
    %v3596 = vsub.s32 %v3593, %v3595
    %v3597 = vrot.slane %v3581, %v3596
    %v3599 = vunpack.c.l.s4 1966171168
    %v3600 = vunpack.c.0.s8 %v3599
    %v3601 = vlaneseq
    %v3602 = vshrl.u32 %v3601, 7
    %v3603 = vsub.s32 %v3600, %v3602
    %v3604 = vrot.slane %v3588, %v3603
    %v3606 = vunpack.c.l.s4 1966171168
    %v3607 = vunpack.c.0.s8 %v3606
    %v3608 = vlaneseq
    %v3609 = vshrl.u32 %v3608, 7
    %v3610 = vsub.s32 %v3607, %v3609
    %v3611 = vrot.slane %v3589, %v3610
    %v3613 = vunpack.c.l.s4 1966171168
    %v3614 = vunpack.c.0.s8 %v3613
    %v3615 = vlaneseq
    %v3616 = vshrl.u32 %v3615, 7
    %v3617 = vsub.s32 %v3614, %v3616
    %v3618 = vrot.slane %v3590, %v3617
    %v3619 = vcombine.high %v3597, %v3597
    %v3620 = vcombine.high %v3611, %v3611
    %v3622 = vcombine.high %v3278, %v3278
    %v3624 = vunpack.c.l.s4 1966171168
    %v3625 = vunpack.c.0.s8 %v3624
    %v3626 = vlaneseq
    %v3627 = vshrl.u32 %v3626, 7
    %v3628 = vsub.s32 %v3625, %v3627
    %v3629 = vrot.slane %v3278, %v3628
    %v3631 = vunpack.c.l.s4 1966171168
    %v3632 = vunpack.c.0.s8 %v3631
    %v3633 = vlaneseq
    %v3634 = vshrl.u32 %v3633, 7
    %v3635 = vsub.s32 %v3632, %v3634
    %v3636 = vrot.slane %v3622, %v3635
    %v3637 = vcombine.high %v3629, %v3629
    %v3638 = vcombine.high %v3636, %v3636
    %v3640 = vunpack.c.l.s4 1966171168
    %v3641 = vunpack.c.0.s8 %v3640
    %v3642 = vlaneseq
    %v3643 = vshrl.u32 %v3642, 7
    %v3644 = vsub.s32 %v3641, %v3643
    %v3645 = vrot.slane %v3629, %v3644
    %v3647 = vunpack.c.l.s4 1966171168
    %v3648 = vunpack.c.0.s8 %v3647
    %v3649 = vlaneseq
    %v3650 = vshrl.u32 %v3649, 7
    %v3651 = vsub.s32 %v3648, %v3650
    %v3652 = vrot.slane %v3636, %v3651
    %v3654 = vunpack.c.l.s4 1966171168
    %v3655 = vunpack.c.0.s8 %v3654
    %v3656 = vlaneseq
    %v3657 = vshrl.u32 %v3656, 7
    %v3658 = vsub.s32 %v3655, %v3657
    %v3659 = vrot.slane %v3637, %v3658
    %v3661 = vunpack.c.l.s4 1966171168
    %v3662 = vunpack.c.0.s8 %v3661
    %v3663 = vlaneseq
    %v3664 = vshrl.u32 %v3663, 7
    %v3665 = vsub.s32 %v3662, %v3664
    %v3666 = vrot.slane %v3638, %v3665
    %v3667 = vcombine.high %v3645, %v3645
    %v3668 = vcombine.high %v3659, %v3659
    %v3669 = vlaneseq
    %v3670 = vshrl.u32 %v3669, 7
    %v3671 = vsub.s32 0, %v3670
    %v3672 = vrot.slane %v3357, %v3671
    %v3673 = vlaneseq
    %v3674 = vshrl.u32 %v3673, 7
    %v3675 = vsub.s32 0, %v3674
    %v3676 = vrot.slane %v3371, %v3675
    %v3677 = vlaneseq
    %v3678 = vshrl.u32 %v3677, 7
    %v3679 = vsub.s32 0, %v3678
    %v3680 = vrot.slane %v3379, %v3679
    %v3681 = vlaneseq
    %v3682 = vshrl.u32 %v3681, 7
    %v3683 = vsub.s32 0, %v3682
    %v3684 = vrot.slane %v3380, %v3683
    %v3685 = vlaneseq
    %v3686 = vshrl.u32 %v3685, 7
    %v3687 = vsub.s32 0, %v3686
    %v3688 = vrot.slane %v3364, %v3687
    %v3689 = vlaneseq
    %v3690 = vshrl.u32 %v3689, 7
    %v3691 = vsub.s32 0, %v3690
    %v3692 = vrot.slane %v3378, %v3691
    %v3699 = vlaneseq
    %v3700 = vshrl.u32 %v3699, 7
    %v3701 = vsub.s32 0, %v3700
    %v3702 = vrot.slane %v3405, %v3701
    %v3703 = vlaneseq
    %v3704 = vshrl.u32 %v3703, 7
    %v3705 = vsub.s32 0, %v3704
    %v3706 = vrot.slane %v3419, %v3705
    %v3707 = vlaneseq
    %v3708 = vshrl.u32 %v3707, 7
    %v3709 = vsub.s32 0, %v3708
    %v3710 = vrot.slane %v3427, %v3709
    %v3711 = vlaneseq
    %v3712 = vshrl.u32 %v3711, 7
    %v3713 = vsub.s32 0, %v3712
    %v3714 = vrot.slane %v3428, %v3713
    %v3715 = vlaneseq
    %v3716 = vshrl.u32 %v3715, 7
    %v3717 = vsub.s32 0, %v3716
    %v3718 = vrot.slane %v3412, %v3717
    %v3719 = vlaneseq
    %v3720 = vshrl.u32 %v3719, 7
    %v3721 = vsub.s32 0, %v3720
    %v3722 = vrot.slane %v3426, %v3721
    %v3729 = vlaneseq
    %v3730 = vshrl.u32 %v3729, 7
    %v3731 = vsub.s32 0, %v3730
    %v3732 = vrot.slane %v3453, %v3731
    %v3733 = vlaneseq
    %v3734 = vshrl.u32 %v3733, 7
    %v3735 = vsub.s32 0, %v3734
    %v3736 = vrot.slane %v3467, %v3735
    %v3737 = vlaneseq
    %v3738 = vshrl.u32 %v3737, 7
    %v3739 = vsub.s32 0, %v3738
    %v3740 = vrot.slane %v3475, %v3739
    %v3741 = vlaneseq
    %v3742 = vshrl.u32 %v3741, 7
    %v3743 = vsub.s32 0, %v3742
    %v3744 = vrot.slane %v3476, %v3743
    %v3745 = vlaneseq
    %v3746 = vshrl.u32 %v3745, 7
    %v3747 = vsub.s32 0, %v3746
    %v3748 = vrot.slane %v3460, %v3747
    %v3749 = vlaneseq
    %v3750 = vshrl.u32 %v3749, 7
    %v3751 = vsub.s32 0, %v3750
    %v3752 = vrot.slane %v3474, %v3751
    %v3759 = vlaneseq
    %v3760 = vshrl.u32 %v3759, 7
    %v3761 = vsub.s32 0, %v3760
    %v3762 = vrot.slane %v3501, %v3761
    %v3763 = vlaneseq
    %v3764 = vshrl.u32 %v3763, 7
    %v3765 = vsub.s32 0, %v3764
    %v3766 = vrot.slane %v3515, %v3765
    %v3767 = vlaneseq
    %v3768 = vshrl.u32 %v3767, 7
    %v3769 = vsub.s32 0, %v3768
    %v3770 = vrot.slane %v3523, %v3769
    %v3771 = vlaneseq
    %v3772 = vshrl.u32 %v3771, 7
    %v3773 = vsub.s32 0, %v3772
    %v3774 = vrot.slane %v3524, %v3773
    %v3775 = vlaneseq
    %v3776 = vshrl.u32 %v3775, 7
    %v3777 = vsub.s32 0, %v3776
    %v3778 = vrot.slane %v3508, %v3777
    %v3779 = vlaneseq
    %v3780 = vshrl.u32 %v3779, 7
    %v3781 = vsub.s32 0, %v3780
    %v3782 = vrot.slane %v3522, %v3781
    %v3789 = vlaneseq
    %v3790 = vshrl.u32 %v3789, 7
    %v3791 = vsub.s32 0, %v3790
    %v3792 = vrot.slane %v3549, %v3791
    %v3793 = vlaneseq
    %v3794 = vshrl.u32 %v3793, 7
    %v3795 = vsub.s32 0, %v3794
    %v3796 = vrot.slane %v3563, %v3795
    %v3797 = vlaneseq
    %v3798 = vshrl.u32 %v3797, 7
    %v3799 = vsub.s32 0, %v3798
    %v3800 = vrot.slane %v3571, %v3799
    %v3801 = vlaneseq
    %v3802 = vshrl.u32 %v3801, 7
    %v3803 = vsub.s32 0, %v3802
    %v3804 = vrot.slane %v3572, %v3803
    %v3805 = vlaneseq
    %v3806 = vshrl.u32 %v3805, 7
    %v3807 = vsub.s32 0, %v3806
    %v3808 = vrot.slane %v3556, %v3807
    %v3809 = vlaneseq
    %v3810 = vshrl.u32 %v3809, 7
    %v3811 = vsub.s32 0, %v3810
    %v3812 = vrot.slane %v3570, %v3811
    %v3819 = vlaneseq
    %v3820 = vshrl.u32 %v3819, 7
    %v3821 = vsub.s32 0, %v3820
    %v3822 = vrot.slane %v3597, %v3821
    %v3823 = vlaneseq
    %v3824 = vshrl.u32 %v3823, 7
    %v3825 = vsub.s32 0, %v3824
    %v3826 = vrot.slane %v3611, %v3825
    %v3827 = vlaneseq
    %v3828 = vshrl.u32 %v3827, 7
    %v3829 = vsub.s32 0, %v3828
    %v3830 = vrot.slane %v3619, %v3829
    %v3831 = vlaneseq
    %v3832 = vshrl.u32 %v3831, 7
    %v3833 = vsub.s32 0, %v3832
    %v3834 = vrot.slane %v3620, %v3833
    %v3835 = vlaneseq
    %v3836 = vshrl.u32 %v3835, 7
    %v3837 = vsub.s32 0, %v3836
    %v3838 = vrot.slane %v3604, %v3837
    %v3839 = vlaneseq
    %v3840 = vshrl.u32 %v3839, 7
    %v3841 = vsub.s32 0, %v3840
    %v3842 = vrot.slane %v3618, %v3841
    %v3849 = vlaneseq
    %v3850 = vshrl.u32 %v3849, 7
    %v3851 = vsub.s32 0, %v3850
    %v3852 = vrot.slane %v3645, %v3851
    %v3853 = vlaneseq
    %v3854 = vshrl.u32 %v3853, 7
    %v3855 = vsub.s32 0, %v3854
    %v3856 = vrot.slane %v3659, %v3855
    %v3857 = vlaneseq
    %v3858 = vshrl.u32 %v3857, 7
    %v3859 = vsub.s32 0, %v3858
    %v3860 = vrot.slane %v3667, %v3859
    %v3861 = vlaneseq
    %v3862 = vshrl.u32 %v3861, 7
    %v3863 = vsub.s32 0, %v3862
    %v3864 = vrot.slane %v3668, %v3863
    %v3865 = vlaneseq
    %v3866 = vshrl.u32 %v3865, 7
    %v3867 = vsub.s32 0, %v3866
    %v3868 = vrot.slane %v3652, %v3867
    %v3869 = vlaneseq
    %v3870 = vshrl.u32 %v3869, 7
    %v3871 = vsub.s32 0, %v3870
    %v3872 = vrot.slane %v3666, %v3871
    %vm3879 = vcmask 1040384
    %v3880 = vsel %vm3879, %v3303, %v3672
    %v3881 = vsel %vm3879, %v3317, %v3676
    %v3882 = vsel %vm3879, %v3325, %v3680
    %v3883 = vsel %vm3879, %v3326, %v3684
    %v3884 = vsel %vm3879, %v3310, %v3688
    %v3885 = vsel %vm3879, %v3324, %v3692
    %vm3886 = vcmask 1041408
    %v3887 = vsel %vm3886, %v3880, %v3702
    %v3888 = vsel %vm3886, %v3881, %v3706
    %v3889 = vsel %vm3886, %v3882, %v3710
    %v3890 = vsel %vm3886, %v3883, %v3714
    %v3891 = vsel %vm3886, %v3884, %v3718
    %v3892 = vsel %vm3886, %v3885, %v3722
    %vm3893 = vcmask 1042432
    %v3894 = vsel %vm3893, %v3887, %v3732
    %v3895 = vsel %vm3893, %v3888, %v3736
    %v3896 = vsel %vm3893, %v3889, %v3740
    %v3897 = vsel %vm3893, %v3890, %v3744
    %v3898 = vsel %vm3893, %v3891, %v3748
    %v3899 = vsel %vm3893, %v3892, %v3752
    %vm3900 = vcmask 1043456
    %v3901 = vsel %vm3900, %v3894, %v3762
    %v3902 = vsel %vm3900, %v3895, %v3766
    %v3903 = vsel %vm3900, %v3896, %v3770
    %v3904 = vsel %vm3900, %v3897, %v3774
    %v3905 = vsel %vm3900, %v3898, %v3778
    %v3906 = vsel %vm3900, %v3899, %v3782
    %vm3907 = vcmask 1044480
    %v3908 = vsel %vm3907, %v3901, %v3792
    %v3909 = vsel %vm3907, %v3902, %v3796
    %v3910 = vsel %vm3907, %v3903, %v3800
    %v3911 = vsel %vm3907, %v3904, %v3804
    %v3912 = vsel %vm3907, %v3905, %v3808
    %v3913 = vsel %vm3907, %v3906, %v3812
    %vm3914 = vcmask 1045504
    %v3915 = vsel %vm3914, %v3908, %v3822
    %v3916 = vsel %vm3914, %v3909, %v3826
    %v3917 = vsel %vm3914, %v3910, %v3830
    %v3918 = vsel %vm3914, %v3911, %v3834
    %v3919 = vsel %vm3914, %v3912, %v3838
    %v3920 = vsel %vm3914, %v3913, %v3842
    %vm3921 = vcmask 1046528
    %v3922 = vsel %vm3921, %v3915, %v3852
    %v3923 = vsel %vm3921, %v3916, %v3856
    %v3924 = vsel %vm3921, %v3917, %v3860
    %v3925 = vsel %vm3921, %v3918, %v3864
    %v3926 = vsel %vm3921, %v3919, %v3868
    %v3927 = vsel %vm3921, %v3920, %v3872
    %3928 = vst [vmem:[%s6] sm:$0xff] %v3922
    %3929 = vst [vmem:[%s6 + $0x8] sm:$0xff] %v3923
    %3930 = vst [vmem:[%s6 + $0x10] sm:$0xff] %v3924
    %3931 = vst [vmem:[%s6 + $0x18] sm:$0xff] %v3925
    %3932 = vst [vmem:[%s6 + $0x20] sm:$0xff] %v3926
    %3933 = vst [vmem:[%s6 + $0x28] sm:$0xff] %v3927
    %v3934 = vcombine.high %v296, %v296
    %v3936 = vunpack.c.l.s4 1966171168
    %v3937 = vunpack.c.0.s8 %v3936
    %v3938 = vlaneseq
    %v3939 = vshrl.u32 %v3938, 7
    %v3940 = vsub.s32 %v3937, %v3939
    %v3941 = vrot.slane %v296, %v3940
    %v3943 = vunpack.c.l.s4 1966171168
    %v3944 = vunpack.c.0.s8 %v3943
    %v3945 = vlaneseq
    %v3946 = vshrl.u32 %v3945, 7
    %v3947 = vsub.s32 %v3944, %v3946
    %v3948 = vrot.slane %v3934, %v3947
    %v3949 = vcombine.high %v3941, %v3941
    %v3950 = vcombine.high %v3948, %v3948
    %v3952 = vunpack.c.l.s4 1966171168
    %v3953 = vunpack.c.0.s8 %v3952
    %v3954 = vlaneseq
    %v3955 = vshrl.u32 %v3954, 7
    %v3956 = vsub.s32 %v3953, %v3955
    %v3957 = vrot.slane %v3941, %v3956
    %v3959 = vunpack.c.l.s4 1966171168
    %v3960 = vunpack.c.0.s8 %v3959
    %v3961 = vlaneseq
    %v3962 = vshrl.u32 %v3961, 7
    %v3963 = vsub.s32 %v3960, %v3962
    %v3964 = vrot.slane %v3948, %v3963
    %v3966 = vunpack.c.l.s4 1966171168
    %v3967 = vunpack.c.0.s8 %v3966
    %v3968 = vlaneseq
    %v3969 = vshrl.u32 %v3968, 7
    %v3970 = vsub.s32 %v3967, %v3969
    %v3971 = vrot.slane %v3949, %v3970
    %v3973 = vunpack.c.l.s4 1966171168
    %v3974 = vunpack.c.0.s8 %v3973
    %v3975 = vlaneseq
    %v3976 = vshrl.u32 %v3975, 7
    %v3977 = vsub.s32 %v3974, %v3976
    %v3978 = vrot.slane %v3950, %v3977
    %v3979 = vcombine.high %v3957, %v3957
    %v3980 = vcombine.high %v3971, %v3971
    %v3987 = vcombine.high %v692, %v692
    %v3989 = vunpack.c.l.s4 1966171168
    %v3990 = vunpack.c.0.s8 %v3989
    %v3991 = vlaneseq
    %v3992 = vshrl.u32 %v3991, 7
    %v3993 = vsub.s32 %v3990, %v3992
    %v3994 = vrot.slane %v692, %v3993
    %v3996 = vunpack.c.l.s4 1966171168
    %v3997 = vunpack.c.0.s8 %v3996
    %v3998 = vlaneseq
    %v3999 = vshrl.u32 %v3998, 7
    %v4000 = vsub.s32 %v3997, %v3999
    %v4001 = vrot.slane %v3987, %v4000
    %v4002 = vcombine.high %v3994, %v3994
    %v4003 = vcombine.high %v4001, %v4001
    %v4005 = vunpack.c.l.s4 1966171168
    %v4006 = vunpack.c.0.s8 %v4005
    %v4007 = vlaneseq
    %v4008 = vshrl.u32 %v4007, 7
    %v4009 = vsub.s32 %v4006, %v4008
    %v4010 = vrot.slane %v3994, %v4009
    %v4012 = vunpack.c.l.s4 1966171168
    %v4013 = vunpack.c.0.s8 %v4012
    %v4014 = vlaneseq
    %v4015 = vshrl.u32 %v4014, 7
    %v4016 = vsub.s32 %v4013, %v4015
    %v4017 = vrot.slane %v4001, %v4016
    %v4019 = vunpack.c.l.s4 1966171168
    %v4020 = vunpack.c.0.s8 %v4019
    %v4021 = vlaneseq
    %v4022 = vshrl.u32 %v4021, 7
    %v4023 = vsub.s32 %v4020, %v4022
    %v4024 = vrot.slane %v4002, %v4023
    %v4026 = vunpack.c.l.s4 1966171168
    %v4027 = vunpack.c.0.s8 %v4026
    %v4028 = vlaneseq
    %v4029 = vshrl.u32 %v4028, 7
    %v4030 = vsub.s32 %v4027, %v4029
    %v4031 = vrot.slane %v4003, %v4030
    %v4032 = vcombine.high %v4010, %v4010
    %v4033 = vcombine.high %v4024, %v4024
    %v4034 = vcombine.high %v1087, %v1087
    %v4036 = vunpack.c.l.s4 1966171168
    %v4037 = vunpack.c.0.s8 %v4036
    %v4038 = vlaneseq
    %v4039 = vshrl.u32 %v4038, 7
    %v4040 = vsub.s32 %v4037, %v4039
    %v4041 = vrot.slane %v1087, %v4040
    %v4043 = vunpack.c.l.s4 1966171168
    %v4044 = vunpack.c.0.s8 %v4043
    %v4045 = vlaneseq
    %v4046 = vshrl.u32 %v4045, 7
    %v4047 = vsub.s32 %v4044, %v4046
    %v4048 = vrot.slane %v4034, %v4047
    %v4049 = vcombine.high %v4041, %v4041
    %v4050 = vcombine.high %v4048, %v4048
    %v4052 = vunpack.c.l.s4 1966171168
    %v4053 = vunpack.c.0.s8 %v4052
    %v4054 = vlaneseq
    %v4055 = vshrl.u32 %v4054, 7
    %v4056 = vsub.s32 %v4053, %v4055
    %v4057 = vrot.slane %v4041, %v4056
    %v4059 = vunpack.c.l.s4 1966171168
    %v4060 = vunpack.c.0.s8 %v4059
    %v4061 = vlaneseq
    %v4062 = vshrl.u32 %v4061, 7
    %v4063 = vsub.s32 %v4060, %v4062
    %v4064 = vrot.slane %v4048, %v4063
    %v4066 = vunpack.c.l.s4 1966171168
    %v4067 = vunpack.c.0.s8 %v4066
    %v4068 = vlaneseq
    %v4069 = vshrl.u32 %v4068, 7
    %v4070 = vsub.s32 %v4067, %v4069
    %v4071 = vrot.slane %v4049, %v4070
    %v4073 = vunpack.c.l.s4 1966171168
    %v4074 = vunpack.c.0.s8 %v4073
    %v4075 = vlaneseq
    %v4076 = vshrl.u32 %v4075, 7
    %v4077 = vsub.s32 %v4074, %v4076
    %v4078 = vrot.slane %v4050, %v4077
    %v4079 = vcombine.high %v4057, %v4057
    %v4080 = vcombine.high %v4071, %v4071
    %v4081 = vcombine.high %v1482, %v1482
    %v4083 = vunpack.c.l.s4 1966171168
    %v4084 = vunpack.c.0.s8 %v4083
    %v4085 = vlaneseq
    %v4086 = vshrl.u32 %v4085, 7
    %v4087 = vsub.s32 %v4084, %v4086
    %v4088 = vrot.slane %v1482, %v4087
    %v4090 = vunpack.c.l.s4 1966171168
    %v4091 = vunpack.c.0.s8 %v4090
    %v4092 = vlaneseq
    %v4093 = vshrl.u32 %v4092, 7
    %v4094 = vsub.s32 %v4091, %v4093
    %v4095 = vrot.slane %v4081, %v4094
    %v4096 = vcombine.high %v4088, %v4088
    %v4097 = vcombine.high %v4095, %v4095
    %v4099 = vunpack.c.l.s4 1966171168
    %v4100 = vunpack.c.0.s8 %v4099
    %v4101 = vlaneseq
    %v4102 = vshrl.u32 %v4101, 7
    %v4103 = vsub.s32 %v4100, %v4102
    %v4104 = vrot.slane %v4088, %v4103
    %v4106 = vunpack.c.l.s4 1966171168
    %v4107 = vunpack.c.0.s8 %v4106
    %v4108 = vlaneseq
    %v4109 = vshrl.u32 %v4108, 7
    %v4110 = vsub.s32 %v4107, %v4109
    %v4111 = vrot.slane %v4095, %v4110
    %v4113 = vunpack.c.l.s4 1966171168
    %v4114 = vunpack.c.0.s8 %v4113
    %v4115 = vlaneseq
    %v4116 = vshrl.u32 %v4115, 7
    %v4117 = vsub.s32 %v4114, %v4116
    %v4118 = vrot.slane %v4096, %v4117
    %v4120 = vunpack.c.l.s4 1966171168
    %v4121 = vunpack.c.0.s8 %v4120
    %v4122 = vlaneseq
    %v4123 = vshrl.u32 %v4122, 7
    %v4124 = vsub.s32 %v4121, %v4123
    %v4125 = vrot.slane %v4097, %v4124
    %v4126 = vcombine.high %v4104, %v4104
    %v4127 = vcombine.high %v4118, %v4118
    %v4128 = vcombine.high %v1877, %v1877
    %v4130 = vunpack.c.l.s4 1966171168
    %v4131 = vunpack.c.0.s8 %v4130
    %v4132 = vlaneseq
    %v4133 = vshrl.u32 %v4132, 7
    %v4134 = vsub.s32 %v4131, %v4133
    %v4135 = vrot.slane %v1877, %v4134
    %v4137 = vunpack.c.l.s4 1966171168
    %v4138 = vunpack.c.0.s8 %v4137
    %v4139 = vlaneseq
    %v4140 = vshrl.u32 %v4139, 7
    %v4141 = vsub.s32 %v4138, %v4140
    %v4142 = vrot.slane %v4128, %v4141
    %v4143 = vcombine.high %v4135, %v4135
    %v4144 = vcombine.high %v4142, %v4142
    %v4146 = vunpack.c.l.s4 1966171168
    %v4147 = vunpack.c.0.s8 %v4146
    %v4148 = vlaneseq
    %v4149 = vshrl.u32 %v4148, 7
    %v4150 = vsub.s32 %v4147, %v4149
    %v4151 = vrot.slane %v4135, %v4150
    %v4153 = vunpack.c.l.s4 1966171168
    %v4154 = vunpack.c.0.s8 %v4153
    %v4155 = vlaneseq
    %v4156 = vshrl.u32 %v4155, 7
    %v4157 = vsub.s32 %v4154, %v4156
    %v4158 = vrot.slane %v4142, %v4157
    %v4160 = vunpack.c.l.s4 1966171168
    %v4161 = vunpack.c.0.s8 %v4160
    %v4162 = vlaneseq
    %v4163 = vshrl.u32 %v4162, 7
    %v4164 = vsub.s32 %v4161, %v4163
    %v4165 = vrot.slane %v4143, %v4164
    %v4167 = vunpack.c.l.s4 1966171168
    %v4168 = vunpack.c.0.s8 %v4167
    %v4169 = vlaneseq
    %v4170 = vshrl.u32 %v4169, 7
    %v4171 = vsub.s32 %v4168, %v4170
    %v4172 = vrot.slane %v4144, %v4171
    %v4173 = vcombine.high %v4151, %v4151
    %v4174 = vcombine.high %v4165, %v4165
    %v4175 = vcombine.high %v2272, %v2272
    %v4177 = vunpack.c.l.s4 1966171168
    %v4178 = vunpack.c.0.s8 %v4177
    %v4179 = vlaneseq
    %v4180 = vshrl.u32 %v4179, 7
    %v4181 = vsub.s32 %v4178, %v4180
    %v4182 = vrot.slane %v2272, %v4181
    %v4184 = vunpack.c.l.s4 1966171168
    %v4185 = vunpack.c.0.s8 %v4184
    %v4186 = vlaneseq
    %v4187 = vshrl.u32 %v4186, 7
    %v4188 = vsub.s32 %v4185, %v4187
    %v4189 = vrot.slane %v4175, %v4188
    %v4190 = vcombine.high %v4182, %v4182
    %v4191 = vcombine.high %v4189, %v4189
    %v4193 = vunpack.c.l.s4 1966171168
    %v4194 = vunpack.c.0.s8 %v4193
    %v4195 = vlaneseq
    %v4196 = vshrl.u32 %v4195, 7
    %v4197 = vsub.s32 %v4194, %v4196
    %v4198 = vrot.slane %v4182, %v4197
    %v4200 = vunpack.c.l.s4 1966171168
    %v4201 = vunpack.c.0.s8 %v4200
    %v4202 = vlaneseq
    %v4203 = vshrl.u32 %v4202, 7
    %v4204 = vsub.s32 %v4201, %v4203
    %v4205 = vrot.slane %v4189, %v4204
    %v4207 = vunpack.c.l.s4 1966171168
    %v4208 = vunpack.c.0.s8 %v4207
    %v4209 = vlaneseq
    %v4210 = vshrl.u32 %v4209, 7
    %v4211 = vsub.s32 %v4208, %v4210
    %v4212 = vrot.slane %v4190, %v4211
    %v4214 = vunpack.c.l.s4 1966171168
    %v4215 = vunpack.c.0.s8 %v4214
    %v4216 = vlaneseq
    %v4217 = vshrl.u32 %v4216, 7
    %v4218 = vsub.s32 %v4215, %v4217
    %v4219 = vrot.slane %v4191, %v4218
    %v4220 = vcombine.high %v4198, %v4198
    %v4221 = vcombine.high %v4212, %v4212
    %v4222 = vcombine.high %v2668, %v2668
    %v4224 = vunpack.c.l.s4 1966171168
    %v4225 = vunpack.c.0.s8 %v4224
    %v4226 = vlaneseq
    %v4227 = vshrl.u32 %v4226, 7
    %v4228 = vsub.s32 %v4225, %v4227
    %v4229 = vrot.slane %v2668, %v4228
    %v4231 = vunpack.c.l.s4 1966171168
    %v4232 = vunpack.c.0.s8 %v4231
    %v4233 = vlaneseq
    %v4234 = vshrl.u32 %v4233, 7
    %v4235 = vsub.s32 %v4232, %v4234
    %v4236 = vrot.slane %v4222, %v4235
    %v4237 = vcombine.high %v4229, %v4229
    %v4238 = vcombine.high %v4236, %v4236
    %v4240 = vunpack.c.l.s4 1966171168
    %v4241 = vunpack.c.0.s8 %v4240
    %v4242 = vlaneseq
    %v4243 = vshrl.u32 %v4242, 7
    %v4244 = vsub.s32 %v4241, %v4243
    %v4245 = vrot.slane %v4229, %v4244
    %v4247 = vunpack.c.l.s4 1966171168
    %v4248 = vunpack.c.0.s8 %v4247
    %v4249 = vlaneseq
    %v4250 = vshrl.u32 %v4249, 7
    %v4251 = vsub.s32 %v4248, %v4250
    %v4252 = vrot.slane %v4236, %v4251
    %v4254 = vunpack.c.l.s4 1966171168
    %v4255 = vunpack.c.0.s8 %v4254
    %v4256 = vlaneseq
    %v4257 = vshrl.u32 %v4256, 7
    %v4258 = vsub.s32 %v4255, %v4257
    %v4259 = vrot.slane %v4237, %v4258
    %v4261 = vunpack.c.l.s4 1966171168
    %v4262 = vunpack.c.0.s8 %v4261
    %v4263 = vlaneseq
    %v4264 = vshrl.u32 %v4263, 7
    %v4265 = vsub.s32 %v4262, %v4264
    %v4266 = vrot.slane %v4238, %v4265
    %v4267 = vcombine.high %v4245, %v4245
    %v4268 = vcombine.high %v4259, %v4259
    %v4269 = vcombine.high %v3064, %v3064
    %v4271 = vunpack.c.l.s4 1966171168
    %v4272 = vunpack.c.0.s8 %v4271
    %v4273 = vlaneseq
    %v4274 = vshrl.u32 %v4273, 7
    %v4275 = vsub.s32 %v4272, %v4274
    %v4276 = vrot.slane %v3064, %v4275
    %v4278 = vunpack.c.l.s4 1966171168
    %v4279 = vunpack.c.0.s8 %v4278
    %v4280 = vlaneseq
    %v4281 = vshrl.u32 %v4280, 7
    %v4282 = vsub.s32 %v4279, %v4281
    %v4283 = vrot.slane %v4269, %v4282
    %v4284 = vcombine.high %v4276, %v4276
    %v4285 = vcombine.high %v4283, %v4283
    %v4287 = vunpack.c.l.s4 1966171168
    %v4288 = vunpack.c.0.s8 %v4287
    %v4289 = vlaneseq
    %v4290 = vshrl.u32 %v4289, 7
    %v4291 = vsub.s32 %v4288, %v4290
    %v4292 = vrot.slane %v4276, %v4291
    %v4294 = vunpack.c.l.s4 1966171168
    %v4295 = vunpack.c.0.s8 %v4294
    %v4296 = vlaneseq
    %v4297 = vshrl.u32 %v4296, 7
    %v4298 = vsub.s32 %v4295, %v4297
    %v4299 = vrot.slane %v4283, %v4298
    %v4301 = vunpack.c.l.s4 1966171168
    %v4302 = vunpack.c.0.s8 %v4301
    %v4303 = vlaneseq
    %v4304 = vshrl.u32 %v4303, 7
    %v4305 = vsub.s32 %v4302, %v4304
    %v4306 = vrot.slane %v4284, %v4305
    %v4308 = vunpack.c.l.s4 1966171168
    %v4309 = vunpack.c.0.s8 %v4308
    %v4310 = vlaneseq
    %v4311 = vshrl.u32 %v4310, 7
    %v4312 = vsub.s32 %v4309, %v4311
    %v4313 = vrot.slane %v4285, %v4312
    %v4314 = vcombine.high %v4292, %v4292
    %v4315 = vcombine.high %v4306, %v4306
    %v4316 = vlaneseq
    %v4317 = vshrl.u32 %v4316, 7
    %v4318 = vsub.s32 0, %v4317
    %v4319 = vrot.slane %v4010, %v4318
    %v4320 = vlaneseq
    %v4321 = vshrl.u32 %v4320, 7
    %v4322 = vsub.s32 0, %v4321
    %v4323 = vrot.slane %v4024, %v4322
    %v4324 = vlaneseq
    %v4325 = vshrl.u32 %v4324, 7
    %v4326 = vsub.s32 0, %v4325
    %v4327 = vrot.slane %v4032, %v4326
    %v4328 = vlaneseq
    %v4329 = vshrl.u32 %v4328, 7
    %v4330 = vsub.s32 0, %v4329
    %v4331 = vrot.slane %v4033, %v4330
    %v4332 = vlaneseq
    %v4333 = vshrl.u32 %v4332, 7
    %v4334 = vsub.s32 0, %v4333
    %v4335 = vrot.slane %v4017, %v4334
    %v4336 = vlaneseq
    %v4337 = vshrl.u32 %v4336, 7
    %v4338 = vsub.s32 0, %v4337
    %v4339 = vrot.slane %v4031, %v4338
    %v4346 = vlaneseq
    %v4347 = vshrl.u32 %v4346, 7
    %v4348 = vsub.s32 0, %v4347
    %v4349 = vrot.slane %v4057, %v4348
    %v4350 = vlaneseq
    %v4351 = vshrl.u32 %v4350, 7
    %v4352 = vsub.s32 0, %v4351
    %v4353 = vrot.slane %v4071, %v4352
    %v4354 = vlaneseq
    %v4355 = vshrl.u32 %v4354, 7
    %v4356 = vsub.s32 0, %v4355
    %v4357 = vrot.slane %v4079, %v4356
    %v4358 = vlaneseq
    %v4359 = vshrl.u32 %v4358, 7
    %v4360 = vsub.s32 0, %v4359
    %v4361 = vrot.slane %v4080, %v4360
    %v4362 = vlaneseq
    %v4363 = vshrl.u32 %v4362, 7
    %v4364 = vsub.s32 0, %v4363
    %v4365 = vrot.slane %v4064, %v4364
    %v4366 = vlaneseq
    %v4367 = vshrl.u32 %v4366, 7
    %v4368 = vsub.s32 0, %v4367
    %v4369 = vrot.slane %v4078, %v4368
    %v4376 = vlaneseq
    %v4377 = vshrl.u32 %v4376, 7
    %v4378 = vsub.s32 0, %v4377
    %v4379 = vrot.slane %v4104, %v4378
    %v4380 = vlaneseq
    %v4381 = vshrl.u32 %v4380, 7
    %v4382 = vsub.s32 0, %v4381
    %v4383 = vrot.slane %v4118, %v4382
    %v4384 = vlaneseq
    %v4385 = vshrl.u32 %v4384, 7
    %v4386 = vsub.s32 0, %v4385
    %v4387 = vrot.slane %v4126, %v4386
    %v4388 = vlaneseq
    %v4389 = vshrl.u32 %v4388, 7
    %v4390 = vsub.s32 0, %v4389
    %v4391 = vrot.slane %v4127, %v4390
    %v4392 = vlaneseq
    %v4393 = vshrl.u32 %v4392, 7
    %v4394 = vsub.s32 0, %v4393
    %v4395 = vrot.slane %v4111, %v4394
    %v4396 = vlaneseq
    %v4397 = vshrl.u32 %v4396, 7
    %v4398 = vsub.s32 0, %v4397
    %v4399 = vrot.slane %v4125, %v4398
    %v4406 = vlaneseq
    %v4407 = vshrl.u32 %v4406, 7
    %v4408 = vsub.s32 0, %v4407
    %v4409 = vrot.slane %v4151, %v4408
    %v4410 = vlaneseq
    %v4411 = vshrl.u32 %v4410, 7
    %v4412 = vsub.s32 0, %v4411
    %v4413 = vrot.slane %v4165, %v4412
    %v4414 = vlaneseq
    %v4415 = vshrl.u32 %v4414, 7
    %v4416 = vsub.s32 0, %v4415
    %v4417 = vrot.slane %v4173, %v4416
    %v4418 = vlaneseq
    %v4419 = vshrl.u32 %v4418, 7
    %v4420 = vsub.s32 0, %v4419
    %v4421 = vrot.slane %v4174, %v4420
    %v4422 = vlaneseq
    %v4423 = vshrl.u32 %v4422, 7
    %v4424 = vsub.s32 0, %v4423
    %v4425 = vrot.slane %v4158, %v4424
    %v4426 = vlaneseq
    %v4427 = vshrl.u32 %v4426, 7
    %v4428 = vsub.s32 0, %v4427
    %v4429 = vrot.slane %v4172, %v4428
    %v4436 = vlaneseq
    %v4437 = vshrl.u32 %v4436, 7
    %v4438 = vsub.s32 0, %v4437
    %v4439 = vrot.slane %v4198, %v4438
    %v4440 = vlaneseq
    %v4441 = vshrl.u32 %v4440, 7
    %v4442 = vsub.s32 0, %v4441
    %v4443 = vrot.slane %v4212, %v4442
    %v4444 = vlaneseq
    %v4445 = vshrl.u32 %v4444, 7
    %v4446 = vsub.s32 0, %v4445
    %v4447 = vrot.slane %v4220, %v4446
    %v4448 = vlaneseq
    %v4449 = vshrl.u32 %v4448, 7
    %v4450 = vsub.s32 0, %v4449
    %v4451 = vrot.slane %v4221, %v4450
    %v4452 = vlaneseq
    %v4453 = vshrl.u32 %v4452, 7
    %v4454 = vsub.s32 0, %v4453
    %v4455 = vrot.slane %v4205, %v4454
    %v4456 = vlaneseq
    %v4457 = vshrl.u32 %v4456, 7
    %v4458 = vsub.s32 0, %v4457
    %v4459 = vrot.slane %v4219, %v4458
    %v4466 = vlaneseq
    %v4467 = vshrl.u32 %v4466, 7
    %v4468 = vsub.s32 0, %v4467
    %v4469 = vrot.slane %v4245, %v4468
    %v4470 = vlaneseq
    %v4471 = vshrl.u32 %v4470, 7
    %v4472 = vsub.s32 0, %v4471
    %v4473 = vrot.slane %v4259, %v4472
    %v4474 = vlaneseq
    %v4475 = vshrl.u32 %v4474, 7
    %v4476 = vsub.s32 0, %v4475
    %v4477 = vrot.slane %v4267, %v4476
    %v4478 = vlaneseq
    %v4479 = vshrl.u32 %v4478, 7
    %v4480 = vsub.s32 0, %v4479
    %v4481 = vrot.slane %v4268, %v4480
    %v4482 = vlaneseq
    %v4483 = vshrl.u32 %v4482, 7
    %v4484 = vsub.s32 0, %v4483
    %v4485 = vrot.slane %v4252, %v4484
    %v4486 = vlaneseq
    %v4487 = vshrl.u32 %v4486, 7
    %v4488 = vsub.s32 0, %v4487
    %v4489 = vrot.slane %v4266, %v4488
    %v4496 = vlaneseq
    %v4497 = vshrl.u32 %v4496, 7
    %v4498 = vsub.s32 0, %v4497
    %v4499 = vrot.slane %v4292, %v4498
    %v4500 = vlaneseq
    %v4501 = vshrl.u32 %v4500, 7
    %v4502 = vsub.s32 0, %v4501
    %v4503 = vrot.slane %v4306, %v4502
    %v4504 = vlaneseq
    %v4505 = vshrl.u32 %v4504, 7
    %v4506 = vsub.s32 0, %v4505
    %v4507 = vrot.slane %v4314, %v4506
    %v4508 = vlaneseq
    %v4509 = vshrl.u32 %v4508, 7
    %v4510 = vsub.s32 0, %v4509
    %v4511 = vrot.slane %v4315, %v4510
    %v4512 = vlaneseq
    %v4513 = vshrl.u32 %v4512, 7
    %v4514 = vsub.s32 0, %v4513
    %v4515 = vrot.slane %v4299, %v4514
    %v4516 = vlaneseq
    %v4517 = vshrl.u32 %v4516, 7
    %v4518 = vsub.s32 0, %v4517
    %v4519 = vrot.slane %v4313, %v4518
    %v4526 = vsel %vm3879, %v3957, %v4319
    %v4527 = vsel %vm3879, %v3971, %v4323
    %v4528 = vsel %vm3879, %v3979, %v4327
    %v4529 = vsel %vm3879, %v3980, %v4331
    %v4530 = vsel %vm3879, %v3964, %v4335
    %v4531 = vsel %vm3879, %v3978, %v4339
    %v4532 = vsel %vm3886, %v4526, %v4349
    %v4533 = vsel %vm3886, %v4527, %v4353
    %v4534 = vsel %vm3886, %v4528, %v4357
    %v4535 = vsel %vm3886, %v4529, %v4361
    %v4536 = vsel %vm3886, %v4530, %v4365
    %v4537 = vsel %vm3886, %v4531, %v4369
    %v4538 = vsel %vm3893, %v4532, %v4379
    %v4539 = vsel %vm3893, %v4533, %v4383
    %v4540 = vsel %vm3893, %v4534, %v4387
    %v4541 = vsel %vm3893, %v4535, %v4391
    %v4542 = vsel %vm3893, %v4536, %v4395
    %v4543 = vsel %vm3893, %v4537, %v4399
    %v4544 = vsel %vm3900, %v4538, %v4409
    %v4545 = vsel %vm3900, %v4539, %v4413
    %v4546 = vsel %vm3900, %v4540, %v4417
    %v4547 = vsel %vm3900, %v4541, %v4421
    %v4548 = vsel %vm3900, %v4542, %v4425
    %v4549 = vsel %vm3900, %v4543, %v4429
    %v4550 = vsel %vm3907, %v4544, %v4439
    %v4551 = vsel %vm3907, %v4545, %v4443
    %v4552 = vsel %vm3907, %v4546, %v4447
    %v4553 = vsel %vm3907, %v4547, %v4451
    %v4554 = vsel %vm3907, %v4548, %v4455
    %v4555 = vsel %vm3907, %v4549, %v4459
    %v4556 = vsel %vm3914, %v4550, %v4469
    %v4557 = vsel %vm3914, %v4551, %v4473
    %v4558 = vsel %vm3914, %v4552, %v4477
    %v4559 = vsel %vm3914, %v4553, %v4481
    %v4560 = vsel %vm3914, %v4554, %v4485
    %v4561 = vsel %vm3914, %v4555, %v4489
    %v4562 = vsel %vm3921, %v4556, %v4499
    %v4563 = vsel %vm3921, %v4557, %v4503
    %v4564 = vsel %vm3921, %v4558, %v4507
    %v4565 = vsel %vm3921, %v4559, %v4511
    %v4566 = vsel %vm3921, %v4560, %v4515
    %v4567 = vsel %vm3921, %v4561, %v4519
    %4568 = vst.msk [vmem:[#allocation4] sm:$0xff] %vm297, %v4562
    %4569 = vst.msk [vmem:[#allocation4 + $0x8] sm:$0xff] %vm297, %v4563
    %4570 = vst.msk [vmem:[#allocation4 + $0x10] sm:$0xff] %vm297, %v4564
    %4571 = vst.msk [vmem:[#allocation4 + $0x18] sm:$0xff] %vm297, %v4565
    %4572 = vst.msk [vmem:[#allocation4 + $0x20] sm:$0xff] %vm297, %v4566
    %4573 = vst.msk [vmem:[#allocation4 + $0x28] sm:$0xff] %vm297, %v4567
    // Predicated region
    $region22: #{rnn_decoder_forward.5} parent=1 // pred_check
      _
    $region23: #{rnn_decoder_forward.5} parent=1 // pred_check_branch
      %4575 = sbr.rel (0) target = $region25
    $region24: #{rnn_decoder_forward.5} parent=1 // pred_region
      _
    $region25: #{rnn_decoder_forward.5} parent=1 // pred_fallthru
      _
    // Predicated region
    $region26: #{rnn_decoder_forward.5} parent=1 // pred_check
      _
    $region27: #{rnn_decoder_forward.5} parent=1 // pred_check_branch
      %4577 = sbr.rel (0) target = $region29
    $region28: #{rnn_decoder_forward.5} parent=1 // pred_region
      %s4579 = ssub.s32 768, 768
      %4580 = vsyncadd [#allocation5], %s4579
      %s4581 = sshll.u32 [#allocation4], 4
      %s4582 = int_to_ptr.vmem [resolvable:$true] %s4581
      %4587 = dma.vmem_to_hbm [thread:$0]  %s4582, 768, %s7, [#allocation5], 128, 128, 8
    $region29: #{rnn_decoder_forward.5} parent=1 // pred_fallthru
      _
    // Predicated region
    $region30: #{rnn_decoder_forward.5} parent=1 // pred_check
      _
    $region31: #{rnn_decoder_forward.5} parent=1 // pred_check_branch
      %4589 = sbr.rel (0) target = $region33
    $region32: #{rnn_decoder_forward.5} parent=1 // pred_region
      _
    $region33: #{rnn_decoder_forward.5} parent=1 // pred_fallthru
      _
    // Predicated region
    $region34: #{rnn_decoder_forward.5} parent=1 // pred_check
      _
    $region35: #{rnn_decoder_forward.5} parent=1 // pred_check_branch
      %4591 = sbr.rel (0) target = $region37
    $region36: #{rnn_decoder_forward.5} parent=1 // pred_region
      %4592 = dma.done [#allocation5], 768
    $region37: #{rnn_decoder_forward.5} parent=1 // pred_fallthru
      _
    %4593 = vsyncpa [#allocation5], 1

</llo_original>
